<compile_context>
chip_gen: v7x
topology: tpu7x:2x2x1
jax: 0.10.0
libtpu: 0.0.40
codegen_flags: <defaults>
</compile_context>

<pallas_src>
import functools

import jax
import jax.numpy as jnp
from jax import lax
from jax.experimental import pallas as pl
from jax.experimental.pallas import tpu as pltpu

_LANES = 128        # vreg lane width: 128 batch rows per packed-output lane row
_TB_QUANTUM = 1024  # multi-tile batch tiles are multiples of this so the
                    # packed-output block's sublane dim (tb/128) is 8-aligned


def _critic_kernel(num_hidden, compute_dtype, mm_prec, s_ref, a_ref, *refs):
    """Fused MLP kernel.

    refs layout (after s_ref, a_ref):
      w_state (ni, H1), w_action (na, H1), b1 (1, H1),
      then (w_i (H_{i-1}, H_i), b_i (1, H_i)) for hidden layers 2..num_hidden,
      then w_out (1, H_last) f32, b_out (1, 1) f32,
      then the output ref (TB//128, 128) f32.
    """
    out_ref = refs[-1]
    params = refs[:-1]

    # First hidden layer: split-K matmul replaces concat([state, action], 1).
    w_s = params[0][...]                      # (ni, H1), compute_dtype
    w_a = params[1][...]                      # (na, H1), compute_dtype
    b1 = params[2][...]                       # (1, H1), f32
    x = (jnp.dot(s_ref[...].astype(compute_dtype), w_s,
                 preferred_element_type=jnp.float32, precision=mm_prec)
         + jnp.dot(a_ref[...].astype(compute_dtype), w_a,
                   preferred_element_type=jnp.float32, precision=mm_prec)
         + b1)
    x = jnp.maximum(x, 0.0)                   # ReLU in f32 (VPU)

    idx = 3
    for _ in range(num_hidden - 1):
        w = params[idx][...]                  # (H_prev, H_i), compute_dtype
        b = params[idx + 1][...]              # (1, H_i), f32
        idx += 2
        x = jnp.dot(x.astype(compute_dtype), w,
                    preferred_element_type=jnp.float32, precision=mm_prec) + b
        x = jnp.maximum(x, 0.0)

    # Output layer with the batch packed onto lanes:
    #   q[r, l] = sum_h x[r*128 + l, h] * w_out[h] + b_out
    # The reshape splits only the sublane (batch) dim -> essentially free; the
    # contraction is a VPU multiply + XLU lane-reduce (the N=1 matmul would
    # waste the MXU anyway), and the store is a dense (R, 128) block.
    w_out = params[idx][...]                  # (1, H_last), f32
    b_out = params[idx + 1][...]              # (1, 1), f32
    tb, h_last = x.shape
    x3 = x.reshape(tb // _LANES, _LANES, h_last)
    q = jnp.sum(x3 * w_out.reshape(1, 1, h_last), axis=-1) + b_out[0, 0]
    out_ref[...] = q                          # (TB//128, 128), f32


def critic_forward(state, action, weights, biases, *, batch_tile=2048,
                   compute_dtype=jnp.bfloat16):
    """Run the fused CriticNetwork forward pass.

    weights: list of arrays, each (in_i, out_i)  (already transposed vs torch)
    biases : list of arrays, each (out_i,)
    The last (weight, bias) pair is the output layer with out == 1.
    Returns q of shape (B, 1), float32.
    """
    assert state.ndim == 2 and action.ndim == 2
    assert state.shape[0] == action.shape[0]
    B, num_inputs = state.shape
    num_actions = action.shape[1]
    num_layers = len(weights)
    num_hidden = num_layers - 1
    assert num_hidden >= 1

    # f32 path uses exact (HIGHEST) MXU passes; bf16 path uses native bf16.
    mm_prec = (lax.Precision.HIGHEST
               if compute_dtype == jnp.float32 else None)

    # --- batch tiling: every tile carries a whole number of 128-row groups ---
    b128 = max(_LANES, ((B + _LANES - 1) // _LANES) * _LANES)
    bt = max(_TB_QUANTUM, (int(batch_tile) // _TB_QUANTUM) * _TB_QUANTUM)
    if b128 <= bt:
        tb = b128                 # single grid step; blocks == full arrays
        bp = b128
    else:
        tb = bt                   # multiple of 1024 -> out block sublane %8==0
        bp = ((b128 + tb - 1) // tb) * tb
    if bp != B:
        state = jnp.pad(state, ((0, bp - B), (0, 0)))
        action = jnp.pad(action, ((0, bp - B), (0, 0)))

    # --- parameter prep (split first layer; output layer stays f32) ---
    w1 = weights[0]                                        # (ni + na, H1)
    params = [
        w1[:num_inputs].astype(compute_dtype),             # w_state
        w1[num_inputs:].astype(compute_dtype),             # w_action
        biases[0].reshape(1, -1).astype(jnp.float32),      # b1
    ]
    for w, b in zip(weights[1:-1], biases[1:-1]):
        params.append(w.astype(compute_dtype))
        params.append(b.reshape(1, -1).astype(jnp.float32))
    params.append(weights[-1].reshape(1, -1).astype(jnp.float32))  # (1, H_last)
    params.append(biases[-1].reshape(1, 1).astype(jnp.float32))    # (1, 1)

    # --- BlockSpecs: batch-tiled activations, params pinned to block (0,0) ---
    in_specs = [
        pl.BlockSpec((tb, num_inputs), lambda i: (i, 0)),
        pl.BlockSpec((tb, num_actions), lambda i: (i, 0)),
    ]
    in_specs += [pl.BlockSpec(p.shape, lambda i: (0, 0)) for p in params]
    out_rows = tb // _LANES
    out_specs = pl.BlockSpec((out_rows, _LANES), lambda i: (i, 0))

    # --- cost estimate (true math sizes) ---
    dims = [num_inputs + num_actions] + [int(w.shape[1]) for w in weights]
    flops = 2 * bp * sum(a * b for a, b in zip(dims[:-1], dims[1:]))
    bytes_accessed = int(
        state.size * state.dtype.itemsize
        + action.size * action.dtype.itemsize
        + sum(int(p.size) * p.dtype.itemsize for p in params)
        + bp * 4)                                  # packed (bp//128, 128) f32
    cost = pl.CostEstimate(flops=int(flops), transcendentals=0,
                           bytes_accessed=bytes_accessed)

    out = pl.pallas_call(
        functools.partial(_critic_kernel, num_hidden, compute_dtype, mm_prec),
        out_shape=jax.ShapeDtypeStruct((bp // _LANES, _LANES), jnp.float32),
        grid=(bp // tb,),
        in_specs=in_specs,
        out_specs=out_specs,
        compiler_params=pltpu.CompilerParams(
            dimension_semantics=("parallel",),
            vmem_limit_bytes=32 * 1024 * 1024),
        cost_estimate=cost,
    )(state, action, *params)

    # (bp//128, 128) packed by batch -> the (B, 1) result the module produces.
    return out.reshape(bp, 1)[:B]


def init_critic_params(key, num_inputs, num_actions, arch,
                       init_w_bounds=0.003, init_b_value=0.1):
    """Deterministic parameter construction mirroring CriticNetwork.__init__.

    Returns (weights, biases) with weights already transposed to (in, out).
    """
    dims_in = [num_inputs + num_actions] + list(arch)
    weights, biases = [], []

    for i, out_dim in enumerate(arch):
        in_dim = dims_in[i]
        key, kw, kb = jax.random.split(key, 3)
        if i == 0:
            # First layer: torch default nn.Linear init (uniform +-1/sqrt(in)).
            bound = 1.0 / jnp.sqrt(in_dim)
            w = jax.random.uniform(kw, (in_dim, out_dim), jnp.float32, -bound, bound)
            b = jax.random.uniform(kb, (out_dim,), jnp.float32, -bound, bound)
        else:
            # fanin_init uses size[0] of the torch (out, in) weight => out_dim
            # (faithful to the original rlkit-style quirk).
            bound = 1.0 / jnp.sqrt(out_dim)
            w = jax.random.uniform(kw, (in_dim, out_dim), jnp.float32, -bound, bound)
            b = jnp.full((out_dim,), init_b_value, jnp.float32)
        weights.append(w)
        biases.append(b)

    # Output layer: uniform_init in +-init_w_bounds.
    key, kw, kb = jax.random.split(key, 3)
    w_out = jax.random.uniform(kw, (arch[-1], 1), jnp.float32,
                               -init_w_bounds, init_w_bounds)
    b_out = jax.random.uniform(kb, (1,), jnp.float32,
                               -init_w_bounds, init_w_bounds)
    weights.append(w_out)
    biases.append(b_out)
    return weights, biases


def critic_reference(state, action, weights, biases):
    """Pure-JAX reference for correctness checking."""
    x = jnp.concatenate([state, action], axis=1)
    for w, b in zip(weights[:-1], biases[:-1]):
        x = jnp.maximum(x @ w + b, 0.0)
    return x @ weights[-1] + biases[-1]


if __name__ == "__main__":
    key = jax.random.PRNGKey(0)

    batch = 2
    num_inputs = 8      # state dim
    num_actions = 4     # action dim
    arch = [32, 32]     # hidden layer sizes

    key, ks, ka, kp = jax.random.split(key, 4)
    state = jax.random.normal(ks, (batch, num_inputs), jnp.float32)
    action = jax.random.normal(ka, (batch, num_actions), jnp.float32)

    weights, biases = init_critic_params(kp, num_inputs, num_actions, arch)
    q_ref = critic_reference(state, action, weights, biases)

    # f32 path (precision=HIGHEST): bit-tight check against the reference.
    q = critic_forward(state, action, weights, biases,
                       compute_dtype=jnp.float32)
    q = jax.block_until_ready(q)
    assert q.shape == (batch, 1), q.shape
    assert jnp.allclose(q, q_ref, atol=1e-5, rtol=1e-5), (q, q_ref)

    # bf16-matmul / f32-accumulate production path: loose check.
    q_bf16 = critic_forward(state, action, weights, biases,
                            compute_dtype=jnp.bfloat16)
    q_bf16 = jax.block_until_ready(q_bf16)
    assert q_bf16.shape == (batch, 1), q_bf16.shape
    assert jnp.allclose(q_bf16, q_ref, atol=5e-2, rtol=5e-2), (q_bf16, q_ref)

    print("KERNEL_OK")
</pallas_src>

<mosaic_0001>
module attributes {stable_mosaic.version = 11 : i64} {
  func.func @_critic_kernel(%arg0: i32, %arg1: memref<128x8xf32, #tpu.memory_space<vmem>>, %arg2: memref<128x4xf32, #tpu.memory_space<vmem>>, %arg3: memref<8x32xf32, #tpu.memory_space<vmem>>, %arg4: memref<4x32xf32, #tpu.memory_space<vmem>>, %arg5: memref<1x32xf32, #tpu.memory_space<vmem>>, %arg6: memref<32x32xf32, #tpu.memory_space<vmem>>, %arg7: memref<1x32xf32, #tpu.memory_space<vmem>>, %arg8: memref<1x32xf32, #tpu.memory_space<vmem>>, %arg9: memref<1x1xf32, #tpu.memory_space<vmem>>, %arg10: memref<1x128xf32, #tpu.memory_space<vmem>>) attributes {dimension_semantics = [#tpu.dimension_semantics<parallel>], iteration_bounds = array<i64: 1>, scalar_prefetch = 0 : i64, scratch_operands = 0 : i64, tpu.core_type = #tpu.core_type<tc>, window_params = [{transform_indices = @transform_0, window_bounds = array<i64: 128, 8>}, {transform_indices = @transform_1, window_bounds = array<i64: 128, 4>}, {pipeline_mode = #tpu.pipeline_mode<synchronous>, transform_indices = @transform_2, window_bounds = array<i64: 8, 32>}, {pipeline_mode = #tpu.pipeline_mode<synchronous>, transform_indices = @transform_3, window_bounds = array<i64: 4, 32>}, {pipeline_mode = #tpu.pipeline_mode<synchronous>, transform_indices = @transform_4, window_bounds = array<i64: 1, 32>}, {pipeline_mode = #tpu.pipeline_mode<synchronous>, transform_indices = @transform_5, window_bounds = array<i64: 32, 32>}, {pipeline_mode = #tpu.pipeline_mode<synchronous>, transform_indices = @transform_6, window_bounds = array<i64: 1, 32>}, {pipeline_mode = #tpu.pipeline_mode<synchronous>, transform_indices = @transform_7, window_bounds = array<i64: 1, 32>}, {pipeline_mode = #tpu.pipeline_mode<synchronous>, transform_indices = @transform_8, window_bounds = array<i64: 1, 1>}, {transform_indices = @transform_9, window_bounds = array<i64: 1, 128>}]} {
    %c0 = arith.constant 0 : index
    %c0_0 = arith.constant 0 : index
    %0 = vector.load %arg3[%c0, %c0_0] : memref<8x32xf32, #tpu.memory_space<vmem>>, vector<8x32xf32>
    %c0_1 = arith.constant 0 : index
    %c0_2 = arith.constant 0 : index
    %1 = vector.load %arg4[%c0_1, %c0_2] : memref<4x32xf32, #tpu.memory_space<vmem>>, vector<4x32xf32>
    %c0_3 = arith.constant 0 : index
    %c0_4 = arith.constant 0 : index
    %2 = vector.load %arg5[%c0_3, %c0_4] : memref<1x32xf32, #tpu.memory_space<vmem>>, vector<1x32xf32>
    %c0_5 = arith.constant 0 : index
    %c0_6 = arith.constant 0 : index
    %3 = vector.load %arg1[%c0_5, %c0_6] : memref<128x8xf32, #tpu.memory_space<vmem>>, vector<128x8xf32>
    %cst = arith.constant dense<0.000000e+00> : vector<128x32xf32>
    %4 = tpu.matmul %3, %0, %cst {dimension_numbers = #tpu.dot_dimension_numbers<[1], [0], [0], [1], [0, 0, 1, 1], [], []>, precision = #tpu.contract_precision<fp32>} : vector<128x8xf32>, vector<8x32xf32>, vector<128x32xf32> -> vector<128x32xf32>
    %c0_7 = arith.constant 0 : index
    %c0_8 = arith.constant 0 : index
    %5 = vector.load %arg2[%c0_7, %c0_8] : memref<128x4xf32, #tpu.memory_space<vmem>>, vector<128x4xf32>
    %cst_9 = arith.constant dense<0.000000e+00> : vector<128x32xf32>
    %6 = tpu.matmul %5, %1, %cst_9 {dimension_numbers = #tpu.dot_dimension_numbers<[1], [0], [0], [1], [0, 0, 1, 1], [], []>, precision = #tpu.contract_precision<fp32>} : vector<128x4xf32>, vector<4x32xf32>, vector<128x32xf32> -> vector<128x32xf32>
    %7 = arith.addf %4, %6 : vector<128x32xf32>
    %8 = vector.broadcast %2 : vector<1x32xf32> to vector<128x32xf32>
    %9 = arith.addf %7, %8 : vector<128x32xf32>
    %cst_10 = arith.constant 0.000000e+00 : f32
    %10 = vector.broadcast %cst_10 : f32 to vector<128x32xf32>
    %11 = arith.maximumf %9, %10 : vector<128x32xf32>
    %c0_11 = arith.constant 0 : index
    %c0_12 = arith.constant 0 : index
    %12 = vector.load %arg6[%c0_11, %c0_12] : memref<32x32xf32, #tpu.memory_space<vmem>>, vector<32x32xf32>
    %c0_13 = arith.constant 0 : index
    %c0_14 = arith.constant 0 : index
    %13 = vector.load %arg7[%c0_13, %c0_14] : memref<1x32xf32, #tpu.memory_space<vmem>>, vector<1x32xf32>
    %cst_15 = arith.constant dense<0.000000e+00> : vector<128x32xf32>
    %14 = tpu.matmul %11, %12, %cst_15 {dimension_numbers = #tpu.dot_dimension_numbers<[1], [0], [0], [1], [0, 0, 1, 1], [], []>, precision = #tpu.contract_precision<fp32>} : vector<128x32xf32>, vector<32x32xf32>, vector<128x32xf32> -> vector<128x32xf32>
    %15 = vector.broadcast %13 : vector<1x32xf32> to vector<128x32xf32>
    %16 = arith.addf %14, %15 : vector<128x32xf32>
    %cst_16 = arith.constant 0.000000e+00 : f32
    %17 = vector.broadcast %cst_16 : f32 to vector<128x32xf32>
    %18 = arith.maximumf %16, %17 : vector<128x32xf32>
    %c0_17 = arith.constant 0 : index
    %c0_18 = arith.constant 0 : index
    %19 = vector.load %arg8[%c0_17, %c0_18] : memref<1x32xf32, #tpu.memory_space<vmem>>, vector<1x32xf32>
    %c0_19 = arith.constant 0 : index
    %c0_20 = arith.constant 0 : index
    %20 = vector.load %arg9[%c0_19, %c0_20] : memref<1x1xf32, #tpu.memory_space<vmem>>, vector<1x1xf32>
    %21 = vector.shape_cast %18 : vector<128x32xf32> to vector<1x128x32xf32>
    %22 = vector.shape_cast %19 : vector<1x32xf32> to vector<1x1x32xf32>
    %23 = vector.broadcast %22 : vector<1x1x32xf32> to vector<1x128x32xf32>
    %24 = arith.mulf %21, %23 : vector<1x128x32xf32>
    %cst_21 = arith.constant dense<0.000000e+00> : vector<1x128xf32>
    %25 = vector.multi_reduction <add>, %24, %cst_21 [2] : vector<1x128x32xf32> to vector<1x128xf32>
    %26 = vector.extract %20[0, 0] : f32 from vector<1x1xf32>
    %27 = vector.broadcast %26 : f32 to vector<1x128xf32>
    %28 = arith.addf %25, %27 : vector<1x128xf32>
    %c0_22 = arith.constant 0 : index
    %c0_23 = arith.constant 0 : index
    %29 = vector.load %arg10[%c0_22, %c0_23] : memref<1x128xf32, #tpu.memory_space<vmem>>, vector<1x128xf32>
    tpu.vector_store %arg10[%c0_22, %c0_23], %28 {strides = array<i32>} : memref<1x128xf32, #tpu.memory_space<vmem>>, vector<1x128xf32>,
    return
  }
  func.func @transform_0(%arg0: i32) -> (i32, i32) {
    %c0_i32 = arith.constant 0 : i32
    %c0_i32_0 = arith.constant 0 : i32
    return %arg0, %c0_i32 : i32, i32
  }
  func.func @transform_1(%arg0: i32) -> (i32, i32) {
    %c0_i32 = arith.constant 0 : i32
    %c0_i32_0 = arith.constant 0 : i32
    return %arg0, %c0_i32 : i32, i32
  }
  func.func @transform_2(%arg0: i32) -> (i32, i32) {
    %c0_i32 = arith.constant 0 : i32
    %c0_i32_0 = arith.constant 0 : i32
    %c0_i32_1 = arith.constant 0 : i32
    return %c0_i32, %c0_i32_0 : i32, i32
  }
  func.func @transform_3(%arg0: i32) -> (i32, i32) {
    %c0_i32 = arith.constant 0 : i32
    %c0_i32_0 = arith.constant 0 : i32
    %c0_i32_1 = arith.constant 0 : i32
    return %c0_i32, %c0_i32_0 : i32, i32
  }
  func.func @transform_4(%arg0: i32) -> (i32, i32) {
    %c0_i32 = arith.constant 0 : i32
    %c0_i32_0 = arith.constant 0 : i32
    %c0_i32_1 = arith.constant 0 : i32
    return %c0_i32, %c0_i32_0 : i32, i32
  }
  func.func @transform_5(%arg0: i32) -> (i32, i32) {
    %c0_i32 = arith.constant 0 : i32
    %c0_i32_0 = arith.constant 0 : i32
    %c0_i32_1 = arith.constant 0 : i32
    return %c0_i32, %c0_i32_0 : i32, i32
  }
  func.func @transform_6(%arg0: i32) -> (i32, i32) {
    %c0_i32 = arith.constant 0 : i32
    %c0_i32_0 = arith.constant 0 : i32
    %c0_i32_1 = arith.constant 0 : i32
    return %c0_i32, %c0_i32_0 : i32, i32
  }
  func.func @transform_7(%arg0: i32) -> (i32, i32) {
    %c0_i32 = arith.constant 0 : i32
    %c0_i32_0 = arith.constant 0 : i32
    %c0_i32_1 = arith.constant 0 : i32
    return %c0_i32, %c0_i32_0 : i32, i32
  }
  func.func @transform_8(%arg0: i32) -> (i32, i32) {
    %c0_i32 = arith.constant 0 : i32
    %c0_i32_0 = arith.constant 0 : i32
    %c0_i32_1 = arith.constant 0 : i32
    return %c0_i32, %c0_i32_0 : i32, i32
  }
  func.func @transform_9(%arg0: i32) -> (i32, i32) {
    %c0_i32 = arith.constant 0 : i32
    %c0_i32_0 = arith.constant 0 : i32
    return %arg0, %c0_i32 : i32, i32
  }
}

</mosaic_0001>

<llo_original>
// kernel: tpu_custom_call.1
$region0: #{tpu_custom_call.1}
  #allocation0 [shape = 'u32[]', space=smem, size = 0x4, offset = 0x4, fixed_abs, tag = 'smem constant byte address 0x4 - core index']
  #allocation1 [shape = 'u32[144,128]{1,0:T(1,128)}', space=vmem, size = 0x12000, scoped, tag = 'internal scratch']
  #allocation2 [shape = 'f32[1,1]{1,0:T(1,128)S(1)}', space=vmem, size = 0x200, scoped, tag = 'scoped memory for tpu_custom_call.1']
  %s0 = inlined_call_operand.vmem [shape: f32[128,8], index: 0, kind: input, shape index: {}]
  %s1 = inlined_call_operand.vmem [shape: f32[128,4], index: 1, kind: input, shape index: {}]
  %s2 = inlined_call_operand.vmem [shape: f32[8,32], index: 2, kind: input, shape index: {}]
  %s3 = inlined_call_operand.vmem [shape: f32[4,32], index: 3, kind: input, shape index: {}]
  %s4 = inlined_call_operand.vmem [shape: f32[1,32], index: 4, kind: input, shape index: {}]
  %s5 = inlined_call_operand.vmem [shape: f32[32,32], index: 5, kind: input, shape index: {}]
  %s6 = inlined_call_operand.vmem [shape: f32[1,32], index: 6, kind: input, shape index: {}]
  %s7 = inlined_call_operand.vmem [shape: f32[1,32], index: 7, kind: input, shape index: {}]
  %s8 = inlined_call_operand.<no memory space> [shape: f32[1,1], index: 8, kind: input, shape index: {}]
  %s9 = inlined_call_operand.hbm [shape: f32[1,128], index: 9, kind: output, shape index: {}]
  %s10 = sld [smem:[#allocation0]]
  $region46: #{tpu_custom_call.1} parent=0
    _
  %s12 = ssub.s32 1, %s10
  %s13 = scalar_select 0, %s12, %s10
  %v14 = vstv %s8
  %15 = vst [vmem:[#allocation2] sm:$0x1] %v14
  $region1: #{tpu_custom_call.1} parent=0
    #allocation3 [shape = 'u8[512]{0}', space=vmem, size = 0x400, scoped, tag = 'output window, operand 0, single buffered']
    #allocation4 [shape = 's32[1]{0}', space=sflag, size = 0x4, scoped, tag = 'scoped memory for tpu_custom_call.1']
    %16 = vsyncpa [#allocation4], 0
    // Predicated region
    $region2: #{tpu_custom_call.1} parent=1 // pred_check
      _
    $region3: #{tpu_custom_call.1} parent=1 // pred_check_branch
      %18 = sbr.rel (0) target = $region5
    $region4: #{tpu_custom_call.1} parent=1 // pred_region
      _
    $region5: #{tpu_custom_call.1} parent=1 // pred_fallthru
      _
    // Predicated region
    $region6: #{tpu_custom_call.1} parent=1 // pred_check
      _
    $region7: #{tpu_custom_call.1} parent=1 // pred_check_branch
      %20 = sbr.rel (0) target = $region9
    $region8: #{tpu_custom_call.1} parent=1 // pred_region
      _
    $region9: #{tpu_custom_call.1} parent=1 // pred_fallthru
      _
    // Predicated region
    $region10: #{tpu_custom_call.1} parent=1 // pred_check
      _
    $region11: #{tpu_custom_call.1} parent=1 // pred_check_branch
      %22 = sbr.rel (0) target = $region13
    $region12: #{tpu_custom_call.1} parent=1 // pred_region
      _
    $region13: #{tpu_custom_call.1} parent=1 // pred_fallthru
      _
    // Predicated region
    $region14: #{tpu_custom_call.1} parent=1 // pred_check
      _
    $region15: #{tpu_custom_call.1} parent=1 // pred_check_branch
      %24 = sbr.rel (0) target = $region17
    $region16: #{tpu_custom_call.1} parent=1 // pred_region
      _
    $region17: #{tpu_custom_call.1} parent=1 // pred_fallthru
      _
    // Predicated region
    $region18: #{tpu_custom_call.1} parent=1 // pred_check
      _
    $region19: #{tpu_custom_call.1} parent=1 // pred_check_branch
      %26 = sbr.rel (0) target = $region21
    $region20: #{tpu_custom_call.1} parent=1 // pred_region
      _
    $region21: #{tpu_custom_call.1} parent=1 // pred_fallthru
      _
    // Predicated region
    $region22: #{tpu_custom_call.1} parent=1 // pred_check
      _
    $region23: #{tpu_custom_call.1} parent=1 // pred_check_branch
      %28 = sbr.rel (0) target = $region25
    $region24: #{tpu_custom_call.1} parent=1 // pred_region
      _
    $region25: #{tpu_custom_call.1} parent=1 // pred_fallthru
      _
    // Predicated region
    $region26: #{tpu_custom_call.1} parent=1 // pred_check
      _
    $region27: #{tpu_custom_call.1} parent=1 // pred_check_branch
      %30 = sbr.rel (0) target = $region29
    $region28: #{tpu_custom_call.1} parent=1 // pred_region
      _
    $region29: #{tpu_custom_call.1} parent=1 // pred_fallthru
      _
    // Predicated region
    $region30: #{tpu_custom_call.1} parent=1 // pred_check
      _
    $region31: #{tpu_custom_call.1} parent=1 // pred_check_branch
      %32 = sbr.rel (0) target = $region33
    $region32: #{tpu_custom_call.1} parent=1 // pred_region
      _
    $region33: #{tpu_custom_call.1} parent=1 // pred_fallthru
      _
    // Predicated region
    $region34: #{tpu_custom_call.1} parent=1 // pred_check
      _
    $region35: #{tpu_custom_call.1} parent=1 // pred_check_branch
      %34 = sbr.rel (0) target = $region37
    $region36: #{tpu_custom_call.1} parent=1 // pred_region
      _
    $region37: #{tpu_custom_call.1} parent=1 // pred_fallthru
      _
    %v35 = vld [vmem:[%s2] sm:$0xff]
    %v36 = vld [vmem:[%s3] sm:$0xf]
    %v37 = vld [vmem:[%s4] sm:$0x1]
    %v38 = vld [vmem:[%s0] sm:$0xff]
    %v39 = vld [vmem:[%s0 + $0x8] sm:$0xff]
    %v40 = vld [vmem:[%s0 + $0x10] sm:$0xff]
    %v41 = vld [vmem:[%s0 + $0x18] sm:$0xff]
    %v42 = vld [vmem:[%s0 + $0x20] sm:$0xff]
    %v43 = vld [vmem:[%s0 + $0x28] sm:$0xff]
    %v44 = vld [vmem:[%s0 + $0x30] sm:$0xff]
    %v45 = vld [vmem:[%s0 + $0x38] sm:$0xff]
    %v46 = vld [vmem:[%s0 + $0x40] sm:$0xff]
    %v47 = vld [vmem:[%s0 + $0x48] sm:$0xff]
    %v48 = vld [vmem:[%s0 + $0x50] sm:$0xff]
    %v49 = vld [vmem:[%s0 + $0x58] sm:$0xff]
    %v50 = vld [vmem:[%s0 + $0x60] sm:$0xff]
    %v51 = vld [vmem:[%s0 + $0x68] sm:$0xff]
    %v52 = vld [vmem:[%s0 + $0x70] sm:$0xff]
    %v53 = vld [vmem:[%s0 + $0x78] sm:$0xff]
    %v54 = vld [vmem:[%s1] sm:$0xff]
    %v55 = vld [vmem:[%s1 + $0x8] sm:$0xff]
    %v56 = vld [vmem:[%s1 + $0x10] sm:$0xff]
    %v57 = vld [vmem:[%s1 + $0x18] sm:$0xff]
    %v58 = vld [vmem:[%s1 + $0x20] sm:$0xff]
    %v59 = vld [vmem:[%s1 + $0x28] sm:$0xff]
    %v60 = vld [vmem:[%s1 + $0x30] sm:$0xff]
    %v61 = vld [vmem:[%s1 + $0x38] sm:$0xff]
    %v62 = vld [vmem:[%s1 + $0x40] sm:$0xff]
    %v63 = vld [vmem:[%s1 + $0x48] sm:$0xff]
    %v64 = vld [vmem:[%s1 + $0x50] sm:$0xff]
    %v65 = vld [vmem:[%s1 + $0x58] sm:$0xff]
    %v66 = vld [vmem:[%s1 + $0x60] sm:$0xff]
    %v67 = vld [vmem:[%s1 + $0x68] sm:$0xff]
    %v68 = vld [vmem:[%s1 + $0x70] sm:$0xff]
    %v69 = vld [vmem:[%s1 + $0x78] sm:$0xff]
    %vm70 = vcmask 31744
    %v72 = vsel %vm70, %v54, 0
    %v75 = vsel %vm70, %v55, 0
    %v78 = vsel %vm70, %v56, 0
    %v81 = vsel %vm70, %v57, 0
    %v84 = vsel %vm70, %v58, 0
    %v87 = vsel %vm70, %v59, 0
    %v90 = vsel %vm70, %v60, 0
    %v93 = vsel %vm70, %v61, 0
    %v96 = vsel %vm70, %v62, 0
    %v99 = vsel %vm70, %v63, 0
    %v102 = vsel %vm70, %v64, 0
    %v105 = vsel %vm70, %v65, 0
    %v108 = vsel %vm70, %v66, 0
    %v111 = vsel %vm70, %v67, 0
    %v114 = vsel %vm70, %v68, 0
    %v117 = vsel %vm70, %v69, 0
    %vm119 = vcmask 1043456
    %v121 = vsel %vm119, %v36, 0
    %123 = vmatprep.subr.mxu0 0.0
    %v124 = vand.u32 %v121, 4294901760
    %125 = vmatpush1.msra.mxu0 %v124
    %126 = vmatprep.subr.mxu0 0.0
    %127 = vmatpush1.msra.mxu0 0.0
    %128 = vmatprep.subr.mxu0 0.0
    %129 = vmatpush1.msra.mxu0 0.0
    %130 = vmatprep.subr.mxu0 0.0
    %131 = vmatpush1.msra.mxu0 0.0
    %132 = vmatprep.subr.mxu0 0.0
    %133 = vmatpush1.msra.mxu0 0.0
    %134 = vmatprep.subr.mxu0 0.0
    %135 = vmatpush1.msra.mxu0 0.0
    %136 = vmatprep.subr.mxu0 0.0
    %137 = vmatpush1.msra.mxu0 0.0
    %138 = vmatprep.subr.mxu0 0.0
    %139 = vmatpush1.msra.mxu0 0.0
    %140 = vmatprep.subr.mxu0 0.0
    %141 = vmatpush1.msra.mxu0 0.0
    %142 = vmatprep.subr.mxu0 0.0
    %143 = vmatpush1.msra.mxu0 0.0
    %144 = vmatprep.subr.mxu0 0.0
    %145 = vmatpush1.msra.mxu0 0.0
    %146 = vmatprep.subr.mxu0 0.0
    %147 = vmatpush1.msra.mxu0 0.0
    %148 = vmatprep.subr.mxu0 0.0
    %149 = vmatpush1.msra.mxu0 0.0
    %150 = vmatprep.subr.mxu0 0.0
    %151 = vmatpush1.msra.mxu0 0.0
    %152 = vmatprep.subr.mxu0 0.0
    %153 = vmatpush1.msra.mxu0 0.0
    %154 = vmatprep.subr.mxu0 0.0
    %155 = vmatpush1.msra.mxu0 0.0
    %156 = vmatprep.subr.mxu0 0.0
    %157 = vmatpush1.msra.mxu0 0.0
    %158 = vmatprep.subr.mxu0 0.0
    %159 = vmatpush1.msra.mxu0 0.0
    %160 = vmatprep.subr.mxu0 0.0
    %161 = vmatpush1.msra.mxu0 0.0
    %162 = vmatprep.subr.mxu0 0.0
    %163 = vmatpush1.msra.mxu0 0.0
    %164 = vmatprep.subr.mxu0 0.0
    %165 = vmatpush1.msra.mxu0 0.0
    %166 = vmatprep.subr.mxu0 0.0
    %167 = vmatpush1.msra.mxu0 0.0
    %168 = vmatprep.subr.mxu0 0.0
    %169 = vmatpush1.msra.mxu0 0.0
    %170 = vmatprep.subr.mxu0 0.0
    %171 = vmatpush1.msra.mxu0 0.0
    %172 = vmatprep.subr.mxu0 0.0
    %173 = vmatpush1.msra.mxu0 0.0
    %174 = vmatprep.subr.mxu0 0.0
    %175 = vmatpush1.msra.mxu0 0.0
    %176 = vmatprep.subr.mxu0 0.0
    %177 = vmatpush1.msra.mxu0 0.0
    %178 = vmatprep.subr.mxu0 0.0
    %179 = vmatpush1.msra.mxu0 0.0
    %180 = vmatprep.subr.mxu0 0.0
    %181 = vmatpush1.msra.mxu0 0.0
    %182 = vmatprep.subr.mxu0 0.0
    %183 = vmatpush1.msra.mxu0 0.0
    %184 = vmatprep.subr.mxu0 0.0
    %185 = vmatpush1.msra.mxu0 0.0
    %186 = vmatprep.subr.mxu0 0.0
    %187 = vmatpush1.msra.mxu0 0.0
    %188 = vmatprep.mubr.f32.mxu0 0.0
    %v189 = vand.u32 %v72, 4294901760
    %v190 = vsub.f32 %v72, %v189
    %v191 = vand.u32 %v190, 4294901760
    %v192 = vsub.f32 %v190, %v191
    %v193 = vand.u32 %v192, 4294901760
    %194 = vmatmul.mubr.f32.gmra.mrb[0].mxu0 %v193
    %v195 = vpop.f32.mrb[0].mxu0
    %v196 = vadd.f32 0.0, %v195
    %v197 = vpop.f32.mrb[0].mxu0
    %198 = vmatprep.mubr.f32.mxu0 0.0
    %v199 = vand.u32 %v75, 4294901760
    %v200 = vsub.f32 %v75, %v199
    %v201 = vand.u32 %v200, 4294901760
    %v202 = vsub.f32 %v200, %v201
    %v203 = vand.u32 %v202, 4294901760
    %204 = vmatmul.mubr.f32.gmra.mrb[0].mxu0 %v203
    %v205 = vpop.f32.mrb[0].mxu0
    %v206 = vadd.f32 0.0, %v205
    %v207 = vpop.f32.mrb[0].mxu0
    %208 = vmatprep.mubr.f32.mxu0 0.0
    %v209 = vand.u32 %v78, 4294901760
    %v210 = vsub.f32 %v78, %v209
    %v211 = vand.u32 %v210, 4294901760
    %v212 = vsub.f32 %v210, %v211
    %v213 = vand.u32 %v212, 4294901760
    %214 = vmatmul.mubr.f32.gmra.mrb[0].mxu0 %v213
    %v215 = vpop.f32.mrb[0].mxu0
    %v216 = vadd.f32 0.0, %v215
    %v217 = vpop.f32.mrb[0].mxu0
    %218 = vmatprep.mubr.f32.mxu0 0.0
    %v219 = vand.u32 %v81, 4294901760
    %v220 = vsub.f32 %v81, %v219
    %v221 = vand.u32 %v220, 4294901760
    %v222 = vsub.f32 %v220, %v221
    %v223 = vand.u32 %v222, 4294901760
    %224 = vmatmul.mubr.f32.gmra.mrb[0].mxu0 %v223
    %v225 = vpop.f32.mrb[0].mxu0
    %v226 = vadd.f32 0.0, %v225
    %v227 = vpop.f32.mrb[0].mxu0
    %228 = vmatprep.mubr.f32.mxu0 0.0
    %v229 = vand.u32 %v84, 4294901760
    %v230 = vsub.f32 %v84, %v229
    %v231 = vand.u32 %v230, 4294901760
    %v232 = vsub.f32 %v230, %v231
    %v233 = vand.u32 %v232, 4294901760
    %234 = vmatmul.mubr.f32.gmra.mrb[0].mxu0 %v233
    %v235 = vpop.f32.mrb[0].mxu0
    %v236 = vadd.f32 0.0, %v235
    %v237 = vpop.f32.mrb[0].mxu0
    %238 = vmatprep.mubr.f32.mxu0 0.0
    %v239 = vand.u32 %v87, 4294901760
    %v240 = vsub.f32 %v87, %v239
    %v241 = vand.u32 %v240, 4294901760
    %v242 = vsub.f32 %v240, %v241
    %v243 = vand.u32 %v242, 4294901760
    %244 = vmatmul.mubr.f32.gmra.mrb[0].mxu0 %v243
    %v245 = vpop.f32.mrb[0].mxu0
    %v246 = vadd.f32 0.0, %v245
    %v247 = vpop.f32.mrb[0].mxu0
    %248 = vmatprep.mubr.f32.mxu0 0.0
    %v249 = vand.u32 %v90, 4294901760
    %v250 = vsub.f32 %v90, %v249
    %v251 = vand.u32 %v250, 4294901760
    %v252 = vsub.f32 %v250, %v251
    %v253 = vand.u32 %v252, 4294901760
    %254 = vmatmul.mubr.f32.gmra.mrb[0].mxu0 %v253
    %v255 = vpop.f32.mrb[0].mxu0
    %v256 = vadd.f32 0.0, %v255
    %v257 = vpop.f32.mrb[0].mxu0
    %258 = vmatprep.mubr.f32.mxu0 0.0
    %v259 = vand.u32 %v93, 4294901760
    %v260 = vsub.f32 %v93, %v259
    %v261 = vand.u32 %v260, 4294901760
    %v262 = vsub.f32 %v260, %v261
    %v263 = vand.u32 %v262, 4294901760
    %264 = vmatmul.mubr.f32.gmra.mrb[0].mxu0 %v263
    %v265 = vpop.f32.mrb[0].mxu0
    %v266 = vadd.f32 0.0, %v265
    %v267 = vpop.f32.mrb[0].mxu0
    %268 = vmatprep.mubr.f32.mxu0 0.0
    %v269 = vand.u32 %v96, 4294901760
    %v270 = vsub.f32 %v96, %v269
    %v271 = vand.u32 %v270, 4294901760
    %v272 = vsub.f32 %v270, %v271
    %v273 = vand.u32 %v272, 4294901760
    %274 = vmatmul.mubr.f32.gmra.mrb[0].mxu0 %v273
    %v275 = vpop.f32.mrb[0].mxu0
    %v276 = vadd.f32 0.0, %v275
    %v277 = vpop.f32.mrb[0].mxu0
    %278 = vmatprep.mubr.f32.mxu0 0.0
    %v279 = vand.u32 %v99, 4294901760
    %v280 = vsub.f32 %v99, %v279
    %v281 = vand.u32 %v280, 4294901760
    %v282 = vsub.f32 %v280, %v281
    %v283 = vand.u32 %v282, 4294901760
    %284 = vmatmul.mubr.f32.gmra.mrb[0].mxu0 %v283
    %v285 = vpop.f32.mrb[0].mxu0
    %v286 = vadd.f32 0.0, %v285
    %v287 = vpop.f32.mrb[0].mxu0
    %288 = vmatprep.mubr.f32.mxu0 0.0
    %v289 = vand.u32 %v102, 4294901760
    %v290 = vsub.f32 %v102, %v289
    %v291 = vand.u32 %v290, 4294901760
    %v292 = vsub.f32 %v290, %v291
    %v293 = vand.u32 %v292, 4294901760
    %294 = vmatmul.mubr.f32.gmra.mrb[0].mxu0 %v293
    %v295 = vpop.f32.mrb[0].mxu0
    %v296 = vadd.f32 0.0, %v295
    %v297 = vpop.f32.mrb[0].mxu0
    %298 = vmatprep.mubr.f32.mxu0 0.0
    %v299 = vand.u32 %v105, 4294901760
    %v300 = vsub.f32 %v105, %v299
    %v301 = vand.u32 %v300, 4294901760
    %v302 = vsub.f32 %v300, %v301
    %v303 = vand.u32 %v302, 4294901760
    %304 = vmatmul.mubr.f32.gmra.mrb[0].mxu0 %v303
    %v305 = vpop.f32.mrb[0].mxu0
    %v306 = vadd.f32 0.0, %v305
    %v307 = vpop.f32.mrb[0].mxu0
    %308 = vmatprep.mubr.f32.mxu0 0.0
    %v309 = vand.u32 %v108, 4294901760
    %v310 = vsub.f32 %v108, %v309
    %v311 = vand.u32 %v310, 4294901760
    %v312 = vsub.f32 %v310, %v311
    %v313 = vand.u32 %v312, 4294901760
    %314 = vmatmul.mubr.f32.gmra.mrb[0].mxu0 %v313
    %v315 = vpop.f32.mrb[0].mxu0
    %v316 = vadd.f32 0.0, %v315
    %v317 = vpop.f32.mrb[0].mxu0
    %318 = vmatprep.mubr.f32.mxu0 0.0
    %v319 = vand.u32 %v111, 4294901760
    %v320 = vsub.f32 %v111, %v319
    %v321 = vand.u32 %v320, 4294901760
    %v322 = vsub.f32 %v320, %v321
    %v323 = vand.u32 %v322, 4294901760
    %324 = vmatmul.mubr.f32.gmra.mrb[0].mxu0 %v323
    %v325 = vpop.f32.mrb[0].mxu0
    %v326 = vadd.f32 0.0, %v325
    %v327 = vpop.f32.mrb[0].mxu0
    %328 = vmatprep.mubr.f32.mxu0 0.0
    %v329 = vand.u32 %v114, 4294901760
    %v330 = vsub.f32 %v114, %v329
    %v331 = vand.u32 %v330, 4294901760
    %v332 = vsub.f32 %v330, %v331
    %v333 = vand.u32 %v332, 4294901760
    %334 = vmatmul.mubr.f32.gmra.mrb[0].mxu0 %v333
    %v335 = vpop.f32.mrb[0].mxu0
    %v336 = vadd.f32 0.0, %v335
    %v337 = vpop.f32.mrb[0].mxu0
    %338 = vmatprep.mubr.f32.mxu0 0.0
    %v339 = vand.u32 %v117, 4294901760
    %v340 = vsub.f32 %v117, %v339
    %v341 = vand.u32 %v340, 4294901760
    %v342 = vsub.f32 %v340, %v341
    %v343 = vand.u32 %v342, 4294901760
    %344 = vmatmul.mubr.f32.gmra.mrb[0].mxu0 %v343
    %v345 = vpop.f32.mrb[0].mxu0
    %v346 = vadd.f32 0.0, %v345
    %v347 = vpop.f32.mrb[0].mxu0
    %348 = vdwg.mxu0
    %349 = vmatprep.subr.mxu0 0.0
    %v350 = vand.u32 %v121, 4294901760
    %v351 = vsub.f32 %v121, %v350
    %v352 = vand.u32 %v351, 4294901760
    %v353 = vsub.f32 %v351, %v352
    %v354 = vand.u32 %v353, 4294901760
    %355 = vmatpush1.msra.mxu0 %v354
    %356 = vmatprep.subr.mxu0 0.0
    %357 = vmatpush1.msra.mxu0 0.0
    %358 = vmatprep.subr.mxu0 0.0
    %359 = vmatpush1.msra.mxu0 0.0
    %360 = vmatprep.subr.mxu0 0.0
    %361 = vmatpush1.msra.mxu0 0.0
    %362 = vmatprep.subr.mxu0 0.0
    %363 = vmatpush1.msra.mxu0 0.0
    %364 = vmatprep.subr.mxu0 0.0
    %365 = vmatpush1.msra.mxu0 0.0
    %366 = vmatprep.subr.mxu0 0.0
    %367 = vmatpush1.msra.mxu0 0.0
    %368 = vmatprep.subr.mxu0 0.0
    %369 = vmatpush1.msra.mxu0 0.0
    %370 = vmatprep.subr.mxu0 0.0
    %371 = vmatpush1.msra.mxu0 0.0
    %372 = vmatprep.subr.mxu0 0.0
    %373 = vmatpush1.msra.mxu0 0.0
    %374 = vmatprep.subr.mxu0 0.0
    %375 = vmatpush1.msra.mxu0 0.0
    %376 = vmatprep.subr.mxu0 0.0
    %377 = vmatpush1.msra.mxu0 0.0
    %378 = vmatprep.subr.mxu0 0.0
    %379 = vmatpush1.msra.mxu0 0.0
    %380 = vmatprep.subr.mxu0 0.0
    %381 = vmatpush1.msra.mxu0 0.0
    %382 = vmatprep.subr.mxu0 0.0
    %383 = vmatpush1.msra.mxu0 0.0
    %384 = vmatprep.subr.mxu0 0.0
    %385 = vmatpush1.msra.mxu0 0.0
    %386 = vmatprep.subr.mxu0 0.0
    %387 = vmatpush1.msra.mxu0 0.0
    %388 = vmatprep.subr.mxu0 0.0
    %389 = vmatpush1.msra.mxu0 0.0
    %390 = vmatprep.subr.mxu0 0.0
    %391 = vmatpush1.msra.mxu0 0.0
    %392 = vmatprep.subr.mxu0 0.0
    %393 = vmatpush1.msra.mxu0 0.0
    %394 = vmatprep.subr.mxu0 0.0
    %395 = vmatpush1.msra.mxu0 0.0
    %396 = vmatprep.subr.mxu0 0.0
    %397 = vmatpush1.msra.mxu0 0.0
    %398 = vmatprep.subr.mxu0 0.0
    %399 = vmatpush1.msra.mxu0 0.0
    %400 = vmatprep.subr.mxu0 0.0
    %401 = vmatpush1.msra.mxu0 0.0
    %402 = vmatprep.subr.mxu0 0.0
    %403 = vmatpush1.msra.mxu0 0.0
    %404 = vmatprep.subr.mxu0 0.0
    %405 = vmatpush1.msra.mxu0 0.0
    %406 = vmatprep.subr.mxu0 0.0
    %407 = vmatpush1.msra.mxu0 0.0
    %408 = vmatprep.subr.mxu0 0.0
    %409 = vmatpush1.msra.mxu0 0.0
    %410 = vmatprep.subr.mxu0 0.0
    %411 = vmatpush1.msra.mxu0 0.0
    %412 = vmatprep.subr.mxu0 0.0
    %413 = vmatpush1.msra.mxu0 0.0
    %414 = vmatprep.subr.mxu0 0.0
    %415 = vmatpush1.msra.mxu0 0.0
    %416 = vmatprep.subr.mxu0 0.0
    %417 = vmatpush1.msra.mxu0 0.0
    %418 = vmatprep.mubr.f32.mxu0 0.0
    %v419 = vand.u32 %v72, 4294901760
    %420 = vmatmul.mubr.f32.gmra.mrb[0].mxu0 %v419
    %v421 = vpop.f32.mrb[0].mxu0
    %v422 = vadd.f32 %v196, %v421
    %v423 = vpop.f32.mrb[0].mxu0
    %424 = vmatprep.mubr.f32.mxu0 0.0
    %v425 = vand.u32 %v75, 4294901760
    %426 = vmatmul.mubr.f32.gmra.mrb[0].mxu0 %v425
    %v427 = vpop.f32.mrb[0].mxu0
    %v428 = vadd.f32 %v206, %v427
    %v429 = vpop.f32.mrb[0].mxu0
    %430 = vmatprep.mubr.f32.mxu0 0.0
    %v431 = vand.u32 %v78, 4294901760
    %432 = vmatmul.mubr.f32.gmra.mrb[0].mxu0 %v431
    %v433 = vpop.f32.mrb[0].mxu0
    %v434 = vadd.f32 %v216, %v433
    %v435 = vpop.f32.mrb[0].mxu0
    %436 = vmatprep.mubr.f32.mxu0 0.0
    %v437 = vand.u32 %v81, 4294901760
    %438 = vmatmul.mubr.f32.gmra.mrb[0].mxu0 %v437
    %v439 = vpop.f32.mrb[0].mxu0
    %v440 = vadd.f32 %v226, %v439
    %v441 = vpop.f32.mrb[0].mxu0
    %442 = vmatprep.mubr.f32.mxu0 0.0
    %v443 = vand.u32 %v84, 4294901760
    %444 = vmatmul.mubr.f32.gmra.mrb[0].mxu0 %v443
    %v445 = vpop.f32.mrb[0].mxu0
    %v446 = vadd.f32 %v236, %v445
    %v447 = vpop.f32.mrb[0].mxu0
    %448 = vmatprep.mubr.f32.mxu0 0.0
    %v449 = vand.u32 %v87, 4294901760
    %450 = vmatmul.mubr.f32.gmra.mrb[0].mxu0 %v449
    %v451 = vpop.f32.mrb[0].mxu0
    %v452 = vadd.f32 %v246, %v451
    %v453 = vpop.f32.mrb[0].mxu0
    %454 = vmatprep.mubr.f32.mxu0 0.0
    %v455 = vand.u32 %v90, 4294901760
    %456 = vmatmul.mubr.f32.gmra.mrb[0].mxu0 %v455
    %v457 = vpop.f32.mrb[0].mxu0
    %v458 = vadd.f32 %v256, %v457
    %v459 = vpop.f32.mrb[0].mxu0
    %460 = vmatprep.mubr.f32.mxu0 0.0
    %v461 = vand.u32 %v93, 4294901760
    %462 = vmatmul.mubr.f32.gmra.mrb[0].mxu0 %v461
    %v463 = vpop.f32.mrb[0].mxu0
    %v464 = vadd.f32 %v266, %v463
    %v465 = vpop.f32.mrb[0].mxu0
    %466 = vmatprep.mubr.f32.mxu0 0.0
    %v467 = vand.u32 %v96, 4294901760
    %468 = vmatmul.mubr.f32.gmra.mrb[0].mxu0 %v467
    %v469 = vpop.f32.mrb[0].mxu0
    %v470 = vadd.f32 %v276, %v469
    %v471 = vpop.f32.mrb[0].mxu0
    %472 = vmatprep.mubr.f32.mxu0 0.0
    %v473 = vand.u32 %v99, 4294901760
    %474 = vmatmul.mubr.f32.gmra.mrb[0].mxu0 %v473
    %v475 = vpop.f32.mrb[0].mxu0
    %v476 = vadd.f32 %v286, %v475
    %v477 = vpop.f32.mrb[0].mxu0
    %478 = vmatprep.mubr.f32.mxu0 0.0
    %v479 = vand.u32 %v102, 4294901760
    %480 = vmatmul.mubr.f32.gmra.mrb[0].mxu0 %v479
    %v481 = vpop.f32.mrb[0].mxu0
    %v482 = vadd.f32 %v296, %v481
    %v483 = vpop.f32.mrb[0].mxu0
    %484 = vmatprep.mubr.f32.mxu0 0.0
    %v485 = vand.u32 %v105, 4294901760
    %486 = vmatmul.mubr.f32.gmra.mrb[0].mxu0 %v485
    %v487 = vpop.f32.mrb[0].mxu0
    %v488 = vadd.f32 %v306, %v487
    %v489 = vpop.f32.mrb[0].mxu0
    %490 = vmatprep.mubr.f32.mxu0 0.0
    %v491 = vand.u32 %v108, 4294901760
    %492 = vmatmul.mubr.f32.gmra.mrb[0].mxu0 %v491
    %v493 = vpop.f32.mrb[0].mxu0
    %v494 = vadd.f32 %v316, %v493
    %v495 = vpop.f32.mrb[0].mxu0
    %496 = vmatprep.mubr.f32.mxu0 0.0
    %v497 = vand.u32 %v111, 4294901760
    %498 = vmatmul.mubr.f32.gmra.mrb[0].mxu0 %v497
    %v499 = vpop.f32.mrb[0].mxu0
    %v500 = vadd.f32 %v326, %v499
    %v501 = vpop.f32.mrb[0].mxu0
    %502 = vmatprep.mubr.f32.mxu0 0.0
    %v503 = vand.u32 %v114, 4294901760
    %504 = vmatmul.mubr.f32.gmra.mrb[0].mxu0 %v503
    %v505 = vpop.f32.mrb[0].mxu0
    %v506 = vadd.f32 %v336, %v505
    %v507 = vpop.f32.mrb[0].mxu0
    %508 = vmatprep.mubr.f32.mxu0 0.0
    %v509 = vand.u32 %v117, 4294901760
    %510 = vmatmul.mubr.f32.gmra.mrb[0].mxu0 %v509
    %v511 = vpop.f32.mrb[0].mxu0
    %v512 = vadd.f32 %v346, %v511
    %v513 = vpop.f32.mrb[0].mxu0
    %514 = vdwg.mxu0
    %515 = vmatprep.subr.mxu0 0.0
    %v516 = vand.u32 %v121, 4294901760
    %v517 = vsub.f32 %v121, %v516
    %518 = vmatpush1.msra.mxu0 %v517
    %519 = vmatprep.subr.mxu0 0.0
    %520 = vmatpush1.msra.mxu0 0.0
    %521 = vmatprep.subr.mxu0 0.0
    %522 = vmatpush1.msra.mxu0 0.0
    %523 = vmatprep.subr.mxu0 0.0
    %524 = vmatpush1.msra.mxu0 0.0
    %525 = vmatprep.subr.mxu0 0.0
    %526 = vmatpush1.msra.mxu0 0.0
    %527 = vmatprep.subr.mxu0 0.0
    %528 = vmatpush1.msra.mxu0 0.0
    %529 = vmatprep.subr.mxu0 0.0
    %530 = vmatpush1.msra.mxu0 0.0
    %531 = vmatprep.subr.mxu0 0.0
    %532 = vmatpush1.msra.mxu0 0.0
    %533 = vmatprep.subr.mxu0 0.0
    %534 = vmatpush1.msra.mxu0 0.0
    %535 = vmatprep.subr.mxu0 0.0
    %536 = vmatpush1.msra.mxu0 0.0
    %537 = vmatprep.subr.mxu0 0.0
    %538 = vmatpush1.msra.mxu0 0.0
    %539 = vmatprep.subr.mxu0 0.0
    %540 = vmatpush1.msra.mxu0 0.0
    %541 = vmatprep.subr.mxu0 0.0
    %542 = vmatpush1.msra.mxu0 0.0
    %543 = vmatprep.subr.mxu0 0.0
    %544 = vmatpush1.msra.mxu0 0.0
    %545 = vmatprep.subr.mxu0 0.0
    %546 = vmatpush1.msra.mxu0 0.0
    %547 = vmatprep.subr.mxu0 0.0
    %548 = vmatpush1.msra.mxu0 0.0
    %549 = vmatprep.subr.mxu0 0.0
    %550 = vmatpush1.msra.mxu0 0.0
    %551 = vmatprep.subr.mxu0 0.0
    %552 = vmatpush1.msra.mxu0 0.0
    %553 = vmatprep.subr.mxu0 0.0
    %554 = vmatpush1.msra.mxu0 0.0
    %555 = vmatprep.subr.mxu0 0.0
    %556 = vmatpush1.msra.mxu0 0.0
    %557 = vmatprep.subr.mxu0 0.0
    %558 = vmatpush1.msra.mxu0 0.0
    %559 = vmatprep.subr.mxu0 0.0
    %560 = vmatpush1.msra.mxu0 0.0
    %561 = vmatprep.subr.mxu0 0.0
    %562 = vmatpush1.msra.mxu0 0.0
    %563 = vmatprep.subr.mxu0 0.0
    %564 = vmatpush1.msra.mxu0 0.0
    %565 = vmatprep.subr.mxu0 0.0
    %566 = vmatpush1.msra.mxu0 0.0
    %567 = vmatprep.subr.mxu0 0.0
    %568 = vmatpush1.msra.mxu0 0.0
    %569 = vmatprep.subr.mxu0 0.0
    %570 = vmatpush1.msra.mxu0 0.0
    %571 = vmatprep.subr.mxu0 0.0
    %572 = vmatpush1.msra.mxu0 0.0
    %573 = vmatprep.subr.mxu0 0.0
    %574 = vmatpush1.msra.mxu0 0.0
    %575 = vmatprep.subr.mxu0 0.0
    %576 = vmatpush1.msra.mxu0 0.0
    %577 = vmatprep.subr.mxu0 0.0
    %578 = vmatpush1.msra.mxu0 0.0
    %579 = vmatprep.subr.mxu0 0.0
    %580 = vmatpush1.msra.mxu0 0.0
    %581 = vmatprep.mubr.f32.mxu0 0.0
    %v582 = vand.u32 %v72, 4294901760
    %v583 = vsub.f32 %v72, %v582
    %584 = vmatmul.mubr.f32.gmra.mrb[0].mxu0 %v583
    %v585 = vpop.f32.mrb[0].mxu0
    %v586 = vadd.f32 %v422, %v585
    %v587 = vpop.f32.mrb[0].mxu0
    %588 = vmatprep.mubr.f32.mxu0 0.0
    %v589 = vand.u32 %v75, 4294901760
    %v590 = vsub.f32 %v75, %v589
    %591 = vmatmul.mubr.f32.gmra.mrb[0].mxu0 %v590
    %v592 = vpop.f32.mrb[0].mxu0
    %v593 = vadd.f32 %v428, %v592
    %v594 = vpop.f32.mrb[0].mxu0
    %595 = vmatprep.mubr.f32.mxu0 0.0
    %v596 = vand.u32 %v78, 4294901760
    %v597 = vsub.f32 %v78, %v596
    %598 = vmatmul.mubr.f32.gmra.mrb[0].mxu0 %v597
    %v599 = vpop.f32.mrb[0].mxu0
    %v600 = vadd.f32 %v434, %v599
    %v601 = vpop.f32.mrb[0].mxu0
    %602 = vmatprep.mubr.f32.mxu0 0.0
    %v603 = vand.u32 %v81, 4294901760
    %v604 = vsub.f32 %v81, %v603
    %605 = vmatmul.mubr.f32.gmra.mrb[0].mxu0 %v604
    %v606 = vpop.f32.mrb[0].mxu0
    %v607 = vadd.f32 %v440, %v606
    %v608 = vpop.f32.mrb[0].mxu0
    %609 = vmatprep.mubr.f32.mxu0 0.0
    %v610 = vand.u32 %v84, 4294901760
    %v611 = vsub.f32 %v84, %v610
    %612 = vmatmul.mubr.f32.gmra.mrb[0].mxu0 %v611
    %v613 = vpop.f32.mrb[0].mxu0
    %v614 = vadd.f32 %v446, %v613
    %v615 = vpop.f32.mrb[0].mxu0
    %616 = vmatprep.mubr.f32.mxu0 0.0
    %v617 = vand.u32 %v87, 4294901760
    %v618 = vsub.f32 %v87, %v617
    %619 = vmatmul.mubr.f32.gmra.mrb[0].mxu0 %v618
    %v620 = vpop.f32.mrb[0].mxu0
    %v621 = vadd.f32 %v452, %v620
    %v622 = vpop.f32.mrb[0].mxu0
    %623 = vmatprep.mubr.f32.mxu0 0.0
    %v624 = vand.u32 %v90, 4294901760
    %v625 = vsub.f32 %v90, %v624
    %626 = vmatmul.mubr.f32.gmra.mrb[0].mxu0 %v625
    %v627 = vpop.f32.mrb[0].mxu0
    %v628 = vadd.f32 %v458, %v627
    %v629 = vpop.f32.mrb[0].mxu0
    %630 = vmatprep.mubr.f32.mxu0 0.0
    %v631 = vand.u32 %v93, 4294901760
    %v632 = vsub.f32 %v93, %v631
    %633 = vmatmul.mubr.f32.gmra.mrb[0].mxu0 %v632
    %v634 = vpop.f32.mrb[0].mxu0
    %v635 = vadd.f32 %v464, %v634
    %v636 = vpop.f32.mrb[0].mxu0
    %637 = vmatprep.mubr.f32.mxu0 0.0
    %v638 = vand.u32 %v96, 4294901760
    %v639 = vsub.f32 %v96, %v638
    %640 = vmatmul.mubr.f32.gmra.mrb[0].mxu0 %v639
    %v641 = vpop.f32.mrb[0].mxu0
    %v642 = vadd.f32 %v470, %v641
    %v643 = vpop.f32.mrb[0].mxu0
    %644 = vmatprep.mubr.f32.mxu0 0.0
    %v645 = vand.u32 %v99, 4294901760
    %v646 = vsub.f32 %v99, %v645
    %647 = vmatmul.mubr.f32.gmra.mrb[0].mxu0 %v646
    %v648 = vpop.f32.mrb[0].mxu0
    %v649 = vadd.f32 %v476, %v648
    %v650 = vpop.f32.mrb[0].mxu0
    %651 = vmatprep.mubr.f32.mxu0 0.0
    %v652 = vand.u32 %v102, 4294901760
    %v653 = vsub.f32 %v102, %v652
    %654 = vmatmul.mubr.f32.gmra.mrb[0].mxu0 %v653
    %v655 = vpop.f32.mrb[0].mxu0
    %v656 = vadd.f32 %v482, %v655
    %v657 = vpop.f32.mrb[0].mxu0
    %658 = vmatprep.mubr.f32.mxu0 0.0
    %v659 = vand.u32 %v105, 4294901760
    %v660 = vsub.f32 %v105, %v659
    %661 = vmatmul.mubr.f32.gmra.mrb[0].mxu0 %v660
    %v662 = vpop.f32.mrb[0].mxu0
    %v663 = vadd.f32 %v488, %v662
    %v664 = vpop.f32.mrb[0].mxu0
    %665 = vmatprep.mubr.f32.mxu0 0.0
    %v666 = vand.u32 %v108, 4294901760
    %v667 = vsub.f32 %v108, %v666
    %668 = vmatmul.mubr.f32.gmra.mrb[0].mxu0 %v667
    %v669 = vpop.f32.mrb[0].mxu0
    %v670 = vadd.f32 %v494, %v669
    %v671 = vpop.f32.mrb[0].mxu0
    %672 = vmatprep.mubr.f32.mxu0 0.0
    %v673 = vand.u32 %v111, 4294901760
    %v674 = vsub.f32 %v111, %v673
    %675 = vmatmul.mubr.f32.gmra.mrb[0].mxu0 %v674
    %v676 = vpop.f32.mrb[0].mxu0
    %v677 = vadd.f32 %v500, %v676
    %v678 = vpop.f32.mrb[0].mxu0
    %679 = vmatprep.mubr.f32.mxu0 0.0
    %v680 = vand.u32 %v114, 4294901760
    %v681 = vsub.f32 %v114, %v680
    %682 = vmatmul.mubr.f32.gmra.mrb[0].mxu0 %v681
    %v683 = vpop.f32.mrb[0].mxu0
    %v684 = vadd.f32 %v506, %v683
    %v685 = vpop.f32.mrb[0].mxu0
    %686 = vmatprep.mubr.f32.mxu0 0.0
    %v687 = vand.u32 %v117, 4294901760
    %v688 = vsub.f32 %v117, %v687
    %689 = vmatmul.mubr.f32.gmra.mrb[0].mxu0 %v688
    %v690 = vpop.f32.mrb[0].mxu0
    %v691 = vadd.f32 %v512, %v690
    %v692 = vpop.f32.mrb[0].mxu0
    %693 = vdwg.mxu0
    %694 = vmatprep.subr.mxu0 0.0
    %v695 = vand.u32 %v121, 4294901760
    %696 = vmatpush1.msra.mxu0 %v695
    %697 = vmatprep.subr.mxu0 0.0
    %698 = vmatpush1.msra.mxu0 0.0
    %699 = vmatprep.subr.mxu0 0.0
    %700 = vmatpush1.msra.mxu0 0.0
    %701 = vmatprep.subr.mxu0 0.0
    %702 = vmatpush1.msra.mxu0 0.0
    %703 = vmatprep.subr.mxu0 0.0
    %704 = vmatpush1.msra.mxu0 0.0
    %705 = vmatprep.subr.mxu0 0.0
    %706 = vmatpush1.msra.mxu0 0.0
    %707 = vmatprep.subr.mxu0 0.0
    %708 = vmatpush1.msra.mxu0 0.0
    %709 = vmatprep.subr.mxu0 0.0
    %710 = vmatpush1.msra.mxu0 0.0
    %711 = vmatprep.subr.mxu0 0.0
    %712 = vmatpush1.msra.mxu0 0.0
    %713 = vmatprep.subr.mxu0 0.0
    %714 = vmatpush1.msra.mxu0 0.0
    %715 = vmatprep.subr.mxu0 0.0
    %716 = vmatpush1.msra.mxu0 0.0
    %717 = vmatprep.subr.mxu0 0.0
    %718 = vmatpush1.msra.mxu0 0.0
    %719 = vmatprep.subr.mxu0 0.0
    %720 = vmatpush1.msra.mxu0 0.0
    %721 = vmatprep.subr.mxu0 0.0
    %722 = vmatpush1.msra.mxu0 0.0
    %723 = vmatprep.subr.mxu0 0.0
    %724 = vmatpush1.msra.mxu0 0.0
    %725 = vmatprep.subr.mxu0 0.0
    %726 = vmatpush1.msra.mxu0 0.0
    %727 = vmatprep.subr.mxu0 0.0
    %728 = vmatpush1.msra.mxu0 0.0
    %729 = vmatprep.subr.mxu0 0.0
    %730 = vmatpush1.msra.mxu0 0.0
    %731 = vmatprep.subr.mxu0 0.0
    %732 = vmatpush1.msra.mxu0 0.0
    %733 = vmatprep.subr.mxu0 0.0
    %734 = vmatpush1.msra.mxu0 0.0
    %735 = vmatprep.subr.mxu0 0.0
    %736 = vmatpush1.msra.mxu0 0.0
    %737 = vmatprep.subr.mxu0 0.0
    %738 = vmatpush1.msra.mxu0 0.0
    %739 = vmatprep.subr.mxu0 0.0
    %740 = vmatpush1.msra.mxu0 0.0
    %741 = vmatprep.subr.mxu0 0.0
    %742 = vmatpush1.msra.mxu0 0.0
    %743 = vmatprep.subr.mxu0 0.0
    %744 = vmatpush1.msra.mxu0 0.0
    %745 = vmatprep.subr.mxu0 0.0
    %746 = vmatpush1.msra.mxu0 0.0
    %747 = vmatprep.subr.mxu0 0.0
    %748 = vmatpush1.msra.mxu0 0.0
    %749 = vmatprep.subr.mxu0 0.0
    %750 = vmatpush1.msra.mxu0 0.0
    %751 = vmatprep.subr.mxu0 0.0
    %752 = vmatpush1.msra.mxu0 0.0
    %753 = vmatprep.subr.mxu0 0.0
    %754 = vmatpush1.msra.mxu0 0.0
    %755 = vmatprep.subr.mxu0 0.0
    %756 = vmatpush1.msra.mxu0 0.0
    %757 = vmatprep.subr.mxu0 0.0
    %758 = vmatpush1.msra.mxu0 0.0
    %759 = vmatprep.mubr.f32.mxu0 0.0
    %v760 = vand.u32 %v72, 4294901760
    %v761 = vsub.f32 %v72, %v760
    %v762 = vand.u32 %v761, 4294901760
    %763 = vmatmul.mubr.f32.gmra.mrb[0].mxu0 %v762
    %v764 = vpop.f32.mrb[0].mxu0
    %v765 = vadd.f32 %v586, %v764
    %v766 = vpop.f32.mrb[0].mxu0
    %767 = vmatprep.mubr.f32.mxu0 0.0
    %v768 = vand.u32 %v75, 4294901760
    %v769 = vsub.f32 %v75, %v768
    %v770 = vand.u32 %v769, 4294901760
    %771 = vmatmul.mubr.f32.gmra.mrb[0].mxu0 %v770
    %v772 = vpop.f32.mrb[0].mxu0
    %v773 = vadd.f32 %v593, %v772
    %v774 = vpop.f32.mrb[0].mxu0
    %775 = vmatprep.mubr.f32.mxu0 0.0
    %v776 = vand.u32 %v78, 4294901760
    %v777 = vsub.f32 %v78, %v776
    %v778 = vand.u32 %v777, 4294901760
    %779 = vmatmul.mubr.f32.gmra.mrb[0].mxu0 %v778
    %v780 = vpop.f32.mrb[0].mxu0
    %v781 = vadd.f32 %v600, %v780
    %v782 = vpop.f32.mrb[0].mxu0
    %783 = vmatprep.mubr.f32.mxu0 0.0
    %v784 = vand.u32 %v81, 4294901760
    %v785 = vsub.f32 %v81, %v784
    %v786 = vand.u32 %v785, 4294901760
    %787 = vmatmul.mubr.f32.gmra.mrb[0].mxu0 %v786
    %v788 = vpop.f32.mrb[0].mxu0
    %v789 = vadd.f32 %v607, %v788
    %v790 = vpop.f32.mrb[0].mxu0
    %791 = vmatprep.mubr.f32.mxu0 0.0
    %v792 = vand.u32 %v84, 4294901760
    %v793 = vsub.f32 %v84, %v792
    %v794 = vand.u32 %v793, 4294901760
    %795 = vmatmul.mubr.f32.gmra.mrb[0].mxu0 %v794
    %v796 = vpop.f32.mrb[0].mxu0
    %v797 = vadd.f32 %v614, %v796
    %v798 = vpop.f32.mrb[0].mxu0
    %799 = vmatprep.mubr.f32.mxu0 0.0
    %v800 = vand.u32 %v87, 4294901760
    %v801 = vsub.f32 %v87, %v800
    %v802 = vand.u32 %v801, 4294901760
    %803 = vmatmul.mubr.f32.gmra.mrb[0].mxu0 %v802
    %v804 = vpop.f32.mrb[0].mxu0
    %v805 = vadd.f32 %v621, %v804
    %v806 = vpop.f32.mrb[0].mxu0
    %807 = vmatprep.mubr.f32.mxu0 0.0
    %v808 = vand.u32 %v90, 4294901760
    %v809 = vsub.f32 %v90, %v808
    %v810 = vand.u32 %v809, 4294901760
    %811 = vmatmul.mubr.f32.gmra.mrb[0].mxu0 %v810
    %v812 = vpop.f32.mrb[0].mxu0
    %v813 = vadd.f32 %v628, %v812
    %v814 = vpop.f32.mrb[0].mxu0
    %815 = vmatprep.mubr.f32.mxu0 0.0
    %v816 = vand.u32 %v93, 4294901760
    %v817 = vsub.f32 %v93, %v816
    %v818 = vand.u32 %v817, 4294901760
    %819 = vmatmul.mubr.f32.gmra.mrb[0].mxu0 %v818
    %v820 = vpop.f32.mrb[0].mxu0
    %v821 = vadd.f32 %v635, %v820
    %v822 = vpop.f32.mrb[0].mxu0
    %823 = vmatprep.mubr.f32.mxu0 0.0
    %v824 = vand.u32 %v96, 4294901760
    %v825 = vsub.f32 %v96, %v824
    %v826 = vand.u32 %v825, 4294901760
    %827 = vmatmul.mubr.f32.gmra.mrb[0].mxu0 %v826
    %v828 = vpop.f32.mrb[0].mxu0
    %v829 = vadd.f32 %v642, %v828
    %v830 = vpop.f32.mrb[0].mxu0
    %831 = vmatprep.mubr.f32.mxu0 0.0
    %v832 = vand.u32 %v99, 4294901760
    %v833 = vsub.f32 %v99, %v832
    %v834 = vand.u32 %v833, 4294901760
    %835 = vmatmul.mubr.f32.gmra.mrb[0].mxu0 %v834
    %v836 = vpop.f32.mrb[0].mxu0
    %v837 = vadd.f32 %v649, %v836
    %v838 = vpop.f32.mrb[0].mxu0
    %839 = vmatprep.mubr.f32.mxu0 0.0
    %v840 = vand.u32 %v102, 4294901760
    %v841 = vsub.f32 %v102, %v840
    %v842 = vand.u32 %v841, 4294901760
    %843 = vmatmul.mubr.f32.gmra.mrb[0].mxu0 %v842
    %v844 = vpop.f32.mrb[0].mxu0
    %v845 = vadd.f32 %v656, %v844
    %v846 = vpop.f32.mrb[0].mxu0
    %847 = vmatprep.mubr.f32.mxu0 0.0
    %v848 = vand.u32 %v105, 4294901760
    %v849 = vsub.f32 %v105, %v848
    %v850 = vand.u32 %v849, 4294901760
    %851 = vmatmul.mubr.f32.gmra.mrb[0].mxu0 %v850
    %v852 = vpop.f32.mrb[0].mxu0
    %v853 = vadd.f32 %v663, %v852
    %v854 = vpop.f32.mrb[0].mxu0
    %855 = vmatprep.mubr.f32.mxu0 0.0
    %v856 = vand.u32 %v108, 4294901760
    %v857 = vsub.f32 %v108, %v856
    %v858 = vand.u32 %v857, 4294901760
    %859 = vmatmul.mubr.f32.gmra.mrb[0].mxu0 %v858
    %v860 = vpop.f32.mrb[0].mxu0
    %v861 = vadd.f32 %v670, %v860
    %v862 = vpop.f32.mrb[0].mxu0
    %863 = vmatprep.mubr.f32.mxu0 0.0
    %v864 = vand.u32 %v111, 4294901760
    %v865 = vsub.f32 %v111, %v864
    %v866 = vand.u32 %v865, 4294901760
    %867 = vmatmul.mubr.f32.gmra.mrb[0].mxu0 %v866
    %v868 = vpop.f32.mrb[0].mxu0
    %v869 = vadd.f32 %v677, %v868
    %v870 = vpop.f32.mrb[0].mxu0
    %871 = vmatprep.mubr.f32.mxu0 0.0
    %v872 = vand.u32 %v114, 4294901760
    %v873 = vsub.f32 %v114, %v872
    %v874 = vand.u32 %v873, 4294901760
    %875 = vmatmul.mubr.f32.gmra.mrb[0].mxu0 %v874
    %v876 = vpop.f32.mrb[0].mxu0
    %v877 = vadd.f32 %v684, %v876
    %v878 = vpop.f32.mrb[0].mxu0
    %879 = vmatprep.mubr.f32.mxu0 0.0
    %v880 = vand.u32 %v117, 4294901760
    %v881 = vsub.f32 %v117, %v880
    %v882 = vand.u32 %v881, 4294901760
    %883 = vmatmul.mubr.f32.gmra.mrb[0].mxu0 %v882
    %v884 = vpop.f32.mrb[0].mxu0
    %v885 = vadd.f32 %v691, %v884
    %v886 = vpop.f32.mrb[0].mxu0
    %887 = vdwg.mxu0
    %888 = vmatprep.subr.mxu0 0.0
    %v889 = vand.u32 %v121, 4294901760
    %v890 = vsub.f32 %v121, %v889
    %v891 = vand.u32 %v890, 4294901760
    %892 = vmatpush1.msra.mxu0 %v891
    %893 = vmatprep.subr.mxu0 0.0
    %894 = vmatpush1.msra.mxu0 0.0
    %895 = vmatprep.subr.mxu0 0.0
    %896 = vmatpush1.msra.mxu0 0.0
    %897 = vmatprep.subr.mxu0 0.0
    %898 = vmatpush1.msra.mxu0 0.0
    %899 = vmatprep.subr.mxu0 0.0
    %900 = vmatpush1.msra.mxu0 0.0
    %901 = vmatprep.subr.mxu0 0.0
    %902 = vmatpush1.msra.mxu0 0.0
    %903 = vmatprep.subr.mxu0 0.0
    %904 = vmatpush1.msra.mxu0 0.0
    %905 = vmatprep.subr.mxu0 0.0
    %906 = vmatpush1.msra.mxu0 0.0
    %907 = vmatprep.subr.mxu0 0.0
    %908 = vmatpush1.msra.mxu0 0.0
    %909 = vmatprep.subr.mxu0 0.0
    %910 = vmatpush1.msra.mxu0 0.0
    %911 = vmatprep.subr.mxu0 0.0
    %912 = vmatpush1.msra.mxu0 0.0
    %913 = vmatprep.subr.mxu0 0.0
    %914 = vmatpush1.msra.mxu0 0.0
    %915 = vmatprep.subr.mxu0 0.0
    %916 = vmatpush1.msra.mxu0 0.0
    %917 = vmatprep.subr.mxu0 0.0
    %918 = vmatpush1.msra.mxu0 0.0
    %919 = vmatprep.subr.mxu0 0.0
    %920 = vmatpush1.msra.mxu0 0.0
    %921 = vmatprep.subr.mxu0 0.0
    %922 = vmatpush1.msra.mxu0 0.0
    %923 = vmatprep.subr.mxu0 0.0
    %924 = vmatpush1.msra.mxu0 0.0
    %925 = vmatprep.subr.mxu0 0.0
    %926 = vmatpush1.msra.mxu0 0.0
    %927 = vmatprep.subr.mxu0 0.0
    %928 = vmatpush1.msra.mxu0 0.0
    %929 = vmatprep.subr.mxu0 0.0
    %930 = vmatpush1.msra.mxu0 0.0
    %931 = vmatprep.subr.mxu0 0.0
    %932 = vmatpush1.msra.mxu0 0.0
    %933 = vmatprep.subr.mxu0 0.0
    %934 = vmatpush1.msra.mxu0 0.0
    %935 = vmatprep.subr.mxu0 0.0
    %936 = vmatpush1.msra.mxu0 0.0
    %937 = vmatprep.subr.mxu0 0.0
    %938 = vmatpush1.msra.mxu0 0.0
    %939 = vmatprep.subr.mxu0 0.0
    %940 = vmatpush1.msra.mxu0 0.0
    %941 = vmatprep.subr.mxu0 0.0
    %942 = vmatpush1.msra.mxu0 0.0
    %943 = vmatprep.subr.mxu0 0.0
    %944 = vmatpush1.msra.mxu0 0.0
    %945 = vmatprep.subr.mxu0 0.0
    %946 = vmatpush1.msra.mxu0 0.0
    %947 = vmatprep.subr.mxu0 0.0
    %948 = vmatpush1.msra.mxu0 0.0
    %949 = vmatprep.subr.mxu0 0.0
    %950 = vmatpush1.msra.mxu0 0.0
    %951 = vmatprep.subr.mxu0 0.0
    %952 = vmatpush1.msra.mxu0 0.0
    %953 = vmatprep.subr.mxu0 0.0
    %954 = vmatpush1.msra.mxu0 0.0
    %955 = vmatprep.mubr.f32.mxu0 0.0
    %v956 = vand.u32 %v72, 4294901760
    %957 = vmatmul.mubr.f32.gmra.mrb[0].mxu0 %v956
    %v958 = vpop.f32.mrb[0].mxu0
    %v959 = vadd.f32 %v765, %v958
    %v960 = vpop.f32.mrb[0].mxu0
    %961 = vmatprep.mubr.f32.mxu0 0.0
    %v962 = vand.u32 %v75, 4294901760
    %963 = vmatmul.mubr.f32.gmra.mrb[0].mxu0 %v962
    %v964 = vpop.f32.mrb[0].mxu0
    %v965 = vadd.f32 %v773, %v964
    %v966 = vpop.f32.mrb[0].mxu0
    %967 = vmatprep.mubr.f32.mxu0 0.0
    %v968 = vand.u32 %v78, 4294901760
    %969 = vmatmul.mubr.f32.gmra.mrb[0].mxu0 %v968
    %v970 = vpop.f32.mrb[0].mxu0
    %v971 = vadd.f32 %v781, %v970
    %v972 = vpop.f32.mrb[0].mxu0
    %973 = vmatprep.mubr.f32.mxu0 0.0
    %v974 = vand.u32 %v81, 4294901760
    %975 = vmatmul.mubr.f32.gmra.mrb[0].mxu0 %v974
    %v976 = vpop.f32.mrb[0].mxu0
    %v977 = vadd.f32 %v789, %v976
    %v978 = vpop.f32.mrb[0].mxu0
    %979 = vmatprep.mubr.f32.mxu0 0.0
    %v980 = vand.u32 %v84, 4294901760
    %981 = vmatmul.mubr.f32.gmra.mrb[0].mxu0 %v980
    %v982 = vpop.f32.mrb[0].mxu0
    %v983 = vadd.f32 %v797, %v982
    %v984 = vpop.f32.mrb[0].mxu0
    %985 = vmatprep.mubr.f32.mxu0 0.0
    %v986 = vand.u32 %v87, 4294901760
    %987 = vmatmul.mubr.f32.gmra.mrb[0].mxu0 %v986
    %v988 = vpop.f32.mrb[0].mxu0
    %v989 = vadd.f32 %v805, %v988
    %v990 = vpop.f32.mrb[0].mxu0
    %991 = vmatprep.mubr.f32.mxu0 0.0
    %v992 = vand.u32 %v90, 4294901760
    %993 = vmatmul.mubr.f32.gmra.mrb[0].mxu0 %v992
    %v994 = vpop.f32.mrb[0].mxu0
    %v995 = vadd.f32 %v813, %v994
    %v996 = vpop.f32.mrb[0].mxu0
    %997 = vmatprep.mubr.f32.mxu0 0.0
    %v998 = vand.u32 %v93, 4294901760
    %999 = vmatmul.mubr.f32.gmra.mrb[0].mxu0 %v998
    %v1000 = vpop.f32.mrb[0].mxu0
    %v1001 = vadd.f32 %v821, %v1000
    %v1002 = vpop.f32.mrb[0].mxu0
    %1003 = vmatprep.mubr.f32.mxu0 0.0
    %v1004 = vand.u32 %v96, 4294901760
    %1005 = vmatmul.mubr.f32.gmra.mrb[0].mxu0 %v1004
    %v1006 = vpop.f32.mrb[0].mxu0
    %v1007 = vadd.f32 %v829, %v1006
    %v1008 = vpop.f32.mrb[0].mxu0
    %1009 = vmatprep.mubr.f32.mxu0 0.0
    %v1010 = vand.u32 %v99, 4294901760
    %1011 = vmatmul.mubr.f32.gmra.mrb[0].mxu0 %v1010
    %v1012 = vpop.f32.mrb[0].mxu0
    %v1013 = vadd.f32 %v837, %v1012
    %v1014 = vpop.f32.mrb[0].mxu0
    %1015 = vmatprep.mubr.f32.mxu0 0.0
    %v1016 = vand.u32 %v102, 4294901760
    %1017 = vmatmul.mubr.f32.gmra.mrb[0].mxu0 %v1016
    %v1018 = vpop.f32.mrb[0].mxu0
    %v1019 = vadd.f32 %v845, %v1018
    %v1020 = vpop.f32.mrb[0].mxu0
    %1021 = vmatprep.mubr.f32.mxu0 0.0
    %v1022 = vand.u32 %v105, 4294901760
    %1023 = vmatmul.mubr.f32.gmra.mrb[0].mxu0 %v1022
    %v1024 = vpop.f32.mrb[0].mxu0
    %v1025 = vadd.f32 %v853, %v1024
    %v1026 = vpop.f32.mrb[0].mxu0
    %1027 = vmatprep.mubr.f32.mxu0 0.0
    %v1028 = vand.u32 %v108, 4294901760
    %1029 = vmatmul.mubr.f32.gmra.mrb[0].mxu0 %v1028
    %v1030 = vpop.f32.mrb[0].mxu0
    %v1031 = vadd.f32 %v861, %v1030
    %v1032 = vpop.f32.mrb[0].mxu0
    %1033 = vmatprep.mubr.f32.mxu0 0.0
    %v1034 = vand.u32 %v111, 4294901760
    %1035 = vmatmul.mubr.f32.gmra.mrb[0].mxu0 %v1034
    %v1036 = vpop.f32.mrb[0].mxu0
    %v1037 = vadd.f32 %v869, %v1036
    %v1038 = vpop.f32.mrb[0].mxu0
    %1039 = vmatprep.mubr.f32.mxu0 0.0
    %v1040 = vand.u32 %v114, 4294901760
    %1041 = vmatmul.mubr.f32.gmra.mrb[0].mxu0 %v1040
    %v1042 = vpop.f32.mrb[0].mxu0
    %v1043 = vadd.f32 %v877, %v1042
    %v1044 = vpop.f32.mrb[0].mxu0
    %1045 = vmatprep.mubr.f32.mxu0 0.0
    %v1046 = vand.u32 %v117, 4294901760
    %1047 = vmatmul.mubr.f32.gmra.mrb[0].mxu0 %v1046
    %v1048 = vpop.f32.mrb[0].mxu0
    %v1049 = vadd.f32 %v885, %v1048
    %v1050 = vpop.f32.mrb[0].mxu0
    %1051 = vdwg.mxu0
    %1052 = vmatprep.subr.mxu0 0.0
    %v1053 = vand.u32 %v121, 4294901760
    %1054 = vmatpush1.msra.mxu0 %v1053
    %1055 = vmatprep.subr.mxu0 0.0
    %1056 = vmatpush1.msra.mxu0 0.0
    %1057 = vmatprep.subr.mxu0 0.0
    %1058 = vmatpush1.msra.mxu0 0.0
    %1059 = vmatprep.subr.mxu0 0.0
    %1060 = vmatpush1.msra.mxu0 0.0
    %1061 = vmatprep.subr.mxu0 0.0
    %1062 = vmatpush1.msra.mxu0 0.0
    %1063 = vmatprep.subr.mxu0 0.0
    %1064 = vmatpush1.msra.mxu0 0.0
    %1065 = vmatprep.subr.mxu0 0.0
    %1066 = vmatpush1.msra.mxu0 0.0
    %1067 = vmatprep.subr.mxu0 0.0
    %1068 = vmatpush1.msra.mxu0 0.0
    %1069 = vmatprep.subr.mxu0 0.0
    %1070 = vmatpush1.msra.mxu0 0.0
    %1071 = vmatprep.subr.mxu0 0.0
    %1072 = vmatpush1.msra.mxu0 0.0
    %1073 = vmatprep.subr.mxu0 0.0
    %1074 = vmatpush1.msra.mxu0 0.0
    %1075 = vmatprep.subr.mxu0 0.0
    %1076 = vmatpush1.msra.mxu0 0.0
    %1077 = vmatprep.subr.mxu0 0.0
    %1078 = vmatpush1.msra.mxu0 0.0
    %1079 = vmatprep.subr.mxu0 0.0
    %1080 = vmatpush1.msra.mxu0 0.0
    %1081 = vmatprep.subr.mxu0 0.0
    %1082 = vmatpush1.msra.mxu0 0.0
    %1083 = vmatprep.subr.mxu0 0.0
    %1084 = vmatpush1.msra.mxu0 0.0
    %1085 = vmatprep.subr.mxu0 0.0
    %1086 = vmatpush1.msra.mxu0 0.0
    %1087 = vmatprep.subr.mxu0 0.0
    %1088 = vmatpush1.msra.mxu0 0.0
    %1089 = vmatprep.subr.mxu0 0.0
    %1090 = vmatpush1.msra.mxu0 0.0
    %1091 = vmatprep.subr.mxu0 0.0
    %1092 = vmatpush1.msra.mxu0 0.0
    %1093 = vmatprep.subr.mxu0 0.0
    %1094 = vmatpush1.msra.mxu0 0.0
    %1095 = vmatprep.subr.mxu0 0.0
    %1096 = vmatpush1.msra.mxu0 0.0
    %1097 = vmatprep.subr.mxu0 0.0
    %1098 = vmatpush1.msra.mxu0 0.0
    %1099 = vmatprep.subr.mxu0 0.0
    %1100 = vmatpush1.msra.mxu0 0.0
    %1101 = vmatprep.subr.mxu0 0.0
    %1102 = vmatpush1.msra.mxu0 0.0
    %1103 = vmatprep.subr.mxu0 0.0
    %1104 = vmatpush1.msra.mxu0 0.0
    %1105 = vmatprep.subr.mxu0 0.0
    %1106 = vmatpush1.msra.mxu0 0.0
    %1107 = vmatprep.subr.mxu0 0.0
    %1108 = vmatpush1.msra.mxu0 0.0
    %1109 = vmatprep.subr.mxu0 0.0
    %1110 = vmatpush1.msra.mxu0 0.0
    %1111 = vmatprep.subr.mxu0 0.0
    %1112 = vmatpush1.msra.mxu0 0.0
    %1113 = vmatprep.subr.mxu0 0.0
    %1114 = vmatpush1.msra.mxu0 0.0
    %1115 = vmatprep.subr.mxu0 0.0
    %1116 = vmatpush1.msra.mxu0 0.0
    %1117 = vmatprep.mubr.f32.mxu0 0.0
    %v1118 = vand.u32 %v72, 4294901760
    %1119 = vmatmul.mubr.f32.gmra.mrb[0].mxu0 %v1118
    %v1120 = vpop.f32.mrb[0].mxu0
    %v1121 = vadd.f32 %v959, %v1120
    %v1122 = vpop.f32.mrb[0].mxu0
    %1123 = vmatprep.mubr.f32.mxu0 0.0
    %v1124 = vand.u32 %v75, 4294901760
    %1125 = vmatmul.mubr.f32.gmra.mrb[0].mxu0 %v1124
    %v1126 = vpop.f32.mrb[0].mxu0
    %v1127 = vadd.f32 %v965, %v1126
    %v1128 = vpop.f32.mrb[0].mxu0
    %1129 = vmatprep.mubr.f32.mxu0 0.0
    %v1130 = vand.u32 %v78, 4294901760
    %1131 = vmatmul.mubr.f32.gmra.mrb[0].mxu0 %v1130
    %v1132 = vpop.f32.mrb[0].mxu0
    %v1133 = vadd.f32 %v971, %v1132
    %v1134 = vpop.f32.mrb[0].mxu0
    %1135 = vmatprep.mubr.f32.mxu0 0.0
    %v1136 = vand.u32 %v81, 4294901760
    %1137 = vmatmul.mubr.f32.gmra.mrb[0].mxu0 %v1136
    %v1138 = vpop.f32.mrb[0].mxu0
    %v1139 = vadd.f32 %v977, %v1138
    %v1140 = vpop.f32.mrb[0].mxu0
    %1141 = vmatprep.mubr.f32.mxu0 0.0
    %v1142 = vand.u32 %v84, 4294901760
    %1143 = vmatmul.mubr.f32.gmra.mrb[0].mxu0 %v1142
    %v1144 = vpop.f32.mrb[0].mxu0
    %v1145 = vadd.f32 %v983, %v1144
    %v1146 = vpop.f32.mrb[0].mxu0
    %1147 = vmatprep.mubr.f32.mxu0 0.0
    %v1148 = vand.u32 %v87, 4294901760
    %1149 = vmatmul.mubr.f32.gmra.mrb[0].mxu0 %v1148
    %v1150 = vpop.f32.mrb[0].mxu0
    %v1151 = vadd.f32 %v989, %v1150
    %v1152 = vpop.f32.mrb[0].mxu0
    %1153 = vmatprep.mubr.f32.mxu0 0.0
    %v1154 = vand.u32 %v90, 4294901760
    %1155 = vmatmul.mubr.f32.gmra.mrb[0].mxu0 %v1154
    %v1156 = vpop.f32.mrb[0].mxu0
    %v1157 = vadd.f32 %v995, %v1156
    %v1158 = vpop.f32.mrb[0].mxu0
    %1159 = vmatprep.mubr.f32.mxu0 0.0
    %v1160 = vand.u32 %v93, 4294901760
    %1161 = vmatmul.mubr.f32.gmra.mrb[0].mxu0 %v1160
    %v1162 = vpop.f32.mrb[0].mxu0
    %v1163 = vadd.f32 %v1001, %v1162
    %v1164 = vpop.f32.mrb[0].mxu0
    %1165 = vmatprep.mubr.f32.mxu0 0.0
    %v1166 = vand.u32 %v96, 4294901760
    %1167 = vmatmul.mubr.f32.gmra.mrb[0].mxu0 %v1166
    %v1168 = vpop.f32.mrb[0].mxu0
    %v1169 = vadd.f32 %v1007, %v1168
    %v1170 = vpop.f32.mrb[0].mxu0
    %1171 = vmatprep.mubr.f32.mxu0 0.0
    %v1172 = vand.u32 %v99, 4294901760
    %1173 = vmatmul.mubr.f32.gmra.mrb[0].mxu0 %v1172
    %v1174 = vpop.f32.mrb[0].mxu0
    %v1175 = vadd.f32 %v1013, %v1174
    %v1176 = vpop.f32.mrb[0].mxu0
    %1177 = vmatprep.mubr.f32.mxu0 0.0
    %v1178 = vand.u32 %v102, 4294901760
    %1179 = vmatmul.mubr.f32.gmra.mrb[0].mxu0 %v1178
    %v1180 = vpop.f32.mrb[0].mxu0
    %v1181 = vadd.f32 %v1019, %v1180
    %v1182 = vpop.f32.mrb[0].mxu0
    %1183 = vmatprep.mubr.f32.mxu0 0.0
    %v1184 = vand.u32 %v105, 4294901760
    %1185 = vmatmul.mubr.f32.gmra.mrb[0].mxu0 %v1184
    %v1186 = vpop.f32.mrb[0].mxu0
    %v1187 = vadd.f32 %v1025, %v1186
    %v1188 = vpop.f32.mrb[0].mxu0
    %1189 = vmatprep.mubr.f32.mxu0 0.0
    %v1190 = vand.u32 %v108, 4294901760
    %1191 = vmatmul.mubr.f32.gmra.mrb[0].mxu0 %v1190
    %v1192 = vpop.f32.mrb[0].mxu0
    %v1193 = vadd.f32 %v1031, %v1192
    %v1194 = vpop.f32.mrb[0].mxu0
    %1195 = vmatprep.mubr.f32.mxu0 0.0
    %v1196 = vand.u32 %v111, 4294901760
    %1197 = vmatmul.mubr.f32.gmra.mrb[0].mxu0 %v1196
    %v1198 = vpop.f32.mrb[0].mxu0
    %v1199 = vadd.f32 %v1037, %v1198
    %v1200 = vpop.f32.mrb[0].mxu0
    %1201 = vmatprep.mubr.f32.mxu0 0.0
    %v1202 = vand.u32 %v114, 4294901760
    %1203 = vmatmul.mubr.f32.gmra.mrb[0].mxu0 %v1202
    %v1204 = vpop.f32.mrb[0].mxu0
    %v1205 = vadd.f32 %v1043, %v1204
    %v1206 = vpop.f32.mrb[0].mxu0
    %1207 = vmatprep.mubr.f32.mxu0 0.0
    %v1208 = vand.u32 %v117, 4294901760
    %1209 = vmatmul.mubr.f32.gmra.mrb[0].mxu0 %v1208
    %v1210 = vpop.f32.mrb[0].mxu0
    %v1211 = vadd.f32 %v1049, %v1210
    %v1212 = vpop.f32.mrb[0].mxu0
    %1213 = vdwg.mxu0
    %vm1214 = vcmask 64512
    %v1216 = vsel %vm1214, %v38, 0
    %v1219 = vsel %vm1214, %v39, 0
    %v1222 = vsel %vm1214, %v40, 0
    %v1225 = vsel %vm1214, %v41, 0
    %v1228 = vsel %vm1214, %v42, 0
    %v1231 = vsel %vm1214, %v43, 0
    %v1234 = vsel %vm1214, %v44, 0
    %v1237 = vsel %vm1214, %v45, 0
    %v1240 = vsel %vm1214, %v46, 0
    %v1243 = vsel %vm1214, %v47, 0
    %v1246 = vsel %vm1214, %v48, 0
    %v1249 = vsel %vm1214, %v49, 0
    %v1252 = vsel %vm1214, %v50, 0
    %v1255 = vsel %vm1214, %v51, 0
    %v1258 = vsel %vm1214, %v52, 0
    %v1261 = vsel %vm1214, %v53, 0
    %1263 = vmatprep.subr.mxu0 0.0
    %v1264 = vand.u32 %v35, 4294901760
    %1265 = vmatpush1.msra.mxu0 %v1264
    %1266 = vmatprep.subr.mxu0 0.0
    %1267 = vmatpush1.msra.mxu0 0.0
    %1268 = vmatprep.subr.mxu0 0.0
    %1269 = vmatpush1.msra.mxu0 0.0
    %1270 = vmatprep.subr.mxu0 0.0
    %1271 = vmatpush1.msra.mxu0 0.0
    %1272 = vmatprep.subr.mxu0 0.0
    %1273 = vmatpush1.msra.mxu0 0.0
    %1274 = vmatprep.subr.mxu0 0.0
    %1275 = vmatpush1.msra.mxu0 0.0
    %1276 = vmatprep.subr.mxu0 0.0
    %1277 = vmatpush1.msra.mxu0 0.0
    %1278 = vmatprep.subr.mxu0 0.0
    %1279 = vmatpush1.msra.mxu0 0.0
    %1280 = vmatprep.subr.mxu0 0.0
    %1281 = vmatpush1.msra.mxu0 0.0
    %1282 = vmatprep.subr.mxu0 0.0
    %1283 = vmatpush1.msra.mxu0 0.0
    %1284 = vmatprep.subr.mxu0 0.0
    %1285 = vmatpush1.msra.mxu0 0.0
    %1286 = vmatprep.subr.mxu0 0.0
    %1287 = vmatpush1.msra.mxu0 0.0
    %1288 = vmatprep.subr.mxu0 0.0
    %1289 = vmatpush1.msra.mxu0 0.0
    %1290 = vmatprep.subr.mxu0 0.0
    %1291 = vmatpush1.msra.mxu0 0.0
    %1292 = vmatprep.subr.mxu0 0.0
    %1293 = vmatpush1.msra.mxu0 0.0
    %1294 = vmatprep.subr.mxu0 0.0
    %1295 = vmatpush1.msra.mxu0 0.0
    %1296 = vmatprep.subr.mxu0 0.0
    %1297 = vmatpush1.msra.mxu0 0.0
    %1298 = vmatprep.subr.mxu0 0.0
    %1299 = vmatpush1.msra.mxu0 0.0
    %1300 = vmatprep.subr.mxu0 0.0
    %1301 = vmatpush1.msra.mxu0 0.0
    %1302 = vmatprep.subr.mxu0 0.0
    %1303 = vmatpush1.msra.mxu0 0.0
    %1304 = vmatprep.subr.mxu0 0.0
    %1305 = vmatpush1.msra.mxu0 0.0
    %1306 = vmatprep.subr.mxu0 0.0
    %1307 = vmatpush1.msra.mxu0 0.0
    %1308 = vmatprep.subr.mxu0 0.0
    %1309 = vmatpush1.msra.mxu0 0.0
    %1310 = vmatprep.subr.mxu0 0.0
    %1311 = vmatpush1.msra.mxu0 0.0
    %1312 = vmatprep.subr.mxu0 0.0
    %1313 = vmatpush1.msra.mxu0 0.0
    %1314 = vmatprep.subr.mxu0 0.0
    %1315 = vmatpush1.msra.mxu0 0.0
    %1316 = vmatprep.subr.mxu0 0.0
    %1317 = vmatpush1.msra.mxu0 0.0
    %1318 = vmatprep.subr.mxu0 0.0
    %1319 = vmatpush1.msra.mxu0 0.0
    %1320 = vmatprep.subr.mxu0 0.0
    %1321 = vmatpush1.msra.mxu0 0.0
    %1322 = vmatprep.subr.mxu0 0.0
    %1323 = vmatpush1.msra.mxu0 0.0
    %1324 = vmatprep.subr.mxu0 0.0
    %1325 = vmatpush1.msra.mxu0 0.0
    %1326 = vmatprep.subr.mxu0 0.0
    %1327 = vmatpush1.msra.mxu0 0.0
    %1328 = vmatprep.mubr.f32.mxu0 0.0
    %v1329 = vand.u32 %v1216, 4294901760
    %v1330 = vsub.f32 %v1216, %v1329
    %v1331 = vand.u32 %v1330, 4294901760
    %v1332 = vsub.f32 %v1330, %v1331
    %v1333 = vand.u32 %v1332, 4294901760
    %1334 = vmatmul.mubr.f32.gmra.mrb[0].mxu0 %v1333
    %v1335 = vpop.f32.mrb[0].mxu0
    %v1336 = vadd.f32 %v1121, %v1335
    %v1337 = vpop.f32.mrb[0].mxu0
    %1338 = vmatprep.mubr.f32.mxu0 0.0
    %v1339 = vand.u32 %v1219, 4294901760
    %v1340 = vsub.f32 %v1219, %v1339
    %v1341 = vand.u32 %v1340, 4294901760
    %v1342 = vsub.f32 %v1340, %v1341
    %v1343 = vand.u32 %v1342, 4294901760
    %1344 = vmatmul.mubr.f32.gmra.mrb[0].mxu0 %v1343
    %v1345 = vpop.f32.mrb[0].mxu0
    %v1346 = vadd.f32 %v1127, %v1345
    %v1347 = vpop.f32.mrb[0].mxu0
    %1348 = vmatprep.mubr.f32.mxu0 0.0
    %v1349 = vand.u32 %v1222, 4294901760
    %v1350 = vsub.f32 %v1222, %v1349
    %v1351 = vand.u32 %v1350, 4294901760
    %v1352 = vsub.f32 %v1350, %v1351
    %v1353 = vand.u32 %v1352, 4294901760
    %1354 = vmatmul.mubr.f32.gmra.mrb[0].mxu0 %v1353
    %v1355 = vpop.f32.mrb[0].mxu0
    %v1356 = vadd.f32 %v1133, %v1355
    %v1357 = vpop.f32.mrb[0].mxu0
    %1358 = vmatprep.mubr.f32.mxu0 0.0
    %v1359 = vand.u32 %v1225, 4294901760
    %v1360 = vsub.f32 %v1225, %v1359
    %v1361 = vand.u32 %v1360, 4294901760
    %v1362 = vsub.f32 %v1360, %v1361
    %v1363 = vand.u32 %v1362, 4294901760
    %1364 = vmatmul.mubr.f32.gmra.mrb[0].mxu0 %v1363
    %v1365 = vpop.f32.mrb[0].mxu0
    %v1366 = vadd.f32 %v1139, %v1365
    %v1367 = vpop.f32.mrb[0].mxu0
    %1368 = vmatprep.mubr.f32.mxu0 0.0
    %v1369 = vand.u32 %v1228, 4294901760
    %v1370 = vsub.f32 %v1228, %v1369
    %v1371 = vand.u32 %v1370, 4294901760
    %v1372 = vsub.f32 %v1370, %v1371
    %v1373 = vand.u32 %v1372, 4294901760
    %1374 = vmatmul.mubr.f32.gmra.mrb[0].mxu0 %v1373
    %v1375 = vpop.f32.mrb[0].mxu0
    %v1376 = vadd.f32 %v1145, %v1375
    %v1377 = vpop.f32.mrb[0].mxu0
    %1378 = vmatprep.mubr.f32.mxu0 0.0
    %v1379 = vand.u32 %v1231, 4294901760
    %v1380 = vsub.f32 %v1231, %v1379
    %v1381 = vand.u32 %v1380, 4294901760
    %v1382 = vsub.f32 %v1380, %v1381
    %v1383 = vand.u32 %v1382, 4294901760
    %1384 = vmatmul.mubr.f32.gmra.mrb[0].mxu0 %v1383
    %v1385 = vpop.f32.mrb[0].mxu0
    %v1386 = vadd.f32 %v1151, %v1385
    %v1387 = vpop.f32.mrb[0].mxu0
    %1388 = vmatprep.mubr.f32.mxu0 0.0
    %v1389 = vand.u32 %v1234, 4294901760
    %v1390 = vsub.f32 %v1234, %v1389
    %v1391 = vand.u32 %v1390, 4294901760
    %v1392 = vsub.f32 %v1390, %v1391
    %v1393 = vand.u32 %v1392, 4294901760
    %1394 = vmatmul.mubr.f32.gmra.mrb[0].mxu0 %v1393
    %v1395 = vpop.f32.mrb[0].mxu0
    %v1396 = vadd.f32 %v1157, %v1395
    %v1397 = vpop.f32.mrb[0].mxu0
    %1398 = vmatprep.mubr.f32.mxu0 0.0
    %v1399 = vand.u32 %v1237, 4294901760
    %v1400 = vsub.f32 %v1237, %v1399
    %v1401 = vand.u32 %v1400, 4294901760
    %v1402 = vsub.f32 %v1400, %v1401
    %v1403 = vand.u32 %v1402, 4294901760
    %1404 = vmatmul.mubr.f32.gmra.mrb[0].mxu0 %v1403
    %v1405 = vpop.f32.mrb[0].mxu0
    %v1406 = vadd.f32 %v1163, %v1405
    %v1407 = vpop.f32.mrb[0].mxu0
    %1408 = vmatprep.mubr.f32.mxu0 0.0
    %v1409 = vand.u32 %v1240, 4294901760
    %v1410 = vsub.f32 %v1240, %v1409
    %v1411 = vand.u32 %v1410, 4294901760
    %v1412 = vsub.f32 %v1410, %v1411
    %v1413 = vand.u32 %v1412, 4294901760
    %1414 = vmatmul.mubr.f32.gmra.mrb[0].mxu0 %v1413
    %v1415 = vpop.f32.mrb[0].mxu0
    %v1416 = vadd.f32 %v1169, %v1415
    %v1417 = vpop.f32.mrb[0].mxu0
    %1418 = vmatprep.mubr.f32.mxu0 0.0
    %v1419 = vand.u32 %v1243, 4294901760
    %v1420 = vsub.f32 %v1243, %v1419
    %v1421 = vand.u32 %v1420, 4294901760
    %v1422 = vsub.f32 %v1420, %v1421
    %v1423 = vand.u32 %v1422, 4294901760
    %1424 = vmatmul.mubr.f32.gmra.mrb[0].mxu0 %v1423
    %v1425 = vpop.f32.mrb[0].mxu0
    %v1426 = vadd.f32 %v1175, %v1425
    %v1427 = vpop.f32.mrb[0].mxu0
    %1428 = vmatprep.mubr.f32.mxu0 0.0
    %v1429 = vand.u32 %v1246, 4294901760
    %v1430 = vsub.f32 %v1246, %v1429
    %v1431 = vand.u32 %v1430, 4294901760
    %v1432 = vsub.f32 %v1430, %v1431
    %v1433 = vand.u32 %v1432, 4294901760
    %1434 = vmatmul.mubr.f32.gmra.mrb[0].mxu0 %v1433
    %v1435 = vpop.f32.mrb[0].mxu0
    %v1436 = vadd.f32 %v1181, %v1435
    %v1437 = vpop.f32.mrb[0].mxu0
    %1438 = vmatprep.mubr.f32.mxu0 0.0
    %v1439 = vand.u32 %v1249, 4294901760
    %v1440 = vsub.f32 %v1249, %v1439
    %v1441 = vand.u32 %v1440, 4294901760
    %v1442 = vsub.f32 %v1440, %v1441
    %v1443 = vand.u32 %v1442, 4294901760
    %1444 = vmatmul.mubr.f32.gmra.mrb[0].mxu0 %v1443
    %v1445 = vpop.f32.mrb[0].mxu0
    %v1446 = vadd.f32 %v1187, %v1445
    %v1447 = vpop.f32.mrb[0].mxu0
    %1448 = vmatprep.mubr.f32.mxu0 0.0
    %v1449 = vand.u32 %v1252, 4294901760
    %v1450 = vsub.f32 %v1252, %v1449
    %v1451 = vand.u32 %v1450, 4294901760
    %v1452 = vsub.f32 %v1450, %v1451
    %v1453 = vand.u32 %v1452, 4294901760
    %1454 = vmatmul.mubr.f32.gmra.mrb[0].mxu0 %v1453
    %v1455 = vpop.f32.mrb[0].mxu0
    %v1456 = vadd.f32 %v1193, %v1455
    %v1457 = vpop.f32.mrb[0].mxu0
    %1458 = vmatprep.mubr.f32.mxu0 0.0
    %v1459 = vand.u32 %v1255, 4294901760
    %v1460 = vsub.f32 %v1255, %v1459
    %v1461 = vand.u32 %v1460, 4294901760
    %v1462 = vsub.f32 %v1460, %v1461
    %v1463 = vand.u32 %v1462, 4294901760
    %1464 = vmatmul.mubr.f32.gmra.mrb[0].mxu0 %v1463
    %v1465 = vpop.f32.mrb[0].mxu0
    %v1466 = vadd.f32 %v1199, %v1465
    %v1467 = vpop.f32.mrb[0].mxu0
    %1468 = vmatprep.mubr.f32.mxu0 0.0
    %v1469 = vand.u32 %v1258, 4294901760
    %v1470 = vsub.f32 %v1258, %v1469
    %v1471 = vand.u32 %v1470, 4294901760
    %v1472 = vsub.f32 %v1470, %v1471
    %v1473 = vand.u32 %v1472, 4294901760
    %1474 = vmatmul.mubr.f32.gmra.mrb[0].mxu0 %v1473
    %v1475 = vpop.f32.mrb[0].mxu0
    %v1476 = vadd.f32 %v1205, %v1475
    %v1477 = vpop.f32.mrb[0].mxu0
    %1478 = vmatprep.mubr.f32.mxu0 0.0
    %v1479 = vand.u32 %v1261, 4294901760
    %v1480 = vsub.f32 %v1261, %v1479
    %v1481 = vand.u32 %v1480, 4294901760
    %v1482 = vsub.f32 %v1480, %v1481
    %v1483 = vand.u32 %v1482, 4294901760
    %1484 = vmatmul.mubr.f32.gmra.mrb[0].mxu0 %v1483
    %v1485 = vpop.f32.mrb[0].mxu0
    %v1486 = vadd.f32 %v1211, %v1485
    %v1487 = vpop.f32.mrb[0].mxu0
    %1488 = vdwg.mxu0
    %1489 = vmatprep.subr.mxu0 0.0
    %v1490 = vand.u32 %v35, 4294901760
    %v1491 = vsub.f32 %v35, %v1490
    %v1492 = vand.u32 %v1491, 4294901760
    %v1493 = vsub.f32 %v1491, %v1492
    %v1494 = vand.u32 %v1493, 4294901760
    %1495 = vmatpush1.msra.mxu0 %v1494
    %1496 = vmatprep.subr.mxu0 0.0
    %1497 = vmatpush1.msra.mxu0 0.0
    %1498 = vmatprep.subr.mxu0 0.0
    %1499 = vmatpush1.msra.mxu0 0.0
    %1500 = vmatprep.subr.mxu0 0.0
    %1501 = vmatpush1.msra.mxu0 0.0
    %1502 = vmatprep.subr.mxu0 0.0
    %1503 = vmatpush1.msra.mxu0 0.0
    %1504 = vmatprep.subr.mxu0 0.0
    %1505 = vmatpush1.msra.mxu0 0.0
    %1506 = vmatprep.subr.mxu0 0.0
    %1507 = vmatpush1.msra.mxu0 0.0
    %1508 = vmatprep.subr.mxu0 0.0
    %1509 = vmatpush1.msra.mxu0 0.0
    %1510 = vmatprep.subr.mxu0 0.0
    %1511 = vmatpush1.msra.mxu0 0.0
    %1512 = vmatprep.subr.mxu0 0.0
    %1513 = vmatpush1.msra.mxu0 0.0
    %1514 = vmatprep.subr.mxu0 0.0
    %1515 = vmatpush1.msra.mxu0 0.0
    %1516 = vmatprep.subr.mxu0 0.0
    %1517 = vmatpush1.msra.mxu0 0.0
    %1518 = vmatprep.subr.mxu0 0.0
    %1519 = vmatpush1.msra.mxu0 0.0
    %1520 = vmatprep.subr.mxu0 0.0
    %1521 = vmatpush1.msra.mxu0 0.0
    %1522 = vmatprep.subr.mxu0 0.0
    %1523 = vmatpush1.msra.mxu0 0.0
    %1524 = vmatprep.subr.mxu0 0.0
    %1525 = vmatpush1.msra.mxu0 0.0
    %1526 = vmatprep.subr.mxu0 0.0
    %1527 = vmatpush1.msra.mxu0 0.0
    %1528 = vmatprep.subr.mxu0 0.0
    %1529 = vmatpush1.msra.mxu0 0.0
    %1530 = vmatprep.subr.mxu0 0.0
    %1531 = vmatpush1.msra.mxu0 0.0
    %1532 = vmatprep.subr.mxu0 0.0
    %1533 = vmatpush1.msra.mxu0 0.0
    %1534 = vmatprep.subr.mxu0 0.0
    %1535 = vmatpush1.msra.mxu0 0.0
    %1536 = vmatprep.subr.mxu0 0.0
    %1537 = vmatpush1.msra.mxu0 0.0
    %1538 = vmatprep.subr.mxu0 0.0
    %1539 = vmatpush1.msra.mxu0 0.0
    %1540 = vmatprep.subr.mxu0 0.0
    %1541 = vmatpush1.msra.mxu0 0.0
    %1542 = vmatprep.subr.mxu0 0.0
    %1543 = vmatpush1.msra.mxu0 0.0
    %1544 = vmatprep.subr.mxu0 0.0
    %1545 = vmatpush1.msra.mxu0 0.0
    %1546 = vmatprep.subr.mxu0 0.0
    %1547 = vmatpush1.msra.mxu0 0.0
    %1548 = vmatprep.subr.mxu0 0.0
    %1549 = vmatpush1.msra.mxu0 0.0
    %1550 = vmatprep.subr.mxu0 0.0
    %1551 = vmatpush1.msra.mxu0 0.0
    %1552 = vmatprep.subr.mxu0 0.0
    %1553 = vmatpush1.msra.mxu0 0.0
    %1554 = vmatprep.subr.mxu0 0.0
    %1555 = vmatpush1.msra.mxu0 0.0
    %1556 = vmatprep.subr.mxu0 0.0
    %1557 = vmatpush1.msra.mxu0 0.0
    %1558 = vmatprep.mubr.f32.mxu0 0.0
    %v1559 = vand.u32 %v1216, 4294901760
    %1560 = vmatmul.mubr.f32.gmra.mrb[0].mxu0 %v1559
    %v1561 = vpop.f32.mrb[0].mxu0
    %v1562 = vadd.f32 %v1336, %v1561
    %v1563 = vpop.f32.mrb[0].mxu0
    %1564 = vmatprep.mubr.f32.mxu0 0.0
    %v1565 = vand.u32 %v1219, 4294901760
    %1566 = vmatmul.mubr.f32.gmra.mrb[0].mxu0 %v1565
    %v1567 = vpop.f32.mrb[0].mxu0
    %v1568 = vadd.f32 %v1346, %v1567
    %v1569 = vpop.f32.mrb[0].mxu0
    %1570 = vmatprep.mubr.f32.mxu0 0.0
    %v1571 = vand.u32 %v1222, 4294901760
    %1572 = vmatmul.mubr.f32.gmra.mrb[0].mxu0 %v1571
    %v1573 = vpop.f32.mrb[0].mxu0
    %v1574 = vadd.f32 %v1356, %v1573
    %v1575 = vpop.f32.mrb[0].mxu0
    %1576 = vmatprep.mubr.f32.mxu0 0.0
    %v1577 = vand.u32 %v1225, 4294901760
    %1578 = vmatmul.mubr.f32.gmra.mrb[0].mxu0 %v1577
    %v1579 = vpop.f32.mrb[0].mxu0
    %v1580 = vadd.f32 %v1366, %v1579
    %v1581 = vpop.f32.mrb[0].mxu0
    %1582 = vmatprep.mubr.f32.mxu0 0.0
    %v1583 = vand.u32 %v1228, 4294901760
    %1584 = vmatmul.mubr.f32.gmra.mrb[0].mxu0 %v1583
    %v1585 = vpop.f32.mrb[0].mxu0
    %v1586 = vadd.f32 %v1376, %v1585
    %v1587 = vpop.f32.mrb[0].mxu0
    %1588 = vmatprep.mubr.f32.mxu0 0.0
    %v1589 = vand.u32 %v1231, 4294901760
    %1590 = vmatmul.mubr.f32.gmra.mrb[0].mxu0 %v1589
    %v1591 = vpop.f32.mrb[0].mxu0
    %v1592 = vadd.f32 %v1386, %v1591
    %v1593 = vpop.f32.mrb[0].mxu0
    %1594 = vmatprep.mubr.f32.mxu0 0.0
    %v1595 = vand.u32 %v1234, 4294901760
    %1596 = vmatmul.mubr.f32.gmra.mrb[0].mxu0 %v1595
    %v1597 = vpop.f32.mrb[0].mxu0
    %v1598 = vadd.f32 %v1396, %v1597
    %v1599 = vpop.f32.mrb[0].mxu0
    %1600 = vmatprep.mubr.f32.mxu0 0.0
    %v1601 = vand.u32 %v1237, 4294901760
    %1602 = vmatmul.mubr.f32.gmra.mrb[0].mxu0 %v1601
    %v1603 = vpop.f32.mrb[0].mxu0
    %v1604 = vadd.f32 %v1406, %v1603
    %v1605 = vpop.f32.mrb[0].mxu0
    %1606 = vmatprep.mubr.f32.mxu0 0.0
    %v1607 = vand.u32 %v1240, 4294901760
    %1608 = vmatmul.mubr.f32.gmra.mrb[0].mxu0 %v1607
    %v1609 = vpop.f32.mrb[0].mxu0
    %v1610 = vadd.f32 %v1416, %v1609
    %v1611 = vpop.f32.mrb[0].mxu0
    %1612 = vmatprep.mubr.f32.mxu0 0.0
    %v1613 = vand.u32 %v1243, 4294901760
    %1614 = vmatmul.mubr.f32.gmra.mrb[0].mxu0 %v1613
    %v1615 = vpop.f32.mrb[0].mxu0
    %v1616 = vadd.f32 %v1426, %v1615
    %v1617 = vpop.f32.mrb[0].mxu0
    %1618 = vmatprep.mubr.f32.mxu0 0.0
    %v1619 = vand.u32 %v1246, 4294901760
    %1620 = vmatmul.mubr.f32.gmra.mrb[0].mxu0 %v1619
    %v1621 = vpop.f32.mrb[0].mxu0
    %v1622 = vadd.f32 %v1436, %v1621
    %v1623 = vpop.f32.mrb[0].mxu0
    %1624 = vmatprep.mubr.f32.mxu0 0.0
    %v1625 = vand.u32 %v1249, 4294901760
    %1626 = vmatmul.mubr.f32.gmra.mrb[0].mxu0 %v1625
    %v1627 = vpop.f32.mrb[0].mxu0
    %v1628 = vadd.f32 %v1446, %v1627
    %v1629 = vpop.f32.mrb[0].mxu0
    %1630 = vmatprep.mubr.f32.mxu0 0.0
    %v1631 = vand.u32 %v1252, 4294901760
    %1632 = vmatmul.mubr.f32.gmra.mrb[0].mxu0 %v1631
    %v1633 = vpop.f32.mrb[0].mxu0
    %v1634 = vadd.f32 %v1456, %v1633
    %v1635 = vpop.f32.mrb[0].mxu0
    %1636 = vmatprep.mubr.f32.mxu0 0.0
    %v1637 = vand.u32 %v1255, 4294901760
    %1638 = vmatmul.mubr.f32.gmra.mrb[0].mxu0 %v1637
    %v1639 = vpop.f32.mrb[0].mxu0
    %v1640 = vadd.f32 %v1466, %v1639
    %v1641 = vpop.f32.mrb[0].mxu0
    %1642 = vmatprep.mubr.f32.mxu0 0.0
    %v1643 = vand.u32 %v1258, 4294901760
    %1644 = vmatmul.mubr.f32.gmra.mrb[0].mxu0 %v1643
    %v1645 = vpop.f32.mrb[0].mxu0
    %v1646 = vadd.f32 %v1476, %v1645
    %v1647 = vpop.f32.mrb[0].mxu0
    %1648 = vmatprep.mubr.f32.mxu0 0.0
    %v1649 = vand.u32 %v1261, 4294901760
    %1650 = vmatmul.mubr.f32.gmra.mrb[0].mxu0 %v1649
    %v1651 = vpop.f32.mrb[0].mxu0
    %v1652 = vadd.f32 %v1486, %v1651
    %v1653 = vpop.f32.mrb[0].mxu0
    %1654 = vdwg.mxu0
    %1655 = vmatprep.subr.mxu0 0.0
    %v1656 = vand.u32 %v35, 4294901760
    %v1657 = vsub.f32 %v35, %v1656
    %1658 = vmatpush1.msra.mxu0 %v1657
    %1659 = vmatprep.subr.mxu0 0.0
    %1660 = vmatpush1.msra.mxu0 0.0
    %1661 = vmatprep.subr.mxu0 0.0
    %1662 = vmatpush1.msra.mxu0 0.0
    %1663 = vmatprep.subr.mxu0 0.0
    %1664 = vmatpush1.msra.mxu0 0.0
    %1665 = vmatprep.subr.mxu0 0.0
    %1666 = vmatpush1.msra.mxu0 0.0
    %1667 = vmatprep.subr.mxu0 0.0
    %1668 = vmatpush1.msra.mxu0 0.0
    %1669 = vmatprep.subr.mxu0 0.0
    %1670 = vmatpush1.msra.mxu0 0.0
    %1671 = vmatprep.subr.mxu0 0.0
    %1672 = vmatpush1.msra.mxu0 0.0
    %1673 = vmatprep.subr.mxu0 0.0
    %1674 = vmatpush1.msra.mxu0 0.0
    %1675 = vmatprep.subr.mxu0 0.0
    %1676 = vmatpush1.msra.mxu0 0.0
    %1677 = vmatprep.subr.mxu0 0.0
    %1678 = vmatpush1.msra.mxu0 0.0
    %1679 = vmatprep.subr.mxu0 0.0
    %1680 = vmatpush1.msra.mxu0 0.0
    %1681 = vmatprep.subr.mxu0 0.0
    %1682 = vmatpush1.msra.mxu0 0.0
    %1683 = vmatprep.subr.mxu0 0.0
    %1684 = vmatpush1.msra.mxu0 0.0
    %1685 = vmatprep.subr.mxu0 0.0
    %1686 = vmatpush1.msra.mxu0 0.0
    %1687 = vmatprep.subr.mxu0 0.0
    %1688 = vmatpush1.msra.mxu0 0.0
    %1689 = vmatprep.subr.mxu0 0.0
    %1690 = vmatpush1.msra.mxu0 0.0
    %1691 = vmatprep.subr.mxu0 0.0
    %1692 = vmatpush1.msra.mxu0 0.0
    %1693 = vmatprep.subr.mxu0 0.0
    %1694 = vmatpush1.msra.mxu0 0.0
    %1695 = vmatprep.subr.mxu0 0.0
    %1696 = vmatpush1.msra.mxu0 0.0
    %1697 = vmatprep.subr.mxu0 0.0
    %1698 = vmatpush1.msra.mxu0 0.0
    %1699 = vmatprep.subr.mxu0 0.0
    %1700 = vmatpush1.msra.mxu0 0.0
    %1701 = vmatprep.subr.mxu0 0.0
    %1702 = vmatpush1.msra.mxu0 0.0
    %1703 = vmatprep.subr.mxu0 0.0
    %1704 = vmatpush1.msra.mxu0 0.0
    %1705 = vmatprep.subr.mxu0 0.0
    %1706 = vmatpush1.msra.mxu0 0.0
    %1707 = vmatprep.subr.mxu0 0.0
    %1708 = vmatpush1.msra.mxu0 0.0
    %1709 = vmatprep.subr.mxu0 0.0
    %1710 = vmatpush1.msra.mxu0 0.0
    %1711 = vmatprep.subr.mxu0 0.0
    %1712 = vmatpush1.msra.mxu0 0.0
    %1713 = vmatprep.subr.mxu0 0.0
    %1714 = vmatpush1.msra.mxu0 0.0
    %1715 = vmatprep.subr.mxu0 0.0
    %1716 = vmatpush1.msra.mxu0 0.0
    %1717 = vmatprep.subr.mxu0 0.0
    %1718 = vmatpush1.msra.mxu0 0.0
    %1719 = vmatprep.subr.mxu0 0.0
    %1720 = vmatpush1.msra.mxu0 0.0
    %1721 = vmatprep.mubr.f32.mxu0 0.0
    %v1722 = vand.u32 %v1216, 4294901760
    %v1723 = vsub.f32 %v1216, %v1722
    %1724 = vmatmul.mubr.f32.gmra.mrb[0].mxu0 %v1723
    %v1725 = vpop.f32.mrb[0].mxu0
    %v1726 = vadd.f32 %v1562, %v1725
    %v1727 = vpop.f32.mrb[0].mxu0
    %1728 = vmatprep.mubr.f32.mxu0 0.0
    %v1729 = vand.u32 %v1219, 4294901760
    %v1730 = vsub.f32 %v1219, %v1729
    %1731 = vmatmul.mubr.f32.gmra.mrb[0].mxu0 %v1730
    %v1732 = vpop.f32.mrb[0].mxu0
    %v1733 = vadd.f32 %v1568, %v1732
    %v1734 = vpop.f32.mrb[0].mxu0
    %1735 = vmatprep.mubr.f32.mxu0 0.0
    %v1736 = vand.u32 %v1222, 4294901760
    %v1737 = vsub.f32 %v1222, %v1736
    %1738 = vmatmul.mubr.f32.gmra.mrb[0].mxu0 %v1737
    %v1739 = vpop.f32.mrb[0].mxu0
    %v1740 = vadd.f32 %v1574, %v1739
    %v1741 = vpop.f32.mrb[0].mxu0
    %1742 = vmatprep.mubr.f32.mxu0 0.0
    %v1743 = vand.u32 %v1225, 4294901760
    %v1744 = vsub.f32 %v1225, %v1743
    %1745 = vmatmul.mubr.f32.gmra.mrb[0].mxu0 %v1744
    %v1746 = vpop.f32.mrb[0].mxu0
    %v1747 = vadd.f32 %v1580, %v1746
    %v1748 = vpop.f32.mrb[0].mxu0
    %1749 = vmatprep.mubr.f32.mxu0 0.0
    %v1750 = vand.u32 %v1228, 4294901760
    %v1751 = vsub.f32 %v1228, %v1750
    %1752 = vmatmul.mubr.f32.gmra.mrb[0].mxu0 %v1751
    %v1753 = vpop.f32.mrb[0].mxu0
    %v1754 = vadd.f32 %v1586, %v1753
    %v1755 = vpop.f32.mrb[0].mxu0
    %1756 = vmatprep.mubr.f32.mxu0 0.0
    %v1757 = vand.u32 %v1231, 4294901760
    %v1758 = vsub.f32 %v1231, %v1757
    %1759 = vmatmul.mubr.f32.gmra.mrb[0].mxu0 %v1758
    %v1760 = vpop.f32.mrb[0].mxu0
    %v1761 = vadd.f32 %v1592, %v1760
    %v1762 = vpop.f32.mrb[0].mxu0
    %1763 = vmatprep.mubr.f32.mxu0 0.0
    %v1764 = vand.u32 %v1234, 4294901760
    %v1765 = vsub.f32 %v1234, %v1764
    %1766 = vmatmul.mubr.f32.gmra.mrb[0].mxu0 %v1765
    %v1767 = vpop.f32.mrb[0].mxu0
    %v1768 = vadd.f32 %v1598, %v1767
    %v1769 = vpop.f32.mrb[0].mxu0
    %1770 = vmatprep.mubr.f32.mxu0 0.0
    %v1771 = vand.u32 %v1237, 4294901760
    %v1772 = vsub.f32 %v1237, %v1771
    %1773 = vmatmul.mubr.f32.gmra.mrb[0].mxu0 %v1772
    %v1774 = vpop.f32.mrb[0].mxu0
    %v1775 = vadd.f32 %v1604, %v1774
    %v1776 = vpop.f32.mrb[0].mxu0
    %1777 = vmatprep.mubr.f32.mxu0 0.0
    %v1778 = vand.u32 %v1240, 4294901760
    %v1779 = vsub.f32 %v1240, %v1778
    %1780 = vmatmul.mubr.f32.gmra.mrb[0].mxu0 %v1779
    %v1781 = vpop.f32.mrb[0].mxu0
    %v1782 = vadd.f32 %v1610, %v1781
    %v1783 = vpop.f32.mrb[0].mxu0
    %1784 = vmatprep.mubr.f32.mxu0 0.0
    %v1785 = vand.u32 %v1243, 4294901760
    %v1786 = vsub.f32 %v1243, %v1785
    %1787 = vmatmul.mubr.f32.gmra.mrb[0].mxu0 %v1786
    %v1788 = vpop.f32.mrb[0].mxu0
    %v1789 = vadd.f32 %v1616, %v1788
    %v1790 = vpop.f32.mrb[0].mxu0
    %1791 = vmatprep.mubr.f32.mxu0 0.0
    %v1792 = vand.u32 %v1246, 4294901760
    %v1793 = vsub.f32 %v1246, %v1792
    %1794 = vmatmul.mubr.f32.gmra.mrb[0].mxu0 %v1793
    %v1795 = vpop.f32.mrb[0].mxu0
    %v1796 = vadd.f32 %v1622, %v1795
    %v1797 = vpop.f32.mrb[0].mxu0
    %1798 = vmatprep.mubr.f32.mxu0 0.0
    %v1799 = vand.u32 %v1249, 4294901760
    %v1800 = vsub.f32 %v1249, %v1799
    %1801 = vmatmul.mubr.f32.gmra.mrb[0].mxu0 %v1800
    %v1802 = vpop.f32.mrb[0].mxu0
    %v1803 = vadd.f32 %v1628, %v1802
    %v1804 = vpop.f32.mrb[0].mxu0
    %1805 = vmatprep.mubr.f32.mxu0 0.0
    %v1806 = vand.u32 %v1252, 4294901760
    %v1807 = vsub.f32 %v1252, %v1806
    %1808 = vmatmul.mubr.f32.gmra.mrb[0].mxu0 %v1807
    %v1809 = vpop.f32.mrb[0].mxu0
    %v1810 = vadd.f32 %v1634, %v1809
    %v1811 = vpop.f32.mrb[0].mxu0
    %1812 = vmatprep.mubr.f32.mxu0 0.0
    %v1813 = vand.u32 %v1255, 4294901760
    %v1814 = vsub.f32 %v1255, %v1813
    %1815 = vmatmul.mubr.f32.gmra.mrb[0].mxu0 %v1814
    %v1816 = vpop.f32.mrb[0].mxu0
    %v1817 = vadd.f32 %v1640, %v1816
    %v1818 = vpop.f32.mrb[0].mxu0
    %1819 = vmatprep.mubr.f32.mxu0 0.0
    %v1820 = vand.u32 %v1258, 4294901760
    %v1821 = vsub.f32 %v1258, %v1820
    %1822 = vmatmul.mubr.f32.gmra.mrb[0].mxu0 %v1821
    %v1823 = vpop.f32.mrb[0].mxu0
    %v1824 = vadd.f32 %v1646, %v1823
    %v1825 = vpop.f32.mrb[0].mxu0
    %1826 = vmatprep.mubr.f32.mxu0 0.0
    %v1827 = vand.u32 %v1261, 4294901760
    %v1828 = vsub.f32 %v1261, %v1827
    %1829 = vmatmul.mubr.f32.gmra.mrb[0].mxu0 %v1828
    %v1830 = vpop.f32.mrb[0].mxu0
    %v1831 = vadd.f32 %v1652, %v1830
    %v1832 = vpop.f32.mrb[0].mxu0
    %1833 = vdwg.mxu0
    %1834 = vmatprep.subr.mxu0 0.0
    %v1835 = vand.u32 %v35, 4294901760
    %1836 = vmatpush1.msra.mxu0 %v1835
    %1837 = vmatprep.subr.mxu0 0.0
    %1838 = vmatpush1.msra.mxu0 0.0
    %1839 = vmatprep.subr.mxu0 0.0
    %1840 = vmatpush1.msra.mxu0 0.0
    %1841 = vmatprep.subr.mxu0 0.0
    %1842 = vmatpush1.msra.mxu0 0.0
    %1843 = vmatprep.subr.mxu0 0.0
    %1844 = vmatpush1.msra.mxu0 0.0
    %1845 = vmatprep.subr.mxu0 0.0
    %1846 = vmatpush1.msra.mxu0 0.0
    %1847 = vmatprep.subr.mxu0 0.0
    %1848 = vmatpush1.msra.mxu0 0.0
    %1849 = vmatprep.subr.mxu0 0.0
    %1850 = vmatpush1.msra.mxu0 0.0
    %1851 = vmatprep.subr.mxu0 0.0
    %1852 = vmatpush1.msra.mxu0 0.0
    %1853 = vmatprep.subr.mxu0 0.0
    %1854 = vmatpush1.msra.mxu0 0.0
    %1855 = vmatprep.subr.mxu0 0.0
    %1856 = vmatpush1.msra.mxu0 0.0
    %1857 = vmatprep.subr.mxu0 0.0
    %1858 = vmatpush1.msra.mxu0 0.0
    %1859 = vmatprep.subr.mxu0 0.0
    %1860 = vmatpush1.msra.mxu0 0.0
    %1861 = vmatprep.subr.mxu0 0.0
    %1862 = vmatpush1.msra.mxu0 0.0
    %1863 = vmatprep.subr.mxu0 0.0
    %1864 = vmatpush1.msra.mxu0 0.0
    %1865 = vmatprep.subr.mxu0 0.0
    %1866 = vmatpush1.msra.mxu0 0.0
    %1867 = vmatprep.subr.mxu0 0.0
    %1868 = vmatpush1.msra.mxu0 0.0
    %1869 = vmatprep.subr.mxu0 0.0
    %1870 = vmatpush1.msra.mxu0 0.0
    %1871 = vmatprep.subr.mxu0 0.0
    %1872 = vmatpush1.msra.mxu0 0.0
    %1873 = vmatprep.subr.mxu0 0.0
    %1874 = vmatpush1.msra.mxu0 0.0
    %1875 = vmatprep.subr.mxu0 0.0
    %1876 = vmatpush1.msra.mxu0 0.0
    %1877 = vmatprep.subr.mxu0 0.0
    %1878 = vmatpush1.msra.mxu0 0.0
    %1879 = vmatprep.subr.mxu0 0.0
    %1880 = vmatpush1.msra.mxu0 0.0
    %1881 = vmatprep.subr.mxu0 0.0
    %1882 = vmatpush1.msra.mxu0 0.0
    %1883 = vmatprep.subr.mxu0 0.0
    %1884 = vmatpush1.msra.mxu0 0.0
    %1885 = vmatprep.subr.mxu0 0.0
    %1886 = vmatpush1.msra.mxu0 0.0
    %1887 = vmatprep.subr.mxu0 0.0
    %1888 = vmatpush1.msra.mxu0 0.0
    %1889 = vmatprep.subr.mxu0 0.0
    %1890 = vmatpush1.msra.mxu0 0.0
    %1891 = vmatprep.subr.mxu0 0.0
    %1892 = vmatpush1.msra.mxu0 0.0
    %1893 = vmatprep.subr.mxu0 0.0
    %1894 = vmatpush1.msra.mxu0 0.0
    %1895 = vmatprep.subr.mxu0 0.0
    %1896 = vmatpush1.msra.mxu0 0.0
    %1897 = vmatprep.subr.mxu0 0.0
    %1898 = vmatpush1.msra.mxu0 0.0
    %1899 = vmatprep.mubr.f32.mxu0 0.0
    %v1900 = vand.u32 %v1216, 4294901760
    %v1901 = vsub.f32 %v1216, %v1900
    %v1902 = vand.u32 %v1901, 4294901760
    %1903 = vmatmul.mubr.f32.gmra.mrb[0].mxu0 %v1902
    %v1904 = vpop.f32.mrb[0].mxu0
    %v1905 = vadd.f32 %v1726, %v1904
    %v1906 = vpop.f32.mrb[0].mxu0
    %1907 = vmatprep.mubr.f32.mxu0 0.0
    %v1908 = vand.u32 %v1219, 4294901760
    %v1909 = vsub.f32 %v1219, %v1908
    %v1910 = vand.u32 %v1909, 4294901760
    %1911 = vmatmul.mubr.f32.gmra.mrb[0].mxu0 %v1910
    %v1912 = vpop.f32.mrb[0].mxu0
    %v1913 = vadd.f32 %v1733, %v1912
    %v1914 = vpop.f32.mrb[0].mxu0
    %1915 = vmatprep.mubr.f32.mxu0 0.0
    %v1916 = vand.u32 %v1222, 4294901760
    %v1917 = vsub.f32 %v1222, %v1916
    %v1918 = vand.u32 %v1917, 4294901760
    %1919 = vmatmul.mubr.f32.gmra.mrb[0].mxu0 %v1918
    %v1920 = vpop.f32.mrb[0].mxu0
    %v1921 = vadd.f32 %v1740, %v1920
    %v1922 = vpop.f32.mrb[0].mxu0
    %1923 = vmatprep.mubr.f32.mxu0 0.0
    %v1924 = vand.u32 %v1225, 4294901760
    %v1925 = vsub.f32 %v1225, %v1924
    %v1926 = vand.u32 %v1925, 4294901760
    %1927 = vmatmul.mubr.f32.gmra.mrb[0].mxu0 %v1926
    %v1928 = vpop.f32.mrb[0].mxu0
    %v1929 = vadd.f32 %v1747, %v1928
    %v1930 = vpop.f32.mrb[0].mxu0
    %1931 = vmatprep.mubr.f32.mxu0 0.0
    %v1932 = vand.u32 %v1228, 4294901760
    %v1933 = vsub.f32 %v1228, %v1932
    %v1934 = vand.u32 %v1933, 4294901760
    %1935 = vmatmul.mubr.f32.gmra.mrb[0].mxu0 %v1934
    %v1936 = vpop.f32.mrb[0].mxu0
    %v1937 = vadd.f32 %v1754, %v1936
    %v1938 = vpop.f32.mrb[0].mxu0
    %1939 = vmatprep.mubr.f32.mxu0 0.0
    %v1940 = vand.u32 %v1231, 4294901760
    %v1941 = vsub.f32 %v1231, %v1940
    %v1942 = vand.u32 %v1941, 4294901760
    %1943 = vmatmul.mubr.f32.gmra.mrb[0].mxu0 %v1942
    %v1944 = vpop.f32.mrb[0].mxu0
    %v1945 = vadd.f32 %v1761, %v1944
    %v1946 = vpop.f32.mrb[0].mxu0
    %1947 = vmatprep.mubr.f32.mxu0 0.0
    %v1948 = vand.u32 %v1234, 4294901760
    %v1949 = vsub.f32 %v1234, %v1948
    %v1950 = vand.u32 %v1949, 4294901760
    %1951 = vmatmul.mubr.f32.gmra.mrb[0].mxu0 %v1950
    %v1952 = vpop.f32.mrb[0].mxu0
    %v1953 = vadd.f32 %v1768, %v1952
    %v1954 = vpop.f32.mrb[0].mxu0
    %1955 = vmatprep.mubr.f32.mxu0 0.0
    %v1956 = vand.u32 %v1237, 4294901760
    %v1957 = vsub.f32 %v1237, %v1956
    %v1958 = vand.u32 %v1957, 4294901760
    %1959 = vmatmul.mubr.f32.gmra.mrb[0].mxu0 %v1958
    %v1960 = vpop.f32.mrb[0].mxu0
    %v1961 = vadd.f32 %v1775, %v1960
    %v1962 = vpop.f32.mrb[0].mxu0
    %1963 = vmatprep.mubr.f32.mxu0 0.0
    %v1964 = vand.u32 %v1240, 4294901760
    %v1965 = vsub.f32 %v1240, %v1964
    %v1966 = vand.u32 %v1965, 4294901760
    %1967 = vmatmul.mubr.f32.gmra.mrb[0].mxu0 %v1966
    %v1968 = vpop.f32.mrb[0].mxu0
    %v1969 = vadd.f32 %v1782, %v1968
    %v1970 = vpop.f32.mrb[0].mxu0
    %1971 = vmatprep.mubr.f32.mxu0 0.0
    %v1972 = vand.u32 %v1243, 4294901760
    %v1973 = vsub.f32 %v1243, %v1972
    %v1974 = vand.u32 %v1973, 4294901760
    %1975 = vmatmul.mubr.f32.gmra.mrb[0].mxu0 %v1974
    %v1976 = vpop.f32.mrb[0].mxu0
    %v1977 = vadd.f32 %v1789, %v1976
    %v1978 = vpop.f32.mrb[0].mxu0
    %1979 = vmatprep.mubr.f32.mxu0 0.0
    %v1980 = vand.u32 %v1246, 4294901760
    %v1981 = vsub.f32 %v1246, %v1980
    %v1982 = vand.u32 %v1981, 4294901760
    %1983 = vmatmul.mubr.f32.gmra.mrb[0].mxu0 %v1982
    %v1984 = vpop.f32.mrb[0].mxu0
    %v1985 = vadd.f32 %v1796, %v1984
    %v1986 = vpop.f32.mrb[0].mxu0
    %1987 = vmatprep.mubr.f32.mxu0 0.0
    %v1988 = vand.u32 %v1249, 4294901760
    %v1989 = vsub.f32 %v1249, %v1988
    %v1990 = vand.u32 %v1989, 4294901760
    %1991 = vmatmul.mubr.f32.gmra.mrb[0].mxu0 %v1990
    %v1992 = vpop.f32.mrb[0].mxu0
    %v1993 = vadd.f32 %v1803, %v1992
    %v1994 = vpop.f32.mrb[0].mxu0
    %1995 = vmatprep.mubr.f32.mxu0 0.0
    %v1996 = vand.u32 %v1252, 4294901760
    %v1997 = vsub.f32 %v1252, %v1996
    %v1998 = vand.u32 %v1997, 4294901760
    %1999 = vmatmul.mubr.f32.gmra.mrb[0].mxu0 %v1998
    %v2000 = vpop.f32.mrb[0].mxu0
    %v2001 = vadd.f32 %v1810, %v2000
    %v2002 = vpop.f32.mrb[0].mxu0
    %2003 = vmatprep.mubr.f32.mxu0 0.0
    %v2004 = vand.u32 %v1255, 4294901760
    %v2005 = vsub.f32 %v1255, %v2004
    %v2006 = vand.u32 %v2005, 4294901760
    %2007 = vmatmul.mubr.f32.gmra.mrb[0].mxu0 %v2006
    %v2008 = vpop.f32.mrb[0].mxu0
    %v2009 = vadd.f32 %v1817, %v2008
    %v2010 = vpop.f32.mrb[0].mxu0
    %2011 = vmatprep.mubr.f32.mxu0 0.0
    %v2012 = vand.u32 %v1258, 4294901760
    %v2013 = vsub.f32 %v1258, %v2012
    %v2014 = vand.u32 %v2013, 4294901760
    %2015 = vmatmul.mubr.f32.gmra.mrb[0].mxu0 %v2014
    %v2016 = vpop.f32.mrb[0].mxu0
    %v2017 = vadd.f32 %v1824, %v2016
    %v2018 = vpop.f32.mrb[0].mxu0
    %2019 = vmatprep.mubr.f32.mxu0 0.0
    %v2020 = vand.u32 %v1261, 4294901760
    %v2021 = vsub.f32 %v1261, %v2020
    %v2022 = vand.u32 %v2021, 4294901760
    %2023 = vmatmul.mubr.f32.gmra.mrb[0].mxu0 %v2022
    %v2024 = vpop.f32.mrb[0].mxu0
    %v2025 = vadd.f32 %v1831, %v2024
    %v2026 = vpop.f32.mrb[0].mxu0
    %2027 = vdwg.mxu0
    %2028 = vmatprep.subr.mxu0 0.0
    %v2029 = vand.u32 %v35, 4294901760
    %v2030 = vsub.f32 %v35, %v2029
    %v2031 = vand.u32 %v2030, 4294901760
    %2032 = vmatpush1.msra.mxu0 %v2031
    %2033 = vmatprep.subr.mxu0 0.0
    %2034 = vmatpush1.msra.mxu0 0.0
    %2035 = vmatprep.subr.mxu0 0.0
    %2036 = vmatpush1.msra.mxu0 0.0
    %2037 = vmatprep.subr.mxu0 0.0
    %2038 = vmatpush1.msra.mxu0 0.0
    %2039 = vmatprep.subr.mxu0 0.0
    %2040 = vmatpush1.msra.mxu0 0.0
    %2041 = vmatprep.subr.mxu0 0.0
    %2042 = vmatpush1.msra.mxu0 0.0
    %2043 = vmatprep.subr.mxu0 0.0
    %2044 = vmatpush1.msra.mxu0 0.0
    %2045 = vmatprep.subr.mxu0 0.0
    %2046 = vmatpush1.msra.mxu0 0.0
    %2047 = vmatprep.subr.mxu0 0.0
    %2048 = vmatpush1.msra.mxu0 0.0
    %2049 = vmatprep.subr.mxu0 0.0
    %2050 = vmatpush1.msra.mxu0 0.0
    %2051 = vmatprep.subr.mxu0 0.0
    %2052 = vmatpush1.msra.mxu0 0.0
    %2053 = vmatprep.subr.mxu0 0.0
    %2054 = vmatpush1.msra.mxu0 0.0
    %2055 = vmatprep.subr.mxu0 0.0
    %2056 = vmatpush1.msra.mxu0 0.0
    %2057 = vmatprep.subr.mxu0 0.0
    %2058 = vmatpush1.msra.mxu0 0.0
    %2059 = vmatprep.subr.mxu0 0.0
    %2060 = vmatpush1.msra.mxu0 0.0
    %2061 = vmatprep.subr.mxu0 0.0
    %2062 = vmatpush1.msra.mxu0 0.0
    %2063 = vmatprep.subr.mxu0 0.0
    %2064 = vmatpush1.msra.mxu0 0.0
    %2065 = vmatprep.subr.mxu0 0.0
    %2066 = vmatpush1.msra.mxu0 0.0
    %2067 = vmatprep.subr.mxu0 0.0
    %2068 = vmatpush1.msra.mxu0 0.0
    %2069 = vmatprep.subr.mxu0 0.0
    %2070 = vmatpush1.msra.mxu0 0.0
    %2071 = vmatprep.subr.mxu0 0.0
    %2072 = vmatpush1.msra.mxu0 0.0
    %2073 = vmatprep.subr.mxu0 0.0
    %2074 = vmatpush1.msra.mxu0 0.0
    %2075 = vmatprep.subr.mxu0 0.0
    %2076 = vmatpush1.msra.mxu0 0.0
    %2077 = vmatprep.subr.mxu0 0.0
    %2078 = vmatpush1.msra.mxu0 0.0
    %2079 = vmatprep.subr.mxu0 0.0
    %2080 = vmatpush1.msra.mxu0 0.0
    %2081 = vmatprep.subr.mxu0 0.0
    %2082 = vmatpush1.msra.mxu0 0.0
    %2083 = vmatprep.subr.mxu0 0.0
    %2084 = vmatpush1.msra.mxu0 0.0
    %2085 = vmatprep.subr.mxu0 0.0
    %2086 = vmatpush1.msra.mxu0 0.0
    %2087 = vmatprep.subr.mxu0 0.0
    %2088 = vmatpush1.msra.mxu0 0.0
    %2089 = vmatprep.subr.mxu0 0.0
    %2090 = vmatpush1.msra.mxu0 0.0
    %2091 = vmatprep.subr.mxu0 0.0
    %2092 = vmatpush1.msra.mxu0 0.0
    %2093 = vmatprep.subr.mxu0 0.0
    %2094 = vmatpush1.msra.mxu0 0.0
    %2095 = vmatprep.mubr.f32.mxu0 0.0
    %v2096 = vand.u32 %v1216, 4294901760
    %2097 = vmatmul.mubr.f32.gmra.mrb[0].mxu0 %v2096
    %v2098 = vpop.f32.mrb[0].mxu0
    %v2099 = vadd.f32 %v1905, %v2098
    %v2100 = vpop.f32.mrb[0].mxu0
    %2101 = vmatprep.mubr.f32.mxu0 0.0
    %v2102 = vand.u32 %v1219, 4294901760
    %2103 = vmatmul.mubr.f32.gmra.mrb[0].mxu0 %v2102
    %v2104 = vpop.f32.mrb[0].mxu0
    %v2105 = vadd.f32 %v1913, %v2104
    %v2106 = vpop.f32.mrb[0].mxu0
    %2107 = vmatprep.mubr.f32.mxu0 0.0
    %v2108 = vand.u32 %v1222, 4294901760
    %2109 = vmatmul.mubr.f32.gmra.mrb[0].mxu0 %v2108
    %v2110 = vpop.f32.mrb[0].mxu0
    %v2111 = vadd.f32 %v1921, %v2110
    %v2112 = vpop.f32.mrb[0].mxu0
    %2113 = vmatprep.mubr.f32.mxu0 0.0
    %v2114 = vand.u32 %v1225, 4294901760
    %2115 = vmatmul.mubr.f32.gmra.mrb[0].mxu0 %v2114
    %v2116 = vpop.f32.mrb[0].mxu0
    %v2117 = vadd.f32 %v1929, %v2116
    %v2118 = vpop.f32.mrb[0].mxu0
    %2119 = vmatprep.mubr.f32.mxu0 0.0
    %v2120 = vand.u32 %v1228, 4294901760
    %2121 = vmatmul.mubr.f32.gmra.mrb[0].mxu0 %v2120
    %v2122 = vpop.f32.mrb[0].mxu0
    %v2123 = vadd.f32 %v1937, %v2122
    %v2124 = vpop.f32.mrb[0].mxu0
    %2125 = vmatprep.mubr.f32.mxu0 0.0
    %v2126 = vand.u32 %v1231, 4294901760
    %2127 = vmatmul.mubr.f32.gmra.mrb[0].mxu0 %v2126
    %v2128 = vpop.f32.mrb[0].mxu0
    %v2129 = vadd.f32 %v1945, %v2128
    %v2130 = vpop.f32.mrb[0].mxu0
    %2131 = vmatprep.mubr.f32.mxu0 0.0
    %v2132 = vand.u32 %v1234, 4294901760
    %2133 = vmatmul.mubr.f32.gmra.mrb[0].mxu0 %v2132
    %v2134 = vpop.f32.mrb[0].mxu0
    %v2135 = vadd.f32 %v1953, %v2134
    %v2136 = vpop.f32.mrb[0].mxu0
    %2137 = vmatprep.mubr.f32.mxu0 0.0
    %v2138 = vand.u32 %v1237, 4294901760
    %2139 = vmatmul.mubr.f32.gmra.mrb[0].mxu0 %v2138
    %v2140 = vpop.f32.mrb[0].mxu0
    %v2141 = vadd.f32 %v1961, %v2140
    %v2142 = vpop.f32.mrb[0].mxu0
    %2143 = vmatprep.mubr.f32.mxu0 0.0
    %v2144 = vand.u32 %v1240, 4294901760
    %2145 = vmatmul.mubr.f32.gmra.mrb[0].mxu0 %v2144
    %v2146 = vpop.f32.mrb[0].mxu0
    %v2147 = vadd.f32 %v1969, %v2146
    %v2148 = vpop.f32.mrb[0].mxu0
    %2149 = vmatprep.mubr.f32.mxu0 0.0
    %v2150 = vand.u32 %v1243, 4294901760
    %2151 = vmatmul.mubr.f32.gmra.mrb[0].mxu0 %v2150
    %v2152 = vpop.f32.mrb[0].mxu0
    %v2153 = vadd.f32 %v1977, %v2152
    %v2154 = vpop.f32.mrb[0].mxu0
    %2155 = vmatprep.mubr.f32.mxu0 0.0
    %v2156 = vand.u32 %v1246, 4294901760
    %2157 = vmatmul.mubr.f32.gmra.mrb[0].mxu0 %v2156
    %v2158 = vpop.f32.mrb[0].mxu0
    %v2159 = vadd.f32 %v1985, %v2158
    %v2160 = vpop.f32.mrb[0].mxu0
    %2161 = vmatprep.mubr.f32.mxu0 0.0
    %v2162 = vand.u32 %v1249, 4294901760
    %2163 = vmatmul.mubr.f32.gmra.mrb[0].mxu0 %v2162
    %v2164 = vpop.f32.mrb[0].mxu0
    %v2165 = vadd.f32 %v1993, %v2164
    %v2166 = vpop.f32.mrb[0].mxu0
    %2167 = vmatprep.mubr.f32.mxu0 0.0
    %v2168 = vand.u32 %v1252, 4294901760
    %2169 = vmatmul.mubr.f32.gmra.mrb[0].mxu0 %v2168
    %v2170 = vpop.f32.mrb[0].mxu0
    %v2171 = vadd.f32 %v2001, %v2170
    %v2172 = vpop.f32.mrb[0].mxu0
    %2173 = vmatprep.mubr.f32.mxu0 0.0
    %v2174 = vand.u32 %v1255, 4294901760
    %2175 = vmatmul.mubr.f32.gmra.mrb[0].mxu0 %v2174
    %v2176 = vpop.f32.mrb[0].mxu0
    %v2177 = vadd.f32 %v2009, %v2176
    %v2178 = vpop.f32.mrb[0].mxu0
    %2179 = vmatprep.mubr.f32.mxu0 0.0
    %v2180 = vand.u32 %v1258, 4294901760
    %2181 = vmatmul.mubr.f32.gmra.mrb[0].mxu0 %v2180
    %v2182 = vpop.f32.mrb[0].mxu0
    %v2183 = vadd.f32 %v2017, %v2182
    %v2184 = vpop.f32.mrb[0].mxu0
    %2185 = vmatprep.mubr.f32.mxu0 0.0
    %v2186 = vand.u32 %v1261, 4294901760
    %2187 = vmatmul.mubr.f32.gmra.mrb[0].mxu0 %v2186
    %v2188 = vpop.f32.mrb[0].mxu0
    %v2189 = vadd.f32 %v2025, %v2188
    %v2190 = vpop.f32.mrb[0].mxu0
    %2191 = vdwg.mxu0
    %2192 = vmatprep.subr.mxu0 0.0
    %v2193 = vand.u32 %v35, 4294901760
    %2194 = vmatpush1.msra.mxu0 %v2193
    %2195 = vmatprep.subr.mxu0 0.0
    %2196 = vmatpush1.msra.mxu0 0.0
    %2197 = vmatprep.subr.mxu0 0.0
    %2198 = vmatpush1.msra.mxu0 0.0
    %2199 = vmatprep.subr.mxu0 0.0
    %2200 = vmatpush1.msra.mxu0 0.0
    %2201 = vmatprep.subr.mxu0 0.0
    %2202 = vmatpush1.msra.mxu0 0.0
    %2203 = vmatprep.subr.mxu0 0.0
    %2204 = vmatpush1.msra.mxu0 0.0
    %2205 = vmatprep.subr.mxu0 0.0
    %2206 = vmatpush1.msra.mxu0 0.0
    %2207 = vmatprep.subr.mxu0 0.0
    %2208 = vmatpush1.msra.mxu0 0.0
    %2209 = vmatprep.subr.mxu0 0.0
    %2210 = vmatpush1.msra.mxu0 0.0
    %2211 = vmatprep.subr.mxu0 0.0
    %2212 = vmatpush1.msra.mxu0 0.0
    %2213 = vmatprep.subr.mxu0 0.0
    %2214 = vmatpush1.msra.mxu0 0.0
    %2215 = vmatprep.subr.mxu0 0.0
    %2216 = vmatpush1.msra.mxu0 0.0
    %2217 = vmatprep.subr.mxu0 0.0
    %2218 = vmatpush1.msra.mxu0 0.0
    %2219 = vmatprep.subr.mxu0 0.0
    %2220 = vmatpush1.msra.mxu0 0.0
    %2221 = vmatprep.subr.mxu0 0.0
    %2222 = vmatpush1.msra.mxu0 0.0
    %2223 = vmatprep.subr.mxu0 0.0
    %2224 = vmatpush1.msra.mxu0 0.0
    %2225 = vmatprep.subr.mxu0 0.0
    %2226 = vmatpush1.msra.mxu0 0.0
    %2227 = vmatprep.subr.mxu0 0.0
    %2228 = vmatpush1.msra.mxu0 0.0
    %2229 = vmatprep.subr.mxu0 0.0
    %2230 = vmatpush1.msra.mxu0 0.0
    %2231 = vmatprep.subr.mxu0 0.0
    %2232 = vmatpush1.msra.mxu0 0.0
    %2233 = vmatprep.subr.mxu0 0.0
    %2234 = vmatpush1.msra.mxu0 0.0
    %2235 = vmatprep.subr.mxu0 0.0
    %2236 = vmatpush1.msra.mxu0 0.0
    %2237 = vmatprep.subr.mxu0 0.0
    %2238 = vmatpush1.msra.mxu0 0.0
    %2239 = vmatprep.subr.mxu0 0.0
    %2240 = vmatpush1.msra.mxu0 0.0
    %2241 = vmatprep.subr.mxu0 0.0
    %2242 = vmatpush1.msra.mxu0 0.0
    %2243 = vmatprep.subr.mxu0 0.0
    %2244 = vmatpush1.msra.mxu0 0.0
    %2245 = vmatprep.subr.mxu0 0.0
    %2246 = vmatpush1.msra.mxu0 0.0
    %2247 = vmatprep.subr.mxu0 0.0
    %2248 = vmatpush1.msra.mxu0 0.0
    %2249 = vmatprep.subr.mxu0 0.0
    %2250 = vmatpush1.msra.mxu0 0.0
    %2251 = vmatprep.subr.mxu0 0.0
    %2252 = vmatpush1.msra.mxu0 0.0
    %2253 = vmatprep.subr.mxu0 0.0
    %2254 = vmatpush1.msra.mxu0 0.0
    %2255 = vmatprep.subr.mxu0 0.0
    %2256 = vmatpush1.msra.mxu0 0.0
    %2257 = vmatprep.mubr.f32.mxu0 0.0
    %v2258 = vand.u32 %v1216, 4294901760
    %2259 = vmatmul.mubr.f32.gmra.mrb[0].mxu0 %v2258
    %v2260 = vpop.f32.mrb[0].mxu0
    %v2261 = vadd.f32 %v2099, %v2260
    %v2262 = vpop.f32.mrb[0].mxu0
    %2263 = vmatprep.mubr.f32.mxu0 0.0
    %v2264 = vand.u32 %v1219, 4294901760
    %2265 = vmatmul.mubr.f32.gmra.mrb[0].mxu0 %v2264
    %v2266 = vpop.f32.mrb[0].mxu0
    %v2267 = vadd.f32 %v2105, %v2266
    %v2268 = vpop.f32.mrb[0].mxu0
    %2269 = vmatprep.mubr.f32.mxu0 0.0
    %v2270 = vand.u32 %v1222, 4294901760
    %2271 = vmatmul.mubr.f32.gmra.mrb[0].mxu0 %v2270
    %v2272 = vpop.f32.mrb[0].mxu0
    %v2273 = vadd.f32 %v2111, %v2272
    %v2274 = vpop.f32.mrb[0].mxu0
    %2275 = vmatprep.mubr.f32.mxu0 0.0
    %v2276 = vand.u32 %v1225, 4294901760
    %2277 = vmatmul.mubr.f32.gmra.mrb[0].mxu0 %v2276
    %v2278 = vpop.f32.mrb[0].mxu0
    %v2279 = vadd.f32 %v2117, %v2278
    %v2280 = vpop.f32.mrb[0].mxu0
    %2281 = vmatprep.mubr.f32.mxu0 0.0
    %v2282 = vand.u32 %v1228, 4294901760
    %2283 = vmatmul.mubr.f32.gmra.mrb[0].mxu0 %v2282
    %v2284 = vpop.f32.mrb[0].mxu0
    %v2285 = vadd.f32 %v2123, %v2284
    %v2286 = vpop.f32.mrb[0].mxu0
    %2287 = vmatprep.mubr.f32.mxu0 0.0
    %v2288 = vand.u32 %v1231, 4294901760
    %2289 = vmatmul.mubr.f32.gmra.mrb[0].mxu0 %v2288
    %v2290 = vpop.f32.mrb[0].mxu0
    %v2291 = vadd.f32 %v2129, %v2290
    %v2292 = vpop.f32.mrb[0].mxu0
    %2293 = vmatprep.mubr.f32.mxu0 0.0
    %v2294 = vand.u32 %v1234, 4294901760
    %2295 = vmatmul.mubr.f32.gmra.mrb[0].mxu0 %v2294
    %v2296 = vpop.f32.mrb[0].mxu0
    %v2297 = vadd.f32 %v2135, %v2296
    %v2298 = vpop.f32.mrb[0].mxu0
    %2299 = vmatprep.mubr.f32.mxu0 0.0
    %v2300 = vand.u32 %v1237, 4294901760
    %2301 = vmatmul.mubr.f32.gmra.mrb[0].mxu0 %v2300
    %v2302 = vpop.f32.mrb[0].mxu0
    %v2303 = vadd.f32 %v2141, %v2302
    %v2304 = vpop.f32.mrb[0].mxu0
    %2305 = vmatprep.mubr.f32.mxu0 0.0
    %v2306 = vand.u32 %v1240, 4294901760
    %2307 = vmatmul.mubr.f32.gmra.mrb[0].mxu0 %v2306
    %v2308 = vpop.f32.mrb[0].mxu0
    %v2309 = vadd.f32 %v2147, %v2308
    %v2310 = vpop.f32.mrb[0].mxu0
    %2311 = vmatprep.mubr.f32.mxu0 0.0
    %v2312 = vand.u32 %v1243, 4294901760
    %2313 = vmatmul.mubr.f32.gmra.mrb[0].mxu0 %v2312
    %v2314 = vpop.f32.mrb[0].mxu0
    %v2315 = vadd.f32 %v2153, %v2314
    %v2316 = vpop.f32.mrb[0].mxu0
    %2317 = vmatprep.mubr.f32.mxu0 0.0
    %v2318 = vand.u32 %v1246, 4294901760
    %2319 = vmatmul.mubr.f32.gmra.mrb[0].mxu0 %v2318
    %v2320 = vpop.f32.mrb[0].mxu0
    %v2321 = vadd.f32 %v2159, %v2320
    %v2322 = vpop.f32.mrb[0].mxu0
    %2323 = vmatprep.mubr.f32.mxu0 0.0
    %v2324 = vand.u32 %v1249, 4294901760
    %2325 = vmatmul.mubr.f32.gmra.mrb[0].mxu0 %v2324
    %v2326 = vpop.f32.mrb[0].mxu0
    %v2327 = vadd.f32 %v2165, %v2326
    %v2328 = vpop.f32.mrb[0].mxu0
    %2329 = vmatprep.mubr.f32.mxu0 0.0
    %v2330 = vand.u32 %v1252, 4294901760
    %2331 = vmatmul.mubr.f32.gmra.mrb[0].mxu0 %v2330
    %v2332 = vpop.f32.mrb[0].mxu0
    %v2333 = vadd.f32 %v2171, %v2332
    %v2334 = vpop.f32.mrb[0].mxu0
    %2335 = vmatprep.mubr.f32.mxu0 0.0
    %v2336 = vand.u32 %v1255, 4294901760
    %2337 = vmatmul.mubr.f32.gmra.mrb[0].mxu0 %v2336
    %v2338 = vpop.f32.mrb[0].mxu0
    %v2339 = vadd.f32 %v2177, %v2338
    %v2340 = vpop.f32.mrb[0].mxu0
    %2341 = vmatprep.mubr.f32.mxu0 0.0
    %v2342 = vand.u32 %v1258, 4294901760
    %2343 = vmatmul.mubr.f32.gmra.mrb[0].mxu0 %v2342
    %v2344 = vpop.f32.mrb[0].mxu0
    %v2345 = vadd.f32 %v2183, %v2344
    %v2346 = vpop.f32.mrb[0].mxu0
    %2347 = vmatprep.mubr.f32.mxu0 0.0
    %v2348 = vand.u32 %v1261, 4294901760
    %2349 = vmatmul.mubr.f32.gmra.mrb[0].mxu0 %v2348
    %v2350 = vpop.f32.mrb[0].mxu0
    %v2351 = vadd.f32 %v2189, %v2350
    %v2352 = vpop.f32.mrb[0].mxu0
    %2353 = vdwg.mxu0
    %v2355 = vlaneseq
    %v2356 = vshrl.u32 %v2355, 7
    %v2357 = vsub.s32 0, %v2356
    %v2358 = vrot.slane %v37, %v2357
    %v2360 = vadd.f32 %v2261, %v2358
    %v2361 = vadd.f32 %v2267, %v2358
    %v2362 = vadd.f32 %v2273, %v2358
    %v2363 = vadd.f32 %v2279, %v2358
    %v2364 = vadd.f32 %v2285, %v2358
    %v2365 = vadd.f32 %v2291, %v2358
    %v2366 = vadd.f32 %v2297, %v2358
    %v2367 = vadd.f32 %v2303, %v2358
    %v2368 = vadd.f32 %v2309, %v2358
    %v2369 = vadd.f32 %v2315, %v2358
    %v2370 = vadd.f32 %v2321, %v2358
    %v2371 = vadd.f32 %v2327, %v2358
    %v2372 = vadd.f32 %v2333, %v2358
    %v2373 = vadd.f32 %v2339, %v2358
    %v2374 = vadd.f32 %v2345, %v2358
    %v2375 = vadd.f32 %v2351, %v2358
    %v2376 = vmax.f32 %v2360, 0.0
    %v2377 = vmax.f32 %v2361, 0.0
    %v2378 = vmax.f32 %v2362, 0.0
    %v2379 = vmax.f32 %v2363, 0.0
    %v2380 = vmax.f32 %v2364, 0.0
    %v2381 = vmax.f32 %v2365, 0.0
    %v2382 = vmax.f32 %v2366, 0.0
    %v2383 = vmax.f32 %v2367, 0.0
    %v2384 = vmax.f32 %v2368, 0.0
    %v2385 = vmax.f32 %v2369, 0.0
    %v2386 = vmax.f32 %v2370, 0.0
    %v2387 = vmax.f32 %v2371, 0.0
    %v2388 = vmax.f32 %v2372, 0.0
    %v2389 = vmax.f32 %v2373, 0.0
    %v2390 = vmax.f32 %v2374, 0.0
    %v2391 = vmax.f32 %v2375, 0.0
    %v2392 = vld [vmem:[%s5] sm:$0xff]
    %v2393 = vld [vmem:[%s5 + $0x8] sm:$0xff]
    %v2394 = vld [vmem:[%s5 + $0x10] sm:$0xff]
    %v2395 = vld [vmem:[%s5 + $0x18] sm:$0xff]
    %v2396 = vld [vmem:[%s6] sm:$0x1]
    %v2398 = vlaneseq
    %v2399 = vshrl.u32 %v2398, 7
    %v2400 = vsub.s32 0, %v2399
    %v2401 = vrot.slane %v2396, %v2400
    %vm2403 = vcmask 261120
    %v2405 = vsel %vm2403, %v2376, 0
    %v2408 = vsel %vm2403, %v2377, 0
    %v2411 = vsel %vm2403, %v2378, 0
    %v2414 = vsel %vm2403, %v2379, 0
    %v2417 = vsel %vm2403, %v2380, 0
    %v2420 = vsel %vm2403, %v2381, 0
    %v2423 = vsel %vm2403, %v2382, 0
    %v2426 = vsel %vm2403, %v2383, 0
    %v2429 = vsel %vm2403, %v2384, 0
    %v2432 = vsel %vm2403, %v2385, 0
    %v2435 = vsel %vm2403, %v2386, 0
    %v2438 = vsel %vm2403, %v2387, 0
    %v2441 = vsel %vm2403, %v2388, 0
    %v2444 = vsel %vm2403, %v2389, 0
    %v2447 = vsel %vm2403, %v2390, 0
    %v2450 = vsel %vm2403, %v2391, 0
    %2452 = vmatprep.subr.mxu0 0.0
    %v2453 = vand.u32 %v2392, 4294901760
    %2454 = vmatpush1.msra.mxu0 %v2453
    %2455 = vmatprep.subr.mxu0 0.0
    %v2456 = vand.u32 %v2393, 4294901760
    %2457 = vmatpush1.msra.mxu0 %v2456
    %2458 = vmatprep.subr.mxu0 0.0
    %v2459 = vand.u32 %v2394, 4294901760
    %2460 = vmatpush1.msra.mxu0 %v2459
    %2461 = vmatprep.subr.mxu0 0.0
    %v2462 = vand.u32 %v2395, 4294901760
    %2463 = vmatpush1.msra.mxu0 %v2462
    %2464 = vmatprep.subr.mxu0 0.0
    %2465 = vmatpush1.msra.mxu0 0.0
    %2466 = vmatprep.subr.mxu0 0.0
    %2467 = vmatpush1.msra.mxu0 0.0
    %2468 = vmatprep.subr.mxu0 0.0
    %2469 = vmatpush1.msra.mxu0 0.0
    %2470 = vmatprep.subr.mxu0 0.0
    %2471 = vmatpush1.msra.mxu0 0.0
    %2472 = vmatprep.subr.mxu0 0.0
    %2473 = vmatpush1.msra.mxu0 0.0
    %2474 = vmatprep.subr.mxu0 0.0
    %2475 = vmatpush1.msra.mxu0 0.0
    %2476 = vmatprep.subr.mxu0 0.0
    %2477 = vmatpush1.msra.mxu0 0.0
    %2478 = vmatprep.subr.mxu0 0.0
    %2479 = vmatpush1.msra.mxu0 0.0
    %2480 = vmatprep.subr.mxu0 0.0
    %2481 = vmatpush1.msra.mxu0 0.0
    %2482 = vmatprep.subr.mxu0 0.0
    %2483 = vmatpush1.msra.mxu0 0.0
    %2484 = vmatprep.subr.mxu0 0.0
    %2485 = vmatpush1.msra.mxu0 0.0
    %2486 = vmatprep.subr.mxu0 0.0
    %2487 = vmatpush1.msra.mxu0 0.0
    %2488 = vmatprep.subr.mxu0 0.0
    %2489 = vmatpush1.msra.mxu0 0.0
    %2490 = vmatprep.subr.mxu0 0.0
    %2491 = vmatpush1.msra.mxu0 0.0
    %2492 = vmatprep.subr.mxu0 0.0
    %2493 = vmatpush1.msra.mxu0 0.0
    %2494 = vmatprep.subr.mxu0 0.0
    %2495 = vmatpush1.msra.mxu0 0.0
    %2496 = vmatprep.subr.mxu0 0.0
    %2497 = vmatpush1.msra.mxu0 0.0
    %2498 = vmatprep.subr.mxu0 0.0
    %2499 = vmatpush1.msra.mxu0 0.0
    %2500 = vmatprep.subr.mxu0 0.0
    %2501 = vmatpush1.msra.mxu0 0.0
    %2502 = vmatprep.subr.mxu0 0.0
    %2503 = vmatpush1.msra.mxu0 0.0
    %2504 = vmatprep.subr.mxu0 0.0
    %2505 = vmatpush1.msra.mxu0 0.0
    %2506 = vmatprep.subr.mxu0 0.0
    %2507 = vmatpush1.msra.mxu0 0.0
    %2508 = vmatprep.subr.mxu0 0.0
    %2509 = vmatpush1.msra.mxu0 0.0
    %2510 = vmatprep.subr.mxu0 0.0
    %2511 = vmatpush1.msra.mxu0 0.0
    %2512 = vmatprep.subr.mxu0 0.0
    %2513 = vmatpush1.msra.mxu0 0.0
    %2514 = vmatprep.subr.mxu0 0.0
    %2515 = vmatpush1.msra.mxu0 0.0
    %2516 = vmatprep.subr.mxu0 0.0
    %2517 = vmatpush1.msra.mxu0 0.0
    %2518 = vmatprep.subr.mxu0 0.0
    %2519 = vmatpush1.msra.mxu0 0.0
    %2520 = vmatprep.mubr.f32.mxu0 0.0
    %v2521 = vand.u32 %v2405, 4294901760
    %v2522 = vsub.f32 %v2405, %v2521
    %v2523 = vand.u32 %v2522, 4294901760
    %v2524 = vsub.f32 %v2522, %v2523
    %v2525 = vand.u32 %v2524, 4294901760
    %2526 = vmatmul.mubr.f32.gmra.mrb[0].mxu0 %v2525
    %v2527 = vpop.f32.mrb[0].mxu0
    %v2528 = vadd.f32 %v2401, %v2527
    %v2529 = vpop.f32.mrb[0].mxu0
    %2530 = vmatprep.mubr.f32.mxu0 0.0
    %v2531 = vand.u32 %v2408, 4294901760
    %v2532 = vsub.f32 %v2408, %v2531
    %v2533 = vand.u32 %v2532, 4294901760
    %v2534 = vsub.f32 %v2532, %v2533
    %v2535 = vand.u32 %v2534, 4294901760
    %2536 = vmatmul.mubr.f32.gmra.mrb[0].mxu0 %v2535
    %v2537 = vpop.f32.mrb[0].mxu0
    %v2538 = vadd.f32 %v2401, %v2537
    %v2539 = vpop.f32.mrb[0].mxu0
    %2540 = vmatprep.mubr.f32.mxu0 0.0
    %v2541 = vand.u32 %v2411, 4294901760
    %v2542 = vsub.f32 %v2411, %v2541
    %v2543 = vand.u32 %v2542, 4294901760
    %v2544 = vsub.f32 %v2542, %v2543
    %v2545 = vand.u32 %v2544, 4294901760
    %2546 = vmatmul.mubr.f32.gmra.mrb[0].mxu0 %v2545
    %v2547 = vpop.f32.mrb[0].mxu0
    %v2548 = vadd.f32 %v2401, %v2547
    %v2549 = vpop.f32.mrb[0].mxu0
    %2550 = vmatprep.mubr.f32.mxu0 0.0
    %v2551 = vand.u32 %v2414, 4294901760
    %v2552 = vsub.f32 %v2414, %v2551
    %v2553 = vand.u32 %v2552, 4294901760
    %v2554 = vsub.f32 %v2552, %v2553
    %v2555 = vand.u32 %v2554, 4294901760
    %2556 = vmatmul.mubr.f32.gmra.mrb[0].mxu0 %v2555
    %v2557 = vpop.f32.mrb[0].mxu0
    %v2558 = vadd.f32 %v2401, %v2557
    %v2559 = vpop.f32.mrb[0].mxu0
    %2560 = vmatprep.mubr.f32.mxu0 0.0
    %v2561 = vand.u32 %v2417, 4294901760
    %v2562 = vsub.f32 %v2417, %v2561
    %v2563 = vand.u32 %v2562, 4294901760
    %v2564 = vsub.f32 %v2562, %v2563
    %v2565 = vand.u32 %v2564, 4294901760
    %2566 = vmatmul.mubr.f32.gmra.mrb[0].mxu0 %v2565
    %v2567 = vpop.f32.mrb[0].mxu0
    %v2568 = vadd.f32 %v2401, %v2567
    %v2569 = vpop.f32.mrb[0].mxu0
    %2570 = vmatprep.mubr.f32.mxu0 0.0
    %v2571 = vand.u32 %v2420, 4294901760
    %v2572 = vsub.f32 %v2420, %v2571
    %v2573 = vand.u32 %v2572, 4294901760
    %v2574 = vsub.f32 %v2572, %v2573
    %v2575 = vand.u32 %v2574, 4294901760
    %2576 = vmatmul.mubr.f32.gmra.mrb[0].mxu0 %v2575
    %v2577 = vpop.f32.mrb[0].mxu0
    %v2578 = vadd.f32 %v2401, %v2577
    %v2579 = vpop.f32.mrb[0].mxu0
    %2580 = vmatprep.mubr.f32.mxu0 0.0
    %v2581 = vand.u32 %v2423, 4294901760
    %v2582 = vsub.f32 %v2423, %v2581
    %v2583 = vand.u32 %v2582, 4294901760
    %v2584 = vsub.f32 %v2582, %v2583
    %v2585 = vand.u32 %v2584, 4294901760
    %2586 = vmatmul.mubr.f32.gmra.mrb[0].mxu0 %v2585
    %v2587 = vpop.f32.mrb[0].mxu0
    %v2588 = vadd.f32 %v2401, %v2587
    %v2589 = vpop.f32.mrb[0].mxu0
    %2590 = vmatprep.mubr.f32.mxu0 0.0
    %v2591 = vand.u32 %v2426, 4294901760
    %v2592 = vsub.f32 %v2426, %v2591
    %v2593 = vand.u32 %v2592, 4294901760
    %v2594 = vsub.f32 %v2592, %v2593
    %v2595 = vand.u32 %v2594, 4294901760
    %2596 = vmatmul.mubr.f32.gmra.mrb[0].mxu0 %v2595
    %v2597 = vpop.f32.mrb[0].mxu0
    %v2598 = vadd.f32 %v2401, %v2597
    %v2599 = vpop.f32.mrb[0].mxu0
    %2600 = vmatprep.mubr.f32.mxu0 0.0
    %v2601 = vand.u32 %v2429, 4294901760
    %v2602 = vsub.f32 %v2429, %v2601
    %v2603 = vand.u32 %v2602, 4294901760
    %v2604 = vsub.f32 %v2602, %v2603
    %v2605 = vand.u32 %v2604, 4294901760
    %2606 = vmatmul.mubr.f32.gmra.mrb[0].mxu0 %v2605
    %v2607 = vpop.f32.mrb[0].mxu0
    %v2608 = vadd.f32 %v2401, %v2607
    %v2609 = vpop.f32.mrb[0].mxu0
    %2610 = vmatprep.mubr.f32.mxu0 0.0
    %v2611 = vand.u32 %v2432, 4294901760
    %v2612 = vsub.f32 %v2432, %v2611
    %v2613 = vand.u32 %v2612, 4294901760
    %v2614 = vsub.f32 %v2612, %v2613
    %v2615 = vand.u32 %v2614, 4294901760
    %2616 = vmatmul.mubr.f32.gmra.mrb[0].mxu0 %v2615
    %v2617 = vpop.f32.mrb[0].mxu0
    %v2618 = vadd.f32 %v2401, %v2617
    %v2619 = vpop.f32.mrb[0].mxu0
    %2620 = vmatprep.mubr.f32.mxu0 0.0
    %v2621 = vand.u32 %v2435, 4294901760
    %v2622 = vsub.f32 %v2435, %v2621
    %v2623 = vand.u32 %v2622, 4294901760
    %v2624 = vsub.f32 %v2622, %v2623
    %v2625 = vand.u32 %v2624, 4294901760
    %2626 = vmatmul.mubr.f32.gmra.mrb[0].mxu0 %v2625
    %v2627 = vpop.f32.mrb[0].mxu0
    %v2628 = vadd.f32 %v2401, %v2627
    %v2629 = vpop.f32.mrb[0].mxu0
    %2630 = vmatprep.mubr.f32.mxu0 0.0
    %v2631 = vand.u32 %v2438, 4294901760
    %v2632 = vsub.f32 %v2438, %v2631
    %v2633 = vand.u32 %v2632, 4294901760
    %v2634 = vsub.f32 %v2632, %v2633
    %v2635 = vand.u32 %v2634, 4294901760
    %2636 = vmatmul.mubr.f32.gmra.mrb[0].mxu0 %v2635
    %v2637 = vpop.f32.mrb[0].mxu0
    %v2638 = vadd.f32 %v2401, %v2637
    %v2639 = vpop.f32.mrb[0].mxu0
    %2640 = vmatprep.mubr.f32.mxu0 0.0
    %v2641 = vand.u32 %v2441, 4294901760
    %v2642 = vsub.f32 %v2441, %v2641
    %v2643 = vand.u32 %v2642, 4294901760
    %v2644 = vsub.f32 %v2642, %v2643
    %v2645 = vand.u32 %v2644, 4294901760
    %2646 = vmatmul.mubr.f32.gmra.mrb[0].mxu0 %v2645
    %v2647 = vpop.f32.mrb[0].mxu0
    %v2648 = vadd.f32 %v2401, %v2647
    %v2649 = vpop.f32.mrb[0].mxu0
    %2650 = vmatprep.mubr.f32.mxu0 0.0
    %v2651 = vand.u32 %v2444, 4294901760
    %v2652 = vsub.f32 %v2444, %v2651
    %v2653 = vand.u32 %v2652, 4294901760
    %v2654 = vsub.f32 %v2652, %v2653
    %v2655 = vand.u32 %v2654, 4294901760
    %2656 = vmatmul.mubr.f32.gmra.mrb[0].mxu0 %v2655
    %v2657 = vpop.f32.mrb[0].mxu0
    %v2658 = vadd.f32 %v2401, %v2657
    %v2659 = vpop.f32.mrb[0].mxu0
    %2660 = vmatprep.mubr.f32.mxu0 0.0
    %v2661 = vand.u32 %v2447, 4294901760
    %v2662 = vsub.f32 %v2447, %v2661
    %v2663 = vand.u32 %v2662, 4294901760
    %v2664 = vsub.f32 %v2662, %v2663
    %v2665 = vand.u32 %v2664, 4294901760
    %2666 = vmatmul.mubr.f32.gmra.mrb[0].mxu0 %v2665
    %v2667 = vpop.f32.mrb[0].mxu0
    %v2668 = vadd.f32 %v2401, %v2667
    %v2669 = vpop.f32.mrb[0].mxu0
    %2670 = vmatprep.mubr.f32.mxu0 0.0
    %v2671 = vand.u32 %v2450, 4294901760
    %v2672 = vsub.f32 %v2450, %v2671
    %v2673 = vand.u32 %v2672, 4294901760
    %v2674 = vsub.f32 %v2672, %v2673
    %v2675 = vand.u32 %v2674, 4294901760
    %2676 = vmatmul.mubr.f32.gmra.mrb[0].mxu0 %v2675
    %v2677 = vpop.f32.mrb[0].mxu0
    %v2678 = vadd.f32 %v2401, %v2677
    %v2679 = vpop.f32.mrb[0].mxu0
    %2680 = vdwg.mxu0
    %2681 = vmatprep.subr.mxu0 0.0
    %v2682 = vand.u32 %v2392, 4294901760
    %v2683 = vsub.f32 %v2392, %v2682
    %v2684 = vand.u32 %v2683, 4294901760
    %v2685 = vsub.f32 %v2683, %v2684
    %v2686 = vand.u32 %v2685, 4294901760
    %2687 = vmatpush1.msra.mxu0 %v2686
    %2688 = vmatprep.subr.mxu0 0.0
    %v2689 = vand.u32 %v2393, 4294901760
    %v2690 = vsub.f32 %v2393, %v2689
    %v2691 = vand.u32 %v2690, 4294901760
    %v2692 = vsub.f32 %v2690, %v2691
    %v2693 = vand.u32 %v2692, 4294901760
    %2694 = vmatpush1.msra.mxu0 %v2693
    %2695 = vmatprep.subr.mxu0 0.0
    %v2696 = vand.u32 %v2394, 4294901760
    %v2697 = vsub.f32 %v2394, %v2696
    %v2698 = vand.u32 %v2697, 4294901760
    %v2699 = vsub.f32 %v2697, %v2698
    %v2700 = vand.u32 %v2699, 4294901760
    %2701 = vmatpush1.msra.mxu0 %v2700
    %2702 = vmatprep.subr.mxu0 0.0
    %v2703 = vand.u32 %v2395, 4294901760
    %v2704 = vsub.f32 %v2395, %v2703
    %v2705 = vand.u32 %v2704, 4294901760
    %v2706 = vsub.f32 %v2704, %v2705
    %v2707 = vand.u32 %v2706, 4294901760
    %2708 = vmatpush1.msra.mxu0 %v2707
    %2709 = vmatprep.subr.mxu0 0.0
    %2710 = vmatpush1.msra.mxu0 0.0
    %2711 = vmatprep.subr.mxu0 0.0
    %2712 = vmatpush1.msra.mxu0 0.0
    %2713 = vmatprep.subr.mxu0 0.0
    %2714 = vmatpush1.msra.mxu0 0.0
    %2715 = vmatprep.subr.mxu0 0.0
    %2716 = vmatpush1.msra.mxu0 0.0
    %2717 = vmatprep.subr.mxu0 0.0
    %2718 = vmatpush1.msra.mxu0 0.0
    %2719 = vmatprep.subr.mxu0 0.0
    %2720 = vmatpush1.msra.mxu0 0.0
    %2721 = vmatprep.subr.mxu0 0.0
    %2722 = vmatpush1.msra.mxu0 0.0
    %2723 = vmatprep.subr.mxu0 0.0
    %2724 = vmatpush1.msra.mxu0 0.0
    %2725 = vmatprep.subr.mxu0 0.0
    %2726 = vmatpush1.msra.mxu0 0.0
    %2727 = vmatprep.subr.mxu0 0.0
    %2728 = vmatpush1.msra.mxu0 0.0
    %2729 = vmatprep.subr.mxu0 0.0
    %2730 = vmatpush1.msra.mxu0 0.0
    %2731 = vmatprep.subr.mxu0 0.0
    %2732 = vmatpush1.msra.mxu0 0.0
    %2733 = vmatprep.subr.mxu0 0.0
    %2734 = vmatpush1.msra.mxu0 0.0
    %2735 = vmatprep.subr.mxu0 0.0
    %2736 = vmatpush1.msra.mxu0 0.0
    %2737 = vmatprep.subr.mxu0 0.0
    %2738 = vmatpush1.msra.mxu0 0.0
    %2739 = vmatprep.subr.mxu0 0.0
    %2740 = vmatpush1.msra.mxu0 0.0
    %2741 = vmatprep.subr.mxu0 0.0
    %2742 = vmatpush1.msra.mxu0 0.0
    %2743 = vmatprep.subr.mxu0 0.0
    %2744 = vmatpush1.msra.mxu0 0.0
    %2745 = vmatprep.subr.mxu0 0.0
    %2746 = vmatpush1.msra.mxu0 0.0
    %2747 = vmatprep.subr.mxu0 0.0
    %2748 = vmatpush1.msra.mxu0 0.0
    %2749 = vmatprep.subr.mxu0 0.0
    %2750 = vmatpush1.msra.mxu0 0.0
    %2751 = vmatprep.subr.mxu0 0.0
    %2752 = vmatpush1.msra.mxu0 0.0
    %2753 = vmatprep.subr.mxu0 0.0
    %2754 = vmatpush1.msra.mxu0 0.0
    %2755 = vmatprep.subr.mxu0 0.0
    %2756 = vmatpush1.msra.mxu0 0.0
    %2757 = vmatprep.subr.mxu0 0.0
    %2758 = vmatpush1.msra.mxu0 0.0
    %2759 = vmatprep.subr.mxu0 0.0
    %2760 = vmatpush1.msra.mxu0 0.0
    %2761 = vmatprep.subr.mxu0 0.0
    %2762 = vmatpush1.msra.mxu0 0.0
    %2763 = vmatprep.subr.mxu0 0.0
    %2764 = vmatpush1.msra.mxu0 0.0
    %2765 = vmatprep.mubr.f32.mxu0 0.0
    %v2766 = vand.u32 %v2405, 4294901760
    %2767 = vmatmul.mubr.f32.gmra.mrb[0].mxu0 %v2766
    %v2768 = vpop.f32.mrb[0].mxu0
    %v2769 = vadd.f32 %v2528, %v2768
    %v2770 = vpop.f32.mrb[0].mxu0
    %2771 = vmatprep.mubr.f32.mxu0 0.0
    %v2772 = vand.u32 %v2408, 4294901760
    %2773 = vmatmul.mubr.f32.gmra.mrb[0].mxu0 %v2772
    %v2774 = vpop.f32.mrb[0].mxu0
    %v2775 = vadd.f32 %v2538, %v2774
    %v2776 = vpop.f32.mrb[0].mxu0
    %2777 = vmatprep.mubr.f32.mxu0 0.0
    %v2778 = vand.u32 %v2411, 4294901760
    %2779 = vmatmul.mubr.f32.gmra.mrb[0].mxu0 %v2778
    %v2780 = vpop.f32.mrb[0].mxu0
    %v2781 = vadd.f32 %v2548, %v2780
    %v2782 = vpop.f32.mrb[0].mxu0
    %2783 = vmatprep.mubr.f32.mxu0 0.0
    %v2784 = vand.u32 %v2414, 4294901760
    %2785 = vmatmul.mubr.f32.gmra.mrb[0].mxu0 %v2784
    %v2786 = vpop.f32.mrb[0].mxu0
    %v2787 = vadd.f32 %v2558, %v2786
    %v2788 = vpop.f32.mrb[0].mxu0
    %2789 = vmatprep.mubr.f32.mxu0 0.0
    %v2790 = vand.u32 %v2417, 4294901760
    %2791 = vmatmul.mubr.f32.gmra.mrb[0].mxu0 %v2790
    %v2792 = vpop.f32.mrb[0].mxu0
    %v2793 = vadd.f32 %v2568, %v2792
    %v2794 = vpop.f32.mrb[0].mxu0
    %2795 = vmatprep.mubr.f32.mxu0 0.0
    %v2796 = vand.u32 %v2420, 4294901760
    %2797 = vmatmul.mubr.f32.gmra.mrb[0].mxu0 %v2796
    %v2798 = vpop.f32.mrb[0].mxu0
    %v2799 = vadd.f32 %v2578, %v2798
    %v2800 = vpop.f32.mrb[0].mxu0
    %2801 = vmatprep.mubr.f32.mxu0 0.0
    %v2802 = vand.u32 %v2423, 4294901760
    %2803 = vmatmul.mubr.f32.gmra.mrb[0].mxu0 %v2802
    %v2804 = vpop.f32.mrb[0].mxu0
    %v2805 = vadd.f32 %v2588, %v2804
    %v2806 = vpop.f32.mrb[0].mxu0
    %2807 = vmatprep.mubr.f32.mxu0 0.0
    %v2808 = vand.u32 %v2426, 4294901760
    %2809 = vmatmul.mubr.f32.gmra.mrb[0].mxu0 %v2808
    %v2810 = vpop.f32.mrb[0].mxu0
    %v2811 = vadd.f32 %v2598, %v2810
    %v2812 = vpop.f32.mrb[0].mxu0
    %2813 = vmatprep.mubr.f32.mxu0 0.0
    %v2814 = vand.u32 %v2429, 4294901760
    %2815 = vmatmul.mubr.f32.gmra.mrb[0].mxu0 %v2814
    %v2816 = vpop.f32.mrb[0].mxu0
    %v2817 = vadd.f32 %v2608, %v2816
    %v2818 = vpop.f32.mrb[0].mxu0
    %2819 = vmatprep.mubr.f32.mxu0 0.0
    %v2820 = vand.u32 %v2432, 4294901760
    %2821 = vmatmul.mubr.f32.gmra.mrb[0].mxu0 %v2820
    %v2822 = vpop.f32.mrb[0].mxu0
    %v2823 = vadd.f32 %v2618, %v2822
    %v2824 = vpop.f32.mrb[0].mxu0
    %2825 = vmatprep.mubr.f32.mxu0 0.0
    %v2826 = vand.u32 %v2435, 4294901760
    %2827 = vmatmul.mubr.f32.gmra.mrb[0].mxu0 %v2826
    %v2828 = vpop.f32.mrb[0].mxu0
    %v2829 = vadd.f32 %v2628, %v2828
    %v2830 = vpop.f32.mrb[0].mxu0
    %2831 = vmatprep.mubr.f32.mxu0 0.0
    %v2832 = vand.u32 %v2438, 4294901760
    %2833 = vmatmul.mubr.f32.gmra.mrb[0].mxu0 %v2832
    %v2834 = vpop.f32.mrb[0].mxu0
    %v2835 = vadd.f32 %v2638, %v2834
    %v2836 = vpop.f32.mrb[0].mxu0
    %2837 = vmatprep.mubr.f32.mxu0 0.0
    %v2838 = vand.u32 %v2441, 4294901760
    %2839 = vmatmul.mubr.f32.gmra.mrb[0].mxu0 %v2838
    %v2840 = vpop.f32.mrb[0].mxu0
    %v2841 = vadd.f32 %v2648, %v2840
    %v2842 = vpop.f32.mrb[0].mxu0
    %2843 = vmatprep.mubr.f32.mxu0 0.0
    %v2844 = vand.u32 %v2444, 4294901760
    %2845 = vmatmul.mubr.f32.gmra.mrb[0].mxu0 %v2844
    %v2846 = vpop.f32.mrb[0].mxu0
    %v2847 = vadd.f32 %v2658, %v2846
    %v2848 = vpop.f32.mrb[0].mxu0
    %2849 = vmatprep.mubr.f32.mxu0 0.0
    %v2850 = vand.u32 %v2447, 4294901760
    %2851 = vmatmul.mubr.f32.gmra.mrb[0].mxu0 %v2850
    %v2852 = vpop.f32.mrb[0].mxu0
    %v2853 = vadd.f32 %v2668, %v2852
    %v2854 = vpop.f32.mrb[0].mxu0
    %2855 = vmatprep.mubr.f32.mxu0 0.0
    %v2856 = vand.u32 %v2450, 4294901760
    %2857 = vmatmul.mubr.f32.gmra.mrb[0].mxu0 %v2856
    %v2858 = vpop.f32.mrb[0].mxu0
    %v2859 = vadd.f32 %v2678, %v2858
    %v2860 = vpop.f32.mrb[0].mxu0
    %2861 = vdwg.mxu0
    %2862 = vmatprep.subr.mxu0 0.0
    %v2863 = vand.u32 %v2392, 4294901760
    %v2864 = vsub.f32 %v2392, %v2863
    %2865 = vmatpush1.msra.mxu0 %v2864
    %2866 = vmatprep.subr.mxu0 0.0
    %v2867 = vand.u32 %v2393, 4294901760
    %v2868 = vsub.f32 %v2393, %v2867
    %2869 = vmatpush1.msra.mxu0 %v2868
    %2870 = vmatprep.subr.mxu0 0.0
    %v2871 = vand.u32 %v2394, 4294901760
    %v2872 = vsub.f32 %v2394, %v2871
    %2873 = vmatpush1.msra.mxu0 %v2872
    %2874 = vmatprep.subr.mxu0 0.0
    %v2875 = vand.u32 %v2395, 4294901760
    %v2876 = vsub.f32 %v2395, %v2875
    %2877 = vmatpush1.msra.mxu0 %v2876
    %2878 = vmatprep.subr.mxu0 0.0
    %2879 = vmatpush1.msra.mxu0 0.0
    %2880 = vmatprep.subr.mxu0 0.0
    %2881 = vmatpush1.msra.mxu0 0.0
    %2882 = vmatprep.subr.mxu0 0.0
    %2883 = vmatpush1.msra.mxu0 0.0
    %2884 = vmatprep.subr.mxu0 0.0
    %2885 = vmatpush1.msra.mxu0 0.0
    %2886 = vmatprep.subr.mxu0 0.0
    %2887 = vmatpush1.msra.mxu0 0.0
    %2888 = vmatprep.subr.mxu0 0.0
    %2889 = vmatpush1.msra.mxu0 0.0
    %2890 = vmatprep.subr.mxu0 0.0
    %2891 = vmatpush1.msra.mxu0 0.0
    %2892 = vmatprep.subr.mxu0 0.0
    %2893 = vmatpush1.msra.mxu0 0.0
    %2894 = vmatprep.subr.mxu0 0.0
    %2895 = vmatpush1.msra.mxu0 0.0
    %2896 = vmatprep.subr.mxu0 0.0
    %2897 = vmatpush1.msra.mxu0 0.0
    %2898 = vmatprep.subr.mxu0 0.0
    %2899 = vmatpush1.msra.mxu0 0.0
    %2900 = vmatprep.subr.mxu0 0.0
    %2901 = vmatpush1.msra.mxu0 0.0
    %2902 = vmatprep.subr.mxu0 0.0
    %2903 = vmatpush1.msra.mxu0 0.0
    %2904 = vmatprep.subr.mxu0 0.0
    %2905 = vmatpush1.msra.mxu0 0.0
    %2906 = vmatprep.subr.mxu0 0.0
    %2907 = vmatpush1.msra.mxu0 0.0
    %2908 = vmatprep.subr.mxu0 0.0
    %2909 = vmatpush1.msra.mxu0 0.0
    %2910 = vmatprep.subr.mxu0 0.0
    %2911 = vmatpush1.msra.mxu0 0.0
    %2912 = vmatprep.subr.mxu0 0.0
    %2913 = vmatpush1.msra.mxu0 0.0
    %2914 = vmatprep.subr.mxu0 0.0
    %2915 = vmatpush1.msra.mxu0 0.0
    %2916 = vmatprep.subr.mxu0 0.0
    %2917 = vmatpush1.msra.mxu0 0.0
    %2918 = vmatprep.subr.mxu0 0.0
    %2919 = vmatpush1.msra.mxu0 0.0
    %2920 = vmatprep.subr.mxu0 0.0
    %2921 = vmatpush1.msra.mxu0 0.0
    %2922 = vmatprep.subr.mxu0 0.0
    %2923 = vmatpush1.msra.mxu0 0.0
    %2924 = vmatprep.subr.mxu0 0.0
    %2925 = vmatpush1.msra.mxu0 0.0
    %2926 = vmatprep.subr.mxu0 0.0
    %2927 = vmatpush1.msra.mxu0 0.0
    %2928 = vmatprep.subr.mxu0 0.0
    %2929 = vmatpush1.msra.mxu0 0.0
    %2930 = vmatprep.subr.mxu0 0.0
    %2931 = vmatpush1.msra.mxu0 0.0
    %2932 = vmatprep.subr.mxu0 0.0
    %2933 = vmatpush1.msra.mxu0 0.0
    %2934 = vmatprep.mubr.f32.mxu0 0.0
    %v2935 = vand.u32 %v2405, 4294901760
    %v2936 = vsub.f32 %v2405, %v2935
    %2937 = vmatmul.mubr.f32.gmra.mrb[0].mxu0 %v2936
    %v2938 = vpop.f32.mrb[0].mxu0
    %v2939 = vadd.f32 %v2769, %v2938
    %v2940 = vpop.f32.mrb[0].mxu0
    %2941 = vmatprep.mubr.f32.mxu0 0.0
    %v2942 = vand.u32 %v2408, 4294901760
    %v2943 = vsub.f32 %v2408, %v2942
    %2944 = vmatmul.mubr.f32.gmra.mrb[0].mxu0 %v2943
    %v2945 = vpop.f32.mrb[0].mxu0
    %v2946 = vadd.f32 %v2775, %v2945
    %v2947 = vpop.f32.mrb[0].mxu0
    %2948 = vmatprep.mubr.f32.mxu0 0.0
    %v2949 = vand.u32 %v2411, 4294901760
    %v2950 = vsub.f32 %v2411, %v2949
    %2951 = vmatmul.mubr.f32.gmra.mrb[0].mxu0 %v2950
    %v2952 = vpop.f32.mrb[0].mxu0
    %v2953 = vadd.f32 %v2781, %v2952
    %v2954 = vpop.f32.mrb[0].mxu0
    %2955 = vmatprep.mubr.f32.mxu0 0.0
    %v2956 = vand.u32 %v2414, 4294901760
    %v2957 = vsub.f32 %v2414, %v2956
    %2958 = vmatmul.mubr.f32.gmra.mrb[0].mxu0 %v2957
    %v2959 = vpop.f32.mrb[0].mxu0
    %v2960 = vadd.f32 %v2787, %v2959
    %v2961 = vpop.f32.mrb[0].mxu0
    %2962 = vmatprep.mubr.f32.mxu0 0.0
    %v2963 = vand.u32 %v2417, 4294901760
    %v2964 = vsub.f32 %v2417, %v2963
    %2965 = vmatmul.mubr.f32.gmra.mrb[0].mxu0 %v2964
    %v2966 = vpop.f32.mrb[0].mxu0
    %v2967 = vadd.f32 %v2793, %v2966
    %v2968 = vpop.f32.mrb[0].mxu0
    %2969 = vmatprep.mubr.f32.mxu0 0.0
    %v2970 = vand.u32 %v2420, 4294901760
    %v2971 = vsub.f32 %v2420, %v2970
    %2972 = vmatmul.mubr.f32.gmra.mrb[0].mxu0 %v2971
    %v2973 = vpop.f32.mrb[0].mxu0
    %v2974 = vadd.f32 %v2799, %v2973
    %v2975 = vpop.f32.mrb[0].mxu0
    %2976 = vmatprep.mubr.f32.mxu0 0.0
    %v2977 = vand.u32 %v2423, 4294901760
    %v2978 = vsub.f32 %v2423, %v2977
    %2979 = vmatmul.mubr.f32.gmra.mrb[0].mxu0 %v2978
    %v2980 = vpop.f32.mrb[0].mxu0
    %v2981 = vadd.f32 %v2805, %v2980
    %v2982 = vpop.f32.mrb[0].mxu0
    %2983 = vmatprep.mubr.f32.mxu0 0.0
    %v2984 = vand.u32 %v2426, 4294901760
    %v2985 = vsub.f32 %v2426, %v2984
    %2986 = vmatmul.mubr.f32.gmra.mrb[0].mxu0 %v2985
    %v2987 = vpop.f32.mrb[0].mxu0
    %v2988 = vadd.f32 %v2811, %v2987
    %v2989 = vpop.f32.mrb[0].mxu0
    %2990 = vmatprep.mubr.f32.mxu0 0.0
    %v2991 = vand.u32 %v2429, 4294901760
    %v2992 = vsub.f32 %v2429, %v2991
    %2993 = vmatmul.mubr.f32.gmra.mrb[0].mxu0 %v2992
    %v2994 = vpop.f32.mrb[0].mxu0
    %v2995 = vadd.f32 %v2817, %v2994
    %v2996 = vpop.f32.mrb[0].mxu0
    %2997 = vmatprep.mubr.f32.mxu0 0.0
    %v2998 = vand.u32 %v2432, 4294901760
    %v2999 = vsub.f32 %v2432, %v2998
    %3000 = vmatmul.mubr.f32.gmra.mrb[0].mxu0 %v2999
    %v3001 = vpop.f32.mrb[0].mxu0
    %v3002 = vadd.f32 %v2823, %v3001
    %v3003 = vpop.f32.mrb[0].mxu0
    %3004 = vmatprep.mubr.f32.mxu0 0.0
    %v3005 = vand.u32 %v2435, 4294901760
    %v3006 = vsub.f32 %v2435, %v3005
    %3007 = vmatmul.mubr.f32.gmra.mrb[0].mxu0 %v3006
    %v3008 = vpop.f32.mrb[0].mxu0
    %v3009 = vadd.f32 %v2829, %v3008
    %v3010 = vpop.f32.mrb[0].mxu0
    %3011 = vmatprep.mubr.f32.mxu0 0.0
    %v3012 = vand.u32 %v2438, 4294901760
    %v3013 = vsub.f32 %v2438, %v3012
    %3014 = vmatmul.mubr.f32.gmra.mrb[0].mxu0 %v3013
    %v3015 = vpop.f32.mrb[0].mxu0
    %v3016 = vadd.f32 %v2835, %v3015
    %v3017 = vpop.f32.mrb[0].mxu0
    %3018 = vmatprep.mubr.f32.mxu0 0.0
    %v3019 = vand.u32 %v2441, 4294901760
    %v3020 = vsub.f32 %v2441, %v3019
    %3021 = vmatmul.mubr.f32.gmra.mrb[0].mxu0 %v3020
    %v3022 = vpop.f32.mrb[0].mxu0
    %v3023 = vadd.f32 %v2841, %v3022
    %v3024 = vpop.f32.mrb[0].mxu0
    %3025 = vmatprep.mubr.f32.mxu0 0.0
    %v3026 = vand.u32 %v2444, 4294901760
    %v3027 = vsub.f32 %v2444, %v3026
    %3028 = vmatmul.mubr.f32.gmra.mrb[0].mxu0 %v3027
    %v3029 = vpop.f32.mrb[0].mxu0
    %v3030 = vadd.f32 %v2847, %v3029
    %v3031 = vpop.f32.mrb[0].mxu0
    %3032 = vmatprep.mubr.f32.mxu0 0.0
    %v3033 = vand.u32 %v2447, 4294901760
    %v3034 = vsub.f32 %v2447, %v3033
    %3035 = vmatmul.mubr.f32.gmra.mrb[0].mxu0 %v3034
    %v3036 = vpop.f32.mrb[0].mxu0
    %v3037 = vadd.f32 %v2853, %v3036
    %v3038 = vpop.f32.mrb[0].mxu0
    %3039 = vmatprep.mubr.f32.mxu0 0.0
    %v3040 = vand.u32 %v2450, 4294901760
    %v3041 = vsub.f32 %v2450, %v3040
    %3042 = vmatmul.mubr.f32.gmra.mrb[0].mxu0 %v3041
    %v3043 = vpop.f32.mrb[0].mxu0
    %v3044 = vadd.f32 %v2859, %v3043
    %v3045 = vpop.f32.mrb[0].mxu0
    %3046 = vdwg.mxu0
    %3047 = vmatprep.subr.mxu0 0.0
    %v3048 = vand.u32 %v2392, 4294901760
    %3049 = vmatpush1.msra.mxu0 %v3048
    %3050 = vmatprep.subr.mxu0 0.0
    %v3051 = vand.u32 %v2393, 4294901760
    %3052 = vmatpush1.msra.mxu0 %v3051
    %3053 = vmatprep.subr.mxu0 0.0
    %v3054 = vand.u32 %v2394, 4294901760
    %3055 = vmatpush1.msra.mxu0 %v3054
    %3056 = vmatprep.subr.mxu0 0.0
    %v3057 = vand.u32 %v2395, 4294901760
    %3058 = vmatpush1.msra.mxu0 %v3057
    %3059 = vmatprep.subr.mxu0 0.0
    %3060 = vmatpush1.msra.mxu0 0.0
    %3061 = vmatprep.subr.mxu0 0.0
    %3062 = vmatpush1.msra.mxu0 0.0
    %3063 = vmatprep.subr.mxu0 0.0
    %3064 = vmatpush1.msra.mxu0 0.0
    %3065 = vmatprep.subr.mxu0 0.0
    %3066 = vmatpush1.msra.mxu0 0.0
    %3067 = vmatprep.subr.mxu0 0.0
    %3068 = vmatpush1.msra.mxu0 0.0
    %3069 = vmatprep.subr.mxu0 0.0
    %3070 = vmatpush1.msra.mxu0 0.0
    %3071 = vmatprep.subr.mxu0 0.0
    %3072 = vmatpush1.msra.mxu0 0.0
    %3073 = vmatprep.subr.mxu0 0.0
    %3074 = vmatpush1.msra.mxu0 0.0
    %3075 = vmatprep.subr.mxu0 0.0
    %3076 = vmatpush1.msra.mxu0 0.0
    %3077 = vmatprep.subr.mxu0 0.0
    %3078 = vmatpush1.msra.mxu0 0.0
    %3079 = vmatprep.subr.mxu0 0.0
    %3080 = vmatpush1.msra.mxu0 0.0
    %3081 = vmatprep.subr.mxu0 0.0
    %3082 = vmatpush1.msra.mxu0 0.0
    %3083 = vmatprep.subr.mxu0 0.0
    %3084 = vmatpush1.msra.mxu0 0.0
    %3085 = vmatprep.subr.mxu0 0.0
    %3086 = vmatpush1.msra.mxu0 0.0
    %3087 = vmatprep.subr.mxu0 0.0
    %3088 = vmatpush1.msra.mxu0 0.0
    %3089 = vmatprep.subr.mxu0 0.0
    %3090 = vmatpush1.msra.mxu0 0.0
    %3091 = vmatprep.subr.mxu0 0.0
    %3092 = vmatpush1.msra.mxu0 0.0
    %3093 = vmatprep.subr.mxu0 0.0
    %3094 = vmatpush1.msra.mxu0 0.0
    %3095 = vmatprep.subr.mxu0 0.0
    %3096 = vmatpush1.msra.mxu0 0.0
    %3097 = vmatprep.subr.mxu0 0.0
    %3098 = vmatpush1.msra.mxu0 0.0
    %3099 = vmatprep.subr.mxu0 0.0
    %3100 = vmatpush1.msra.mxu0 0.0
    %3101 = vmatprep.subr.mxu0 0.0
    %3102 = vmatpush1.msra.mxu0 0.0
    %3103 = vmatprep.subr.mxu0 0.0
    %3104 = vmatpush1.msra.mxu0 0.0
    %3105 = vmatprep.subr.mxu0 0.0
    %3106 = vmatpush1.msra.mxu0 0.0
    %3107 = vmatprep.subr.mxu0 0.0
    %3108 = vmatpush1.msra.mxu0 0.0
    %3109 = vmatprep.subr.mxu0 0.0
    %3110 = vmatpush1.msra.mxu0 0.0
    %3111 = vmatprep.subr.mxu0 0.0
    %3112 = vmatpush1.msra.mxu0 0.0
    %3113 = vmatprep.subr.mxu0 0.0
    %3114 = vmatpush1.msra.mxu0 0.0
    %3115 = vmatprep.mubr.f32.mxu0 0.0
    %v3116 = vand.u32 %v2405, 4294901760
    %v3117 = vsub.f32 %v2405, %v3116
    %v3118 = vand.u32 %v3117, 4294901760
    %3119 = vmatmul.mubr.f32.gmra.mrb[0].mxu0 %v3118
    %v3120 = vpop.f32.mrb[0].mxu0
    %v3121 = vadd.f32 %v2939, %v3120
    %v3122 = vpop.f32.mrb[0].mxu0
    %3123 = vmatprep.mubr.f32.mxu0 0.0
    %v3124 = vand.u32 %v2408, 4294901760
    %v3125 = vsub.f32 %v2408, %v3124
    %v3126 = vand.u32 %v3125, 4294901760
    %3127 = vmatmul.mubr.f32.gmra.mrb[0].mxu0 %v3126
    %v3128 = vpop.f32.mrb[0].mxu0
    %v3129 = vadd.f32 %v2946, %v3128
    %v3130 = vpop.f32.mrb[0].mxu0
    %3131 = vmatprep.mubr.f32.mxu0 0.0
    %v3132 = vand.u32 %v2411, 4294901760
    %v3133 = vsub.f32 %v2411, %v3132
    %v3134 = vand.u32 %v3133, 4294901760
    %3135 = vmatmul.mubr.f32.gmra.mrb[0].mxu0 %v3134
    %v3136 = vpop.f32.mrb[0].mxu0
    %v3137 = vadd.f32 %v2953, %v3136
    %v3138 = vpop.f32.mrb[0].mxu0
    %3139 = vmatprep.mubr.f32.mxu0 0.0
    %v3140 = vand.u32 %v2414, 4294901760
    %v3141 = vsub.f32 %v2414, %v3140
    %v3142 = vand.u32 %v3141, 4294901760
    %3143 = vmatmul.mubr.f32.gmra.mrb[0].mxu0 %v3142
    %v3144 = vpop.f32.mrb[0].mxu0
    %v3145 = vadd.f32 %v2960, %v3144
    %v3146 = vpop.f32.mrb[0].mxu0
    %3147 = vmatprep.mubr.f32.mxu0 0.0
    %v3148 = vand.u32 %v2417, 4294901760
    %v3149 = vsub.f32 %v2417, %v3148
    %v3150 = vand.u32 %v3149, 4294901760
    %3151 = vmatmul.mubr.f32.gmra.mrb[0].mxu0 %v3150
    %v3152 = vpop.f32.mrb[0].mxu0
    %v3153 = vadd.f32 %v2967, %v3152
    %v3154 = vpop.f32.mrb[0].mxu0
    %3155 = vmatprep.mubr.f32.mxu0 0.0
    %v3156 = vand.u32 %v2420, 4294901760
    %v3157 = vsub.f32 %v2420, %v3156
    %v3158 = vand.u32 %v3157, 4294901760
    %3159 = vmatmul.mubr.f32.gmra.mrb[0].mxu0 %v3158
    %v3160 = vpop.f32.mrb[0].mxu0
    %v3161 = vadd.f32 %v2974, %v3160
    %v3162 = vpop.f32.mrb[0].mxu0
    %3163 = vmatprep.mubr.f32.mxu0 0.0
    %v3164 = vand.u32 %v2423, 4294901760
    %v3165 = vsub.f32 %v2423, %v3164
    %v3166 = vand.u32 %v3165, 4294901760
    %3167 = vmatmul.mubr.f32.gmra.mrb[0].mxu0 %v3166
    %v3168 = vpop.f32.mrb[0].mxu0
    %v3169 = vadd.f32 %v2981, %v3168
    %v3170 = vpop.f32.mrb[0].mxu0
    %3171 = vmatprep.mubr.f32.mxu0 0.0
    %v3172 = vand.u32 %v2426, 4294901760
    %v3173 = vsub.f32 %v2426, %v3172
    %v3174 = vand.u32 %v3173, 4294901760
    %3175 = vmatmul.mubr.f32.gmra.mrb[0].mxu0 %v3174
    %v3176 = vpop.f32.mrb[0].mxu0
    %v3177 = vadd.f32 %v2988, %v3176
    %v3178 = vpop.f32.mrb[0].mxu0
    %3179 = vmatprep.mubr.f32.mxu0 0.0
    %v3180 = vand.u32 %v2429, 4294901760
    %v3181 = vsub.f32 %v2429, %v3180
    %v3182 = vand.u32 %v3181, 4294901760
    %3183 = vmatmul.mubr.f32.gmra.mrb[0].mxu0 %v3182
    %v3184 = vpop.f32.mrb[0].mxu0
    %v3185 = vadd.f32 %v2995, %v3184
    %v3186 = vpop.f32.mrb[0].mxu0
    %3187 = vmatprep.mubr.f32.mxu0 0.0
    %v3188 = vand.u32 %v2432, 4294901760
    %v3189 = vsub.f32 %v2432, %v3188
    %v3190 = vand.u32 %v3189, 4294901760
    %3191 = vmatmul.mubr.f32.gmra.mrb[0].mxu0 %v3190
    %v3192 = vpop.f32.mrb[0].mxu0
    %v3193 = vadd.f32 %v3002, %v3192
    %v3194 = vpop.f32.mrb[0].mxu0
    %3195 = vmatprep.mubr.f32.mxu0 0.0
    %v3196 = vand.u32 %v2435, 4294901760
    %v3197 = vsub.f32 %v2435, %v3196
    %v3198 = vand.u32 %v3197, 4294901760
    %3199 = vmatmul.mubr.f32.gmra.mrb[0].mxu0 %v3198
    %v3200 = vpop.f32.mrb[0].mxu0
    %v3201 = vadd.f32 %v3009, %v3200
    %v3202 = vpop.f32.mrb[0].mxu0
    %3203 = vmatprep.mubr.f32.mxu0 0.0
    %v3204 = vand.u32 %v2438, 4294901760
    %v3205 = vsub.f32 %v2438, %v3204
    %v3206 = vand.u32 %v3205, 4294901760
    %3207 = vmatmul.mubr.f32.gmra.mrb[0].mxu0 %v3206
    %v3208 = vpop.f32.mrb[0].mxu0
    %v3209 = vadd.f32 %v3016, %v3208
    %v3210 = vpop.f32.mrb[0].mxu0
    %3211 = vmatprep.mubr.f32.mxu0 0.0
    %v3212 = vand.u32 %v2441, 4294901760
    %v3213 = vsub.f32 %v2441, %v3212
    %v3214 = vand.u32 %v3213, 4294901760
    %3215 = vmatmul.mubr.f32.gmra.mrb[0].mxu0 %v3214
    %v3216 = vpop.f32.mrb[0].mxu0
    %v3217 = vadd.f32 %v3023, %v3216
    %v3218 = vpop.f32.mrb[0].mxu0
    %3219 = vmatprep.mubr.f32.mxu0 0.0
    %v3220 = vand.u32 %v2444, 4294901760
    %v3221 = vsub.f32 %v2444, %v3220
    %v3222 = vand.u32 %v3221, 4294901760
    %3223 = vmatmul.mubr.f32.gmra.mrb[0].mxu0 %v3222
    %v3224 = vpop.f32.mrb[0].mxu0
    %v3225 = vadd.f32 %v3030, %v3224
    %v3226 = vpop.f32.mrb[0].mxu0
    %3227 = vmatprep.mubr.f32.mxu0 0.0
    %v3228 = vand.u32 %v2447, 4294901760
    %v3229 = vsub.f32 %v2447, %v3228
    %v3230 = vand.u32 %v3229, 4294901760
    %3231 = vmatmul.mubr.f32.gmra.mrb[0].mxu0 %v3230
    %v3232 = vpop.f32.mrb[0].mxu0
    %v3233 = vadd.f32 %v3037, %v3232
    %v3234 = vpop.f32.mrb[0].mxu0
    %3235 = vmatprep.mubr.f32.mxu0 0.0
    %v3236 = vand.u32 %v2450, 4294901760
    %v3237 = vsub.f32 %v2450, %v3236
    %v3238 = vand.u32 %v3237, 4294901760
    %3239 = vmatmul.mubr.f32.gmra.mrb[0].mxu0 %v3238
    %v3240 = vpop.f32.mrb[0].mxu0
    %v3241 = vadd.f32 %v3044, %v3240
    %v3242 = vpop.f32.mrb[0].mxu0
    %3243 = vdwg.mxu0
    %3244 = vmatprep.subr.mxu0 0.0
    %v3245 = vand.u32 %v2392, 4294901760
    %v3246 = vsub.f32 %v2392, %v3245
    %v3247 = vand.u32 %v3246, 4294901760
    %3248 = vmatpush1.msra.mxu0 %v3247
    %3249 = vmatprep.subr.mxu0 0.0
    %v3250 = vand.u32 %v2393, 4294901760
    %v3251 = vsub.f32 %v2393, %v3250
    %v3252 = vand.u32 %v3251, 4294901760
    %3253 = vmatpush1.msra.mxu0 %v3252
    %3254 = vmatprep.subr.mxu0 0.0
    %v3255 = vand.u32 %v2394, 4294901760
    %v3256 = vsub.f32 %v2394, %v3255
    %v3257 = vand.u32 %v3256, 4294901760
    %3258 = vmatpush1.msra.mxu0 %v3257
    %3259 = vmatprep.subr.mxu0 0.0
    %v3260 = vand.u32 %v2395, 4294901760
    %v3261 = vsub.f32 %v2395, %v3260
    %v3262 = vand.u32 %v3261, 4294901760
    %3263 = vmatpush1.msra.mxu0 %v3262
    %3264 = vmatprep.subr.mxu0 0.0
    %3265 = vmatpush1.msra.mxu0 0.0
    %3266 = vmatprep.subr.mxu0 0.0
    %3267 = vmatpush1.msra.mxu0 0.0
    %3268 = vmatprep.subr.mxu0 0.0
    %3269 = vmatpush1.msra.mxu0 0.0
    %3270 = vmatprep.subr.mxu0 0.0
    %3271 = vmatpush1.msra.mxu0 0.0
    %3272 = vmatprep.subr.mxu0 0.0
    %3273 = vmatpush1.msra.mxu0 0.0
    %3274 = vmatprep.subr.mxu0 0.0
    %3275 = vmatpush1.msra.mxu0 0.0
    %3276 = vmatprep.subr.mxu0 0.0
    %3277 = vmatpush1.msra.mxu0 0.0
    %3278 = vmatprep.subr.mxu0 0.0
    %3279 = vmatpush1.msra.mxu0 0.0
    %3280 = vmatprep.subr.mxu0 0.0
    %3281 = vmatpush1.msra.mxu0 0.0
    %3282 = vmatprep.subr.mxu0 0.0
    %3283 = vmatpush1.msra.mxu0 0.0
    %3284 = vmatprep.subr.mxu0 0.0
    %3285 = vmatpush1.msra.mxu0 0.0
    %3286 = vmatprep.subr.mxu0 0.0
    %3287 = vmatpush1.msra.mxu0 0.0
    %3288 = vmatprep.subr.mxu0 0.0
    %3289 = vmatpush1.msra.mxu0 0.0
    %3290 = vmatprep.subr.mxu0 0.0
    %3291 = vmatpush1.msra.mxu0 0.0
    %3292 = vmatprep.subr.mxu0 0.0
    %3293 = vmatpush1.msra.mxu0 0.0
    %3294 = vmatprep.subr.mxu0 0.0
    %3295 = vmatpush1.msra.mxu0 0.0
    %3296 = vmatprep.subr.mxu0 0.0
    %3297 = vmatpush1.msra.mxu0 0.0
    %3298 = vmatprep.subr.mxu0 0.0
    %3299 = vmatpush1.msra.mxu0 0.0
    %3300 = vmatprep.subr.mxu0 0.0
    %3301 = vmatpush1.msra.mxu0 0.0
    %3302 = vmatprep.subr.mxu0 0.0
    %3303 = vmatpush1.msra.mxu0 0.0
    %3304 = vmatprep.subr.mxu0 0.0
    %3305 = vmatpush1.msra.mxu0 0.0
    %3306 = vmatprep.subr.mxu0 0.0
    %3307 = vmatpush1.msra.mxu0 0.0
    %3308 = vmatprep.subr.mxu0 0.0
    %3309 = vmatpush1.msra.mxu0 0.0
    %3310 = vmatprep.subr.mxu0 0.0
    %3311 = vmatpush1.msra.mxu0 0.0
    %3312 = vmatprep.subr.mxu0 0.0
    %3313 = vmatpush1.msra.mxu0 0.0
    %3314 = vmatprep.subr.mxu0 0.0
    %3315 = vmatpush1.msra.mxu0 0.0
    %3316 = vmatprep.subr.mxu0 0.0
    %3317 = vmatpush1.msra.mxu0 0.0
    %3318 = vmatprep.subr.mxu0 0.0
    %3319 = vmatpush1.msra.mxu0 0.0
    %3320 = vmatprep.mubr.f32.mxu0 0.0
    %v3321 = vand.u32 %v2405, 4294901760
    %3322 = vmatmul.mubr.f32.gmra.mrb[0].mxu0 %v3321
    %v3323 = vpop.f32.mrb[0].mxu0
    %v3324 = vadd.f32 %v3121, %v3323
    %v3325 = vpop.f32.mrb[0].mxu0
    %3326 = vmatprep.mubr.f32.mxu0 0.0
    %v3327 = vand.u32 %v2408, 4294901760
    %3328 = vmatmul.mubr.f32.gmra.mrb[0].mxu0 %v3327
    %v3329 = vpop.f32.mrb[0].mxu0
    %v3330 = vadd.f32 %v3129, %v3329
    %v3331 = vpop.f32.mrb[0].mxu0
    %3332 = vmatprep.mubr.f32.mxu0 0.0
    %v3333 = vand.u32 %v2411, 4294901760
    %3334 = vmatmul.mubr.f32.gmra.mrb[0].mxu0 %v3333
    %v3335 = vpop.f32.mrb[0].mxu0
    %v3336 = vadd.f32 %v3137, %v3335
    %v3337 = vpop.f32.mrb[0].mxu0
    %3338 = vmatprep.mubr.f32.mxu0 0.0
    %v3339 = vand.u32 %v2414, 4294901760
    %3340 = vmatmul.mubr.f32.gmra.mrb[0].mxu0 %v3339
    %v3341 = vpop.f32.mrb[0].mxu0
    %v3342 = vadd.f32 %v3145, %v3341
    %v3343 = vpop.f32.mrb[0].mxu0
    %3344 = vmatprep.mubr.f32.mxu0 0.0
    %v3345 = vand.u32 %v2417, 4294901760
    %3346 = vmatmul.mubr.f32.gmra.mrb[0].mxu0 %v3345
    %v3347 = vpop.f32.mrb[0].mxu0
    %v3348 = vadd.f32 %v3153, %v3347
    %v3349 = vpop.f32.mrb[0].mxu0
    %3350 = vmatprep.mubr.f32.mxu0 0.0
    %v3351 = vand.u32 %v2420, 4294901760
    %3352 = vmatmul.mubr.f32.gmra.mrb[0].mxu0 %v3351
    %v3353 = vpop.f32.mrb[0].mxu0
    %v3354 = vadd.f32 %v3161, %v3353
    %v3355 = vpop.f32.mrb[0].mxu0
    %3356 = vmatprep.mubr.f32.mxu0 0.0
    %v3357 = vand.u32 %v2423, 4294901760
    %3358 = vmatmul.mubr.f32.gmra.mrb[0].mxu0 %v3357
    %v3359 = vpop.f32.mrb[0].mxu0
    %v3360 = vadd.f32 %v3169, %v3359
    %v3361 = vpop.f32.mrb[0].mxu0
    %3362 = vmatprep.mubr.f32.mxu0 0.0
    %v3363 = vand.u32 %v2426, 4294901760
    %3364 = vmatmul.mubr.f32.gmra.mrb[0].mxu0 %v3363
    %v3365 = vpop.f32.mrb[0].mxu0
    %v3366 = vadd.f32 %v3177, %v3365
    %v3367 = vpop.f32.mrb[0].mxu0
    %3368 = vmatprep.mubr.f32.mxu0 0.0
    %v3369 = vand.u32 %v2429, 4294901760
    %3370 = vmatmul.mubr.f32.gmra.mrb[0].mxu0 %v3369
    %v3371 = vpop.f32.mrb[0].mxu0
    %v3372 = vadd.f32 %v3185, %v3371
    %v3373 = vpop.f32.mrb[0].mxu0
    %3374 = vmatprep.mubr.f32.mxu0 0.0
    %v3375 = vand.u32 %v2432, 4294901760
    %3376 = vmatmul.mubr.f32.gmra.mrb[0].mxu0 %v3375
    %v3377 = vpop.f32.mrb[0].mxu0
    %v3378 = vadd.f32 %v3193, %v3377
    %v3379 = vpop.f32.mrb[0].mxu0
    %3380 = vmatprep.mubr.f32.mxu0 0.0
    %v3381 = vand.u32 %v2435, 4294901760
    %3382 = vmatmul.mubr.f32.gmra.mrb[0].mxu0 %v3381
    %v3383 = vpop.f32.mrb[0].mxu0
    %v3384 = vadd.f32 %v3201, %v3383
    %v3385 = vpop.f32.mrb[0].mxu0
    %3386 = vmatprep.mubr.f32.mxu0 0.0
    %v3387 = vand.u32 %v2438, 4294901760
    %3388 = vmatmul.mubr.f32.gmra.mrb[0].mxu0 %v3387
    %v3389 = vpop.f32.mrb[0].mxu0
    %v3390 = vadd.f32 %v3209, %v3389
    %v3391 = vpop.f32.mrb[0].mxu0
    %3392 = vmatprep.mubr.f32.mxu0 0.0
    %v3393 = vand.u32 %v2441, 4294901760
    %3394 = vmatmul.mubr.f32.gmra.mrb[0].mxu0 %v3393
    %v3395 = vpop.f32.mrb[0].mxu0
    %v3396 = vadd.f32 %v3217, %v3395
    %v3397 = vpop.f32.mrb[0].mxu0
    %3398 = vmatprep.mubr.f32.mxu0 0.0
    %v3399 = vand.u32 %v2444, 4294901760
    %3400 = vmatmul.mubr.f32.gmra.mrb[0].mxu0 %v3399
    %v3401 = vpop.f32.mrb[0].mxu0
    %v3402 = vadd.f32 %v3225, %v3401
    %v3403 = vpop.f32.mrb[0].mxu0
    %3404 = vmatprep.mubr.f32.mxu0 0.0
    %v3405 = vand.u32 %v2447, 4294901760
    %3406 = vmatmul.mubr.f32.gmra.mrb[0].mxu0 %v3405
    %v3407 = vpop.f32.mrb[0].mxu0
    %v3408 = vadd.f32 %v3233, %v3407
    %v3409 = vpop.f32.mrb[0].mxu0
    %3410 = vmatprep.mubr.f32.mxu0 0.0
    %v3411 = vand.u32 %v2450, 4294901760
    %3412 = vmatmul.mubr.f32.gmra.mrb[0].mxu0 %v3411
    %v3413 = vpop.f32.mrb[0].mxu0
    %v3414 = vadd.f32 %v3241, %v3413
    %v3415 = vpop.f32.mrb[0].mxu0
    %3416 = vdwg.mxu0
    %3417 = vmatprep.subr.mxu0 0.0
    %v3418 = vand.u32 %v2392, 4294901760
    %3419 = vmatpush1.msra.mxu0 %v3418
    %3420 = vmatprep.subr.mxu0 0.0
    %v3421 = vand.u32 %v2393, 4294901760
    %3422 = vmatpush1.msra.mxu0 %v3421
    %3423 = vmatprep.subr.mxu0 0.0
    %v3424 = vand.u32 %v2394, 4294901760
    %3425 = vmatpush1.msra.mxu0 %v3424
    %3426 = vmatprep.subr.mxu0 0.0
    %v3427 = vand.u32 %v2395, 4294901760
    %3428 = vmatpush1.msra.mxu0 %v3427
    %3429 = vmatprep.subr.mxu0 0.0
    %3430 = vmatpush1.msra.mxu0 0.0
    %3431 = vmatprep.subr.mxu0 0.0
    %3432 = vmatpush1.msra.mxu0 0.0
    %3433 = vmatprep.subr.mxu0 0.0
    %3434 = vmatpush1.msra.mxu0 0.0
    %3435 = vmatprep.subr.mxu0 0.0
    %3436 = vmatpush1.msra.mxu0 0.0
    %3437 = vmatprep.subr.mxu0 0.0
    %3438 = vmatpush1.msra.mxu0 0.0
    %3439 = vmatprep.subr.mxu0 0.0
    %3440 = vmatpush1.msra.mxu0 0.0
    %3441 = vmatprep.subr.mxu0 0.0
    %3442 = vmatpush1.msra.mxu0 0.0
    %3443 = vmatprep.subr.mxu0 0.0
    %3444 = vmatpush1.msra.mxu0 0.0
    %3445 = vmatprep.subr.mxu0 0.0
    %3446 = vmatpush1.msra.mxu0 0.0
    %3447 = vmatprep.subr.mxu0 0.0
    %3448 = vmatpush1.msra.mxu0 0.0
    %3449 = vmatprep.subr.mxu0 0.0
    %3450 = vmatpush1.msra.mxu0 0.0
    %3451 = vmatprep.subr.mxu0 0.0
    %3452 = vmatpush1.msra.mxu0 0.0
    %3453 = vmatprep.subr.mxu0 0.0
    %3454 = vmatpush1.msra.mxu0 0.0
    %3455 = vmatprep.subr.mxu0 0.0
    %3456 = vmatpush1.msra.mxu0 0.0
    %3457 = vmatprep.subr.mxu0 0.0
    %3458 = vmatpush1.msra.mxu0 0.0
    %3459 = vmatprep.subr.mxu0 0.0
    %3460 = vmatpush1.msra.mxu0 0.0
    %3461 = vmatprep.subr.mxu0 0.0
    %3462 = vmatpush1.msra.mxu0 0.0
    %3463 = vmatprep.subr.mxu0 0.0
    %3464 = vmatpush1.msra.mxu0 0.0
    %3465 = vmatprep.subr.mxu0 0.0
    %3466 = vmatpush1.msra.mxu0 0.0
    %3467 = vmatprep.subr.mxu0 0.0
    %3468 = vmatpush1.msra.mxu0 0.0
    %3469 = vmatprep.subr.mxu0 0.0
    %3470 = vmatpush1.msra.mxu0 0.0
    %3471 = vmatprep.subr.mxu0 0.0
    %3472 = vmatpush1.msra.mxu0 0.0
    %3473 = vmatprep.subr.mxu0 0.0
    %3474 = vmatpush1.msra.mxu0 0.0
    %3475 = vmatprep.subr.mxu0 0.0
    %3476 = vmatpush1.msra.mxu0 0.0
    %3477 = vmatprep.subr.mxu0 0.0
    %3478 = vmatpush1.msra.mxu0 0.0
    %3479 = vmatprep.subr.mxu0 0.0
    %3480 = vmatpush1.msra.mxu0 0.0
    %3481 = vmatprep.subr.mxu0 0.0
    %3482 = vmatpush1.msra.mxu0 0.0
    %3483 = vmatprep.subr.mxu0 0.0
    %3484 = vmatpush1.msra.mxu0 0.0
    %3485 = vmatprep.mubr.f32.mxu0 0.0
    %v3486 = vand.u32 %v2405, 4294901760
    %3487 = vmatmul.mubr.f32.gmra.mrb[0].mxu0 %v3486
    %v3488 = vpop.f32.mrb[0].mxu0
    %v3489 = vadd.f32 %v3324, %v3488
    %v3490 = vpop.f32.mrb[0].mxu0
    %3491 = vmatprep.mubr.f32.mxu0 0.0
    %v3492 = vand.u32 %v2408, 4294901760
    %3493 = vmatmul.mubr.f32.gmra.mrb[0].mxu0 %v3492
    %v3494 = vpop.f32.mrb[0].mxu0
    %v3495 = vadd.f32 %v3330, %v3494
    %v3496 = vpop.f32.mrb[0].mxu0
    %3497 = vmatprep.mubr.f32.mxu0 0.0
    %v3498 = vand.u32 %v2411, 4294901760
    %3499 = vmatmul.mubr.f32.gmra.mrb[0].mxu0 %v3498
    %v3500 = vpop.f32.mrb[0].mxu0
    %v3501 = vadd.f32 %v3336, %v3500
    %v3502 = vpop.f32.mrb[0].mxu0
    %3503 = vmatprep.mubr.f32.mxu0 0.0
    %v3504 = vand.u32 %v2414, 4294901760
    %3505 = vmatmul.mubr.f32.gmra.mrb[0].mxu0 %v3504
    %v3506 = vpop.f32.mrb[0].mxu0
    %v3507 = vadd.f32 %v3342, %v3506
    %v3508 = vpop.f32.mrb[0].mxu0
    %3509 = vmatprep.mubr.f32.mxu0 0.0
    %v3510 = vand.u32 %v2417, 4294901760
    %3511 = vmatmul.mubr.f32.gmra.mrb[0].mxu0 %v3510
    %v3512 = vpop.f32.mrb[0].mxu0
    %v3513 = vadd.f32 %v3348, %v3512
    %v3514 = vpop.f32.mrb[0].mxu0
    %3515 = vmatprep.mubr.f32.mxu0 0.0
    %v3516 = vand.u32 %v2420, 4294901760
    %3517 = vmatmul.mubr.f32.gmra.mrb[0].mxu0 %v3516
    %v3518 = vpop.f32.mrb[0].mxu0
    %v3519 = vadd.f32 %v3354, %v3518
    %v3520 = vpop.f32.mrb[0].mxu0
    %3521 = vmatprep.mubr.f32.mxu0 0.0
    %v3522 = vand.u32 %v2423, 4294901760
    %3523 = vmatmul.mubr.f32.gmra.mrb[0].mxu0 %v3522
    %v3524 = vpop.f32.mrb[0].mxu0
    %v3525 = vadd.f32 %v3360, %v3524
    %v3526 = vpop.f32.mrb[0].mxu0
    %3527 = vmatprep.mubr.f32.mxu0 0.0
    %v3528 = vand.u32 %v2426, 4294901760
    %3529 = vmatmul.mubr.f32.gmra.mrb[0].mxu0 %v3528
    %v3530 = vpop.f32.mrb[0].mxu0
    %v3531 = vadd.f32 %v3366, %v3530
    %v3532 = vpop.f32.mrb[0].mxu0
    %3533 = vmatprep.mubr.f32.mxu0 0.0
    %v3534 = vand.u32 %v2429, 4294901760
    %3535 = vmatmul.mubr.f32.gmra.mrb[0].mxu0 %v3534
    %v3536 = vpop.f32.mrb[0].mxu0
    %v3537 = vadd.f32 %v3372, %v3536
    %v3538 = vpop.f32.mrb[0].mxu0
    %3539 = vmatprep.mubr.f32.mxu0 0.0
    %v3540 = vand.u32 %v2432, 4294901760
    %3541 = vmatmul.mubr.f32.gmra.mrb[0].mxu0 %v3540
    %v3542 = vpop.f32.mrb[0].mxu0
    %v3543 = vadd.f32 %v3378, %v3542
    %v3544 = vpop.f32.mrb[0].mxu0
    %3545 = vmatprep.mubr.f32.mxu0 0.0
    %v3546 = vand.u32 %v2435, 4294901760
    %3547 = vmatmul.mubr.f32.gmra.mrb[0].mxu0 %v3546
    %v3548 = vpop.f32.mrb[0].mxu0
    %v3549 = vadd.f32 %v3384, %v3548
    %v3550 = vpop.f32.mrb[0].mxu0
    %3551 = vmatprep.mubr.f32.mxu0 0.0
    %v3552 = vand.u32 %v2438, 4294901760
    %3553 = vmatmul.mubr.f32.gmra.mrb[0].mxu0 %v3552
    %v3554 = vpop.f32.mrb[0].mxu0
    %v3555 = vadd.f32 %v3390, %v3554
    %v3556 = vpop.f32.mrb[0].mxu0
    %3557 = vmatprep.mubr.f32.mxu0 0.0
    %v3558 = vand.u32 %v2441, 4294901760
    %3559 = vmatmul.mubr.f32.gmra.mrb[0].mxu0 %v3558
    %v3560 = vpop.f32.mrb[0].mxu0
    %v3561 = vadd.f32 %v3396, %v3560
    %v3562 = vpop.f32.mrb[0].mxu0
    %3563 = vmatprep.mubr.f32.mxu0 0.0
    %v3564 = vand.u32 %v2444, 4294901760
    %3565 = vmatmul.mubr.f32.gmra.mrb[0].mxu0 %v3564
    %v3566 = vpop.f32.mrb[0].mxu0
    %v3567 = vadd.f32 %v3402, %v3566
    %v3568 = vpop.f32.mrb[0].mxu0
    %3569 = vmatprep.mubr.f32.mxu0 0.0
    %v3570 = vand.u32 %v2447, 4294901760
    %3571 = vmatmul.mubr.f32.gmra.mrb[0].mxu0 %v3570
    %v3572 = vpop.f32.mrb[0].mxu0
    %v3573 = vadd.f32 %v3408, %v3572
    %v3574 = vpop.f32.mrb[0].mxu0
    %3575 = vmatprep.mubr.f32.mxu0 0.0
    %v3576 = vand.u32 %v2450, 4294901760
    %3577 = vmatmul.mubr.f32.gmra.mrb[0].mxu0 %v3576
    %v3578 = vpop.f32.mrb[0].mxu0
    %v3579 = vadd.f32 %v3414, %v3578
    %v3580 = vpop.f32.mrb[0].mxu0
    %3581 = vdwg.mxu0
    %v3582 = vmax.f32 %v3489, 0.0
    %v3583 = vmax.f32 %v3495, 0.0
    %v3584 = vmax.f32 %v3501, 0.0
    %v3585 = vmax.f32 %v3507, 0.0
    %v3586 = vmax.f32 %v3513, 0.0
    %v3587 = vmax.f32 %v3519, 0.0
    %v3588 = vmax.f32 %v3525, 0.0
    %v3589 = vmax.f32 %v3531, 0.0
    %v3590 = vmax.f32 %v3537, 0.0
    %v3591 = vmax.f32 %v3543, 0.0
    %v3592 = vmax.f32 %v3549, 0.0
    %v3593 = vmax.f32 %v3555, 0.0
    %v3594 = vmax.f32 %v3561, 0.0
    %v3595 = vmax.f32 %v3567, 0.0
    %v3596 = vmax.f32 %v3573, 0.0
    %v3597 = vmax.f32 %v3579, 0.0
    %v3598 = vld [vmem:[%s7] sm:$0x1]
    %v3599 = vld [vmem:[#allocation2] sm:$0x1]
    %v3601 = vlaneseq
    %v3602 = vshrl.u32 %v3601, 7
    %v3603 = vsub.s32 0, %v3602
    %v3604 = vrot.slane %v3598, %v3603
    %v3606 = vmul.f32 %v3582, %v3604
    %v3607 = vmul.f32 %v3583, %v3604
    %v3608 = vmul.f32 %v3584, %v3604
    %v3609 = vmul.f32 %v3585, %v3604
    %v3610 = vmul.f32 %v3586, %v3604
    %v3611 = vmul.f32 %v3587, %v3604
    %v3612 = vmul.f32 %v3588, %v3604
    %v3613 = vmul.f32 %v3589, %v3604
    %v3614 = vmul.f32 %v3590, %v3604
    %v3615 = vmul.f32 %v3591, %v3604
    %v3616 = vmul.f32 %v3592, %v3604
    %v3617 = vmul.f32 %v3593, %v3604
    %v3618 = vmul.f32 %v3594, %v3604
    %v3619 = vmul.f32 %v3595, %v3604
    %v3620 = vmul.f32 %v3596, %v3604
    %v3621 = vmul.f32 %v3597, %v3604
    %v3622 = vsel %vm2403, %v3606, 0.0
    %3623 = vadd.xlane.f32.xlu0 %v3622
    %v3624 = vpop.xlane.xlu0 %3623
    %v3625 = vsel %vm2403, %v3607, 0.0
    %3626 = vadd.xlane.f32.xlu0 %v3625
    %v3627 = vpop.xlane.xlu0 %3626
    %v3628 = vsel %vm2403, %v3608, 0.0
    %3629 = vadd.xlane.f32.xlu0 %v3628
    %v3630 = vpop.xlane.xlu0 %3629
    %v3631 = vsel %vm2403, %v3609, 0.0
    %3632 = vadd.xlane.f32.xlu0 %v3631
    %v3633 = vpop.xlane.xlu0 %3632
    %v3634 = vsel %vm2403, %v3610, 0.0
    %3635 = vadd.xlane.f32.xlu0 %v3634
    %v3636 = vpop.xlane.xlu0 %3635
    %v3637 = vsel %vm2403, %v3611, 0.0
    %3638 = vadd.xlane.f32.xlu0 %v3637
    %v3639 = vpop.xlane.xlu0 %3638
    %v3640 = vsel %vm2403, %v3612, 0.0
    %3641 = vadd.xlane.f32.xlu0 %v3640
    %v3642 = vpop.xlane.xlu0 %3641
    %v3643 = vsel %vm2403, %v3613, 0.0
    %3644 = vadd.xlane.f32.xlu0 %v3643
    %v3645 = vpop.xlane.xlu0 %3644
    %v3646 = vsel %vm2403, %v3614, 0.0
    %3647 = vadd.xlane.f32.xlu0 %v3646
    %v3648 = vpop.xlane.xlu0 %3647
    %v3649 = vsel %vm2403, %v3615, 0.0
    %3650 = vadd.xlane.f32.xlu0 %v3649
    %v3651 = vpop.xlane.xlu0 %3650
    %v3652 = vsel %vm2403, %v3616, 0.0
    %3653 = vadd.xlane.f32.xlu0 %v3652
    %v3654 = vpop.xlane.xlu0 %3653
    %v3655 = vsel %vm2403, %v3617, 0.0
    %3656 = vadd.xlane.f32.xlu0 %v3655
    %v3657 = vpop.xlane.xlu0 %3656
    %v3658 = vsel %vm2403, %v3618, 0.0
    %3659 = vadd.xlane.f32.xlu0 %v3658
    %v3660 = vpop.xlane.xlu0 %3659
    %v3661 = vsel %vm2403, %v3619, 0.0
    %3662 = vadd.xlane.f32.xlu0 %v3661
    %v3663 = vpop.xlane.xlu0 %3662
    %v3664 = vsel %vm2403, %v3620, 0.0
    %3665 = vadd.xlane.f32.xlu0 %v3664
    %v3666 = vpop.xlane.xlu0 %3665
    %v3667 = vsel %vm2403, %v3621, 0.0
    %3668 = vadd.xlane.f32.xlu0 %v3667
    %v3669 = vpop.xlane.xlu0 %3668
    %s3670 = vtos %v3599
    %v3671 = vstv %s3670
    %v3672 = vadd.f32 %v3624, %v3671
    %v3673 = vadd.f32 %v3627, %v3671
    %v3674 = vadd.f32 %v3630, %v3671
    %v3675 = vadd.f32 %v3633, %v3671
    %v3676 = vadd.f32 %v3636, %v3671
    %v3677 = vadd.f32 %v3639, %v3671
    %v3678 = vadd.f32 %v3642, %v3671
    %v3679 = vadd.f32 %v3645, %v3671
    %v3680 = vadd.f32 %v3648, %v3671
    %v3681 = vadd.f32 %v3651, %v3671
    %v3682 = vadd.f32 %v3654, %v3671
    %v3683 = vadd.f32 %v3657, %v3671
    %v3684 = vadd.f32 %v3660, %v3671
    %v3685 = vadd.f32 %v3663, %v3671
    %v3686 = vadd.f32 %v3666, %v3671
    %v3687 = vadd.f32 %v3669, %v3671
    %v3704 = vlaneseq
    %v3705 = vand.u32 %v3704, 127
    %v3706 = vlaneseq
    %v3707 = vshrl.u32 %v3706, 7
    %v3708 = vsub.s32 %v3705, %v3707
    %v3709 = vrot.slane %v3672, %v3708
    %v3710 = vadd.s32 %v3705, 4294967288
    %v3711 = vlaneseq
    %v3712 = vshrl.u32 %v3711, 7
    %v3713 = vsub.s32 %v3710, %v3712
    %v3714 = vrot.slane %v3673, %v3713
    %vm3715 = vcmask 130112
    %v3716 = vsel %vm3715, %v3714, %v3709
    %v3717 = vadd.s32 %v3705, 4294967280
    %v3718 = vlaneseq
    %v3719 = vshrl.u32 %v3718, 7
    %v3720 = vsub.s32 %v3717, %v3719
    %v3721 = vrot.slane %v3674, %v3720
    %vm3722 = vcmask 195712
    %v3723 = vsel %vm3722, %v3721, %v3716
    %v3724 = vadd.s32 %v3705, 4294967272
    %v3725 = vlaneseq
    %v3726 = vshrl.u32 %v3725, 7
    %v3727 = vsub.s32 %v3724, %v3726
    %v3728 = vrot.slane %v3675, %v3727
    %vm3729 = vcmask 261312
    %v3730 = vsel %vm3729, %v3728, %v3723
    %v3731 = vadd.s32 %v3705, 4294967264
    %v3732 = vlaneseq
    %v3733 = vshrl.u32 %v3732, 7
    %v3734 = vsub.s32 %v3731, %v3733
    %v3735 = vrot.slane %v3676, %v3734
    %vm3736 = vcmask 326912
    %v3737 = vsel %vm3736, %v3735, %v3730
    %v3738 = vadd.s32 %v3705, 4294967256
    %v3739 = vlaneseq
    %v3740 = vshrl.u32 %v3739, 7
    %v3741 = vsub.s32 %v3738, %v3740
    %v3742 = vrot.slane %v3677, %v3741
    %vm3743 = vcmask 392512
    %v3744 = vsel %vm3743, %v3742, %v3737
    %v3745 = vadd.s32 %v3705, 4294967248
    %v3746 = vlaneseq
    %v3747 = vshrl.u32 %v3746, 7
    %v3748 = vsub.s32 %v3745, %v3747
    %v3749 = vrot.slane %v3678, %v3748
    %vm3750 = vcmask 458112
    %v3751 = vsel %vm3750, %v3749, %v3744
    %v3752 = vadd.s32 %v3705, 4294967240
    %v3753 = vlaneseq
    %v3754 = vshrl.u32 %v3753, 7
    %v3755 = vsub.s32 %v3752, %v3754
    %v3756 = vrot.slane %v3679, %v3755
    %vm3757 = vcmask 523712
    %v3758 = vsel %vm3757, %v3756, %v3751
    %v3759 = vadd.s32 %v3705, 4294967232
    %v3760 = vlaneseq
    %v3761 = vshrl.u32 %v3760, 7
    %v3762 = vsub.s32 %v3759, %v3761
    %v3763 = vrot.slane %v3680, %v3762
    %vm3764 = vcmask 589312
    %v3765 = vsel %vm3764, %v3763, %v3758
    %v3766 = vadd.s32 %v3705, 4294967224
    %v3767 = vlaneseq
    %v3768 = vshrl.u32 %v3767, 7
    %v3769 = vsub.s32 %v3766, %v3768
    %v3770 = vrot.slane %v3681, %v3769
    %vm3771 = vcmask 654912
    %v3772 = vsel %vm3771, %v3770, %v3765
    %v3773 = vadd.s32 %v3705, 4294967216
    %v3774 = vlaneseq
    %v3775 = vshrl.u32 %v3774, 7
    %v3776 = vsub.s32 %v3773, %v3775
    %v3777 = vrot.slane %v3682, %v3776
    %vm3778 = vcmask 720512
    %v3779 = vsel %vm3778, %v3777, %v3772
    %v3780 = vadd.s32 %v3705, 4294967208
    %v3781 = vlaneseq
    %v3782 = vshrl.u32 %v3781, 7
    %v3783 = vsub.s32 %v3780, %v3782
    %v3784 = vrot.slane %v3683, %v3783
    %vm3785 = vcmask 786112
    %v3786 = vsel %vm3785, %v3784, %v3779
    %v3787 = vadd.s32 %v3705, 4294967200
    %v3788 = vlaneseq
    %v3789 = vshrl.u32 %v3788, 7
    %v3790 = vsub.s32 %v3787, %v3789
    %v3791 = vrot.slane %v3684, %v3790
    %vm3792 = vcmask 851712
    %v3793 = vsel %vm3792, %v3791, %v3786
    %v3794 = vadd.s32 %v3705, 4294967192
    %v3795 = vlaneseq
    %v3796 = vshrl.u32 %v3795, 7
    %v3797 = vsub.s32 %v3794, %v3796
    %v3798 = vrot.slane %v3685, %v3797
    %vm3799 = vcmask 917312
    %v3800 = vsel %vm3799, %v3798, %v3793
    %v3801 = vadd.s32 %v3705, 4294967184
    %v3802 = vlaneseq
    %v3803 = vshrl.u32 %v3802, 7
    %v3804 = vsub.s32 %v3801, %v3803
    %v3805 = vrot.slane %v3686, %v3804
    %vm3806 = vcmask 982912
    %v3807 = vsel %vm3806, %v3805, %v3800
    %v3808 = vadd.s32 %v3705, 4294967176
    %v3809 = vlaneseq
    %v3810 = vshrl.u32 %v3809, 7
    %v3811 = vsub.s32 %v3808, %v3810
    %v3812 = vrot.slane %v3687, %v3811
    %vm3813 = vcmask 1048512
    %v3814 = vsel %vm3813, %v3812, %v3807
    %3816 = vst [vmem:[#allocation3] sm:$0x1] %v3814
    // Predicated region
    $region38: #{tpu_custom_call.1} parent=1 // pred_check
      _
    $region39: #{tpu_custom_call.1} parent=1 // pred_check_branch
      %3818 = sbr.rel (0) target = $region41
    $region40: #{tpu_custom_call.1} parent=1 // pred_region
      %s3820 = ssub.s32 16, 16
      %3821 = vsyncadd [#allocation4], %s3820
      %s3823 = sshll.u32 [#allocation3], 4
      %s3824 = int_to_ptr.vmem [resolvable:$true] %s3823
      %3826 = dma.vmem_to_hbm [thread:$0]  %s3824, 16, %s9, [#allocation4]
    $region41: #{tpu_custom_call.1} parent=1 // pred_fallthru
      _
    // Predicated region
    $region42: #{tpu_custom_call.1} parent=1 // pred_check
      _
    $region43: #{tpu_custom_call.1} parent=1 // pred_check_branch
      %3828 = sbr.rel (0) target = $region45
    $region44: #{tpu_custom_call.1} parent=1 // pred_region
      %3829 = dma.done [#allocation4], 16
    $region45: #{tpu_custom_call.1} parent=1 // pred_fallthru
      _
    %3830 = vsyncpa [#allocation4], 1

</llo_original>
